<compile_context>
chip_gen: v6e
topology: v6e:2x2x1
jax: 0.10.0
libtpu: 0.0.40
codegen_flags: <defaults>
</compile_context>

<pallas_src>
import math
import functools

import jax
import jax.numpy as jnp
from jax.experimental import pallas as pl
from jax.experimental.pallas import tpu as pltpu

EPS = 1e-5  # nn.LayerNorm default


# ------------------------------ kernel ---------------------------------------

def _layer_norm(h, g, b):
    mu = jnp.mean(h, axis=-1, keepdims=True)
    var = jnp.mean((h - mu) ** 2, axis=-1, keepdims=True)
    return (h - mu) * jax.lax.rsqrt(var + EPS) * g + b


def fused_forward_kernel(
        x_ref, txt_w_ref, add_ref,                       # embed (constant index)
        wqkv_ref, bqkv_ref, wo_ref, bo_ref,              # per-layer (stacked)
        g1_ref, be1_ref, w1_ref, bf1_ref, w2_ref, bf2_ref, g2_ref, be2_ref,
        cls_w_ref, cls_b_ref,                            # classifier (constant)
        o_ref,                                           # (B, 1) output
        h_ref,                                           # VMEM scratch (B*S1, D)
        *, batch, seq1, nhead, scale):
    l = pl.program_id(0)
    d_model = h_ref.shape[-1]
    dh = d_model // nhead
    inv_sqrt_dh = 1.0 / math.sqrt(dh)

    # ---- embed on the first grid step: (x_pad @ W)*sqrt(d) + (scaled bias + PE) ----
    # x_pad has zero CLS rows, add_ref has zero bias on CLS rows -> CLS = pe[0].
    @pl.when(l == 0)
    def _():
        y = jnp.dot(x_ref[...], txt_w_ref[...],
                    preferred_element_type=jnp.float32) * scale
        h_ref[...] = y + add_ref[...]

    h = h_ref[...]                                            # (N, D), N = B*S1

    # ---- multi-head self-attention (fused QKV / output projections) ----
    qkv = jnp.dot(h, wqkv_ref[0], preferred_element_type=jnp.float32) + bqkv_ref[0]
    q_all = qkv[:, 0:d_model] * inv_sqrt_dh                   # fold scale once (VPU)
    k_all = qkv[:, d_model:2 * d_model]
    v_all = qkv[:, 2 * d_model:3 * d_model]

    ctx_rows = []
    for b in range(batch):                                    # static unroll
        r0 = b * seq1
        q_b = q_all[r0:r0 + seq1, :]
        k_b = k_all[r0:r0 + seq1, :]
        v_b = v_all[r0:r0 + seq1, :]
        heads = []
        for hh in range(nhead):                               # static unroll
            c0 = hh * dh
            qh = q_b[:, c0:c0 + dh]
            kh = k_b[:, c0:c0 + dh]
            vh = v_b[:, c0:c0 + dh]
            s = jax.lax.dot_general(qh, kh, (((1,), (1,)), ((), ())),
                                    preferred_element_type=jnp.float32)
            s = s - jnp.max(s, axis=-1, keepdims=True)
            p = jnp.exp(s)
            p = p * pl.reciprocal(jnp.sum(p, axis=-1, keepdims=True), approx=True)
            heads.append(jnp.dot(p, vh, preferred_element_type=jnp.float32))
        ctx_rows.append(jnp.concatenate(heads, axis=-1))      # (S1, D)
    ctx = jnp.concatenate(ctx_rows, axis=0)                   # (N, D)
    attn = jnp.dot(ctx, wo_ref[0], preferred_element_type=jnp.float32) + bo_ref[0]

    h1 = _layer_norm(h + attn, g1_ref[0], be1_ref[0])

    # ---- feed-forward: Linear -> ReLU -> Linear, post-norm ----
    f = jnp.dot(h1, w1_ref[0], preferred_element_type=jnp.float32) + bf1_ref[0]
    f = jnp.maximum(f, 0.0)
    f = jnp.dot(f, w2_ref[0], preferred_element_type=jnp.float32) + bf2_ref[0]
    h2 = _layer_norm(h1 + f, g2_ref[0], be2_ref[0])

    h_ref[...] = h2                                           # carry to next layer

    # ---- classifier on CLS rows, last grid step only ----
    @pl.when(l == pl.num_programs(0) - 1)
    def _():
        cls = jnp.concatenate(
            [h2[b * seq1:b * seq1 + 1, :] for b in range(batch)], axis=0)  # (B, D)
        logits = (jnp.sum(cls * cls_w_ref[...], axis=-1, keepdims=True)
                  + cls_b_ref[...])
        o_ref[...] = 1.0 / (1.0 + jnp.exp(-logits))


# ------------------------------ params ---------------------------------------

def sinusoidal_pe(length, d_model):
    pos = jnp.arange(length, dtype=jnp.float32)[:, None]
    div = jnp.exp(jnp.arange(0, d_model, 2, dtype=jnp.float32)
                  * (-math.log(10000.0) / d_model))
    pe = jnp.zeros((length, d_model), jnp.float32)
    pe = pe.at[:, 0::2].set(jnp.sin(pos * div))
    pe = pe.at[:, 1::2].set(jnp.cos(pos * div))
    return pe


def _linear_init(key, fan_in, fan_out):
    kw, kb = jax.random.split(key)
    bound = 1.0 / math.sqrt(fan_in)
    w = jax.random.uniform(kw, (fan_in, fan_out), jnp.float32, -bound, bound)
    b = jax.random.uniform(kb, (1, fan_out), jnp.float32, -bound, bound)
    return w, b


def init_params(key, text_dim, d_model, nhead, num_layers, dff):
    keys = jax.random.split(key, 2 + num_layers)
    params = {}
    params["text_w"], params["text_b"] = _linear_init(keys[0], text_dim, d_model)

    wqkv, bqkv, wo, bo = [], [], [], []
    g1, be1, w1, bf1, w2, bf2, g2, be2 = ([] for _ in range(8))
    for i in range(num_layers):
        lk = jax.random.split(keys[1 + i], 6)
        wq, bq = _linear_init(lk[0], d_model, d_model)
        wk, bk = _linear_init(lk[1], d_model, d_model)
        wv, bv = _linear_init(lk[2], d_model, d_model)
        wo_i, bo_i = _linear_init(lk[3], d_model, d_model)
        w1_i, b1_i = _linear_init(lk[4], d_model, dff)
        w2_i, b2_i = _linear_init(lk[5], dff, d_model)
        wqkv.append(jnp.concatenate([wq, wk, wv], axis=1))    # (D, 3D)
        bqkv.append(jnp.concatenate([bq, bk, bv], axis=1))    # (1, 3D)
        wo.append(wo_i); bo.append(bo_i)
        g1.append(jnp.ones((1, d_model), jnp.float32))
        be1.append(jnp.zeros((1, d_model), jnp.float32))
        w1.append(w1_i); bf1.append(b1_i)
        w2.append(w2_i); bf2.append(b2_i)
        g2.append(jnp.ones((1, d_model), jnp.float32))
        be2.append(jnp.zeros((1, d_model), jnp.float32))

    stack = lambda xs: jnp.stack(xs, axis=0)
    params.update(
        wqkv=stack(wqkv), bqkv=stack(bqkv), wo=stack(wo), bo=stack(bo),
        g1=stack(g1), be1=stack(be1), w1=stack(w1), bf1=stack(bf1),
        w2=stack(w2), bf2=stack(bf2), g2=stack(g2), be2=stack(be2))

    cw, cb = _linear_init(keys[1 + num_layers], d_model, 1)
    params["cls_w"] = cw.T                 # (1, d_model) row
    params["cls_b"] = cb                   # (1, 1)
    return params


# ------------------------------ forward --------------------------------------

def forward(params, x, *, d_model, nhead):
    B, S, T = x.shape
    S1 = S + 1
    N = B * S1
    L = params["wqkv"].shape[0]
    dff = params["w1"].shape[2]
    scale = math.sqrt(d_model)

    # Tiny host-side prep (input only; activations never leave VMEM between layers).
    pe = sinusoidal_pe(S1, d_model)                                     # (S1, D)
    x_slab = jnp.concatenate(
        [jnp.zeros((B, 1, T), jnp.float32), x], axis=1).reshape(N, T)   # zero CLS rows
    bias_rows = jnp.concatenate(
        [jnp.zeros((1, d_model), jnp.float32),
         jnp.broadcast_to(params["text_b"] * scale, (S, d_model))], axis=0)
    add_slab = jnp.tile(bias_rows + pe, (B, 1))                         # (N, D)

    kernel = functools.partial(fused_forward_kernel, batch=B, seq1=S1,
                               nhead=nhead, scale=scale)

    const2 = lambda shape: pl.BlockSpec(shape, lambda l: (0, 0))
    perlayer = lambda shape: pl.BlockSpec((1,) + shape, lambda l: (l, 0, 0))

    out = pl.pallas_call(
        kernel,
        out_shape=jax.ShapeDtypeStruct((B, 1), jnp.float32),
        grid=(L,),
        in_specs=[
            const2((N, T)),                       # x_slab
            const2((T, d_model)),                 # text_w
            const2((N, d_model)),                 # add_slab (scaled bias + PE)
            perlayer((d_model, 3 * d_model)),     # wqkv
            perlayer((1, 3 * d_model)),           # bqkv
            perlayer((d_model, d_model)),         # wo
            perlayer((1, d_model)),               # bo
            perlayer((1, d_model)),               # g1
            perlayer((1, d_model)),               # be1
            perlayer((d_model, dff)),             # w1
            perlayer((1, dff)),                   # bf1
            perlayer((dff, d_model)),             # w2
            perlayer((1, d_model)),               # bf2
            perlayer((1, d_model)),               # g2
            perlayer((1, d_model)),               # be2
            const2((1, d_model)),                 # cls_w
            const2((1, 1)),                       # cls_b
        ],
        out_specs=pl.BlockSpec((B, 1), lambda l: (0, 0)),
        scratch_shapes=[pltpu.VMEM((N, d_model), jnp.float32)],
        compiler_params=pltpu.CompilerParams(
            dimension_semantics=("arbitrary",),
            vmem_limit_bytes=64 << 20),
    )(x_slab, params["text_w"], add_slab,
      params["wqkv"], params["bqkv"], params["wo"], params["bo"],
      params["g1"], params["be1"], params["w1"], params["bf1"],
      params["w2"], params["bf2"], params["g2"], params["be2"],
      params["cls_w"], params["cls_b"])
    return out


# --------------------------------- main ---------------------------------------

if __name__ == "__main__":
    TEXT_DIM, D_MODEL, NHEAD, NUM_LAYERS, DFF = 16, 32, 4, 2, 64
    B, S = 2, 8

    key = jax.random.PRNGKey(0)
    kx, kp = jax.random.split(key)
    text_embeddings = jax.random.normal(kx, (B, S, TEXT_DIM), jnp.float32)
    params = init_params(kp, TEXT_DIM, D_MODEL, NHEAD, NUM_LAYERS, DFF)

    out = forward(params, text_embeddings, d_model=D_MODEL, nhead=NHEAD)
    out = jax.block_until_ready(out)

    assert out.shape == (B, 1), out.shape
    assert bool(jnp.all(jnp.isfinite(out)))
    assert bool(jnp.all((out >= 0.0) & (out <= 1.0)))   # sigmoid output
    print("KERNEL_OK")
</pallas_src>

<mosaic_0001>
module attributes {stable_mosaic.version = 11 : i64} {
  func.func @fused_forward_kernel(%arg0: i32, %arg1: memref<18x16xf32, #tpu.memory_space<vmem>>, %arg2: memref<16x32xf32, #tpu.memory_space<vmem>>, %arg3: memref<18x32xf32, #tpu.memory_space<vmem>>, %arg4: memref<1x32x96xf32, #tpu.memory_space<vmem>>, %arg5: memref<1x1x96xf32, #tpu.memory_space<vmem>>, %arg6: memref<1x32x32xf32, #tpu.memory_space<vmem>>, %arg7: memref<1x1x32xf32, #tpu.memory_space<vmem>>, %arg8: memref<1x1x32xf32, #tpu.memory_space<vmem>>, %arg9: memref<1x1x32xf32, #tpu.memory_space<vmem>>, %arg10: memref<1x32x64xf32, #tpu.memory_space<vmem>>, %arg11: memref<1x1x64xf32, #tpu.memory_space<vmem>>, %arg12: memref<1x64x32xf32, #tpu.memory_space<vmem>>, %arg13: memref<1x1x32xf32, #tpu.memory_space<vmem>>, %arg14: memref<1x1x32xf32, #tpu.memory_space<vmem>>, %arg15: memref<1x1x32xf32, #tpu.memory_space<vmem>>, %arg16: memref<1x32xf32, #tpu.memory_space<vmem>>, %arg17: memref<1x1xf32, #tpu.memory_space<vmem>>, %arg18: memref<2x1xf32, #tpu.memory_space<vmem>>, %arg19: memref<18x32xf32, #tpu.memory_space<vmem>>) attributes {dimension_semantics = [#tpu.dimension_semantics<arbitrary>], iteration_bounds = array<i64: 2>, scalar_prefetch = 0 : i64, scratch_operands = 1 : i64, tpu.core_type = #tpu.core_type<tc>, window_params = [{pipeline_mode = #tpu.pipeline_mode<synchronous>, transform_indices = @transform_0, window_bounds = array<i64: 18, 16>}, {pipeline_mode = #tpu.pipeline_mode<synchronous>, transform_indices = @transform_1, window_bounds = array<i64: 16, 32>}, {pipeline_mode = #tpu.pipeline_mode<synchronous>, transform_indices = @transform_2, window_bounds = array<i64: 18, 32>}, {transform_indices = @transform_3, window_bounds = array<i64: 1, 32, 96>}, {transform_indices = @transform_4, window_bounds = array<i64: 1, 1, 96>}, {transform_indices = @transform_5, window_bounds = array<i64: 1, 32, 32>}, {transform_indices = @transform_6, window_bounds = array<i64: 1, 1, 32>}, {transform_indices = @transform_7, window_bounds = array<i64: 1, 1, 32>}, {transform_indices = @transform_8, window_bounds = array<i64: 1, 1, 32>}, {transform_indices = @transform_9, window_bounds = array<i64: 1, 32, 64>}, {transform_indices = @transform_10, window_bounds = array<i64: 1, 1, 64>}, {transform_indices = @transform_11, window_bounds = array<i64: 1, 64, 32>}, {transform_indices = @transform_12, window_bounds = array<i64: 1, 1, 32>}, {transform_indices = @transform_13, window_bounds = array<i64: 1, 1, 32>}, {transform_indices = @transform_14, window_bounds = array<i64: 1, 1, 32>}, {pipeline_mode = #tpu.pipeline_mode<synchronous>, transform_indices = @transform_15, window_bounds = array<i64: 1, 32>}, {pipeline_mode = #tpu.pipeline_mode<synchronous>, transform_indices = @transform_16, window_bounds = array<i64: 1, 1>}, {pipeline_mode = #tpu.pipeline_mode<synchronous>, transform_indices = @transform_17, window_bounds = array<i64: 2, 1>}]} {
    %c0_i32 = arith.constant 0 : i32
    %0 = arith.cmpi eq, %arg0, %c0_i32 : i32
    %1 = arith.extui %0 : i1 to i32
    %c0_i32_0 = arith.constant 0 : i32
    %2 = arith.cmpi ne, %1, %c0_i32_0 : i32
    scf.if %2 {
      %c0_88 = arith.constant 0 : index
      %c0_89 = arith.constant 0 : index
      %226 = vector.load %arg1[%c0_88, %c0_89] : memref<18x16xf32, #tpu.memory_space<vmem>>, vector<18x16xf32>
      %c0_90 = arith.constant 0 : index
      %c0_91 = arith.constant 0 : index
      %227 = vector.load %arg2[%c0_90, %c0_91] : memref<16x32xf32, #tpu.memory_space<vmem>>, vector<16x32xf32>
      %cst_92 = arith.constant dense<0.000000e+00> : vector<18x32xf32>
      %228 = tpu.matmul %226, %227, %cst_92 {dimension_numbers = #tpu.dot_dimension_numbers<[1], [0], [0], [1], [0, 0, 1, 1], [], []>} : vector<18x16xf32>, vector<16x32xf32>, vector<18x32xf32> -> vector<18x32xf32>
      %cst_93 = arith.constant 5.65685415 : f32
      %229 = vector.broadcast %cst_93 : f32 to vector<18x32xf32>
      %230 = arith.mulf %228, %229 : vector<18x32xf32>
      %c0_94 = arith.constant 0 : index
      %c0_95 = arith.constant 0 : index
      %231 = vector.load %arg3[%c0_94, %c0_95] : memref<18x32xf32, #tpu.memory_space<vmem>>, vector<18x32xf32>
      %232 = arith.addf %230, %231 : vector<18x32xf32>
      %c0_96 = arith.constant 0 : index
      %c0_97 = arith.constant 0 : index
      %233 = vector.load %arg19[%c0_96, %c0_97] : memref<18x32xf32, #tpu.memory_space<vmem>>, vector<18x32xf32>
      tpu.vector_store %arg19[%c0_96, %c0_97], %232 {strides = array<i32>} : memref<18x32xf32, #tpu.memory_space<vmem>>, vector<18x32xf32>,
    } else {
    }
    %c0 = arith.constant 0 : index
    %c0_1 = arith.constant 0 : index
    %3 = vector.load %arg19[%c0, %c0_1] : memref<18x32xf32, #tpu.memory_space<vmem>>, vector<18x32xf32>
    %c0_2 = arith.constant 0 : index
    %c0_3 = arith.constant 0 : index
    %c0_4 = arith.constant 0 : index
    %4 = vector.load %arg4[%c0_2, %c0_3, %c0_4] : memref<1x32x96xf32, #tpu.memory_space<vmem>>, vector<1x32x96xf32>
    %5 = vector.shape_cast %4 : vector<1x32x96xf32> to vector<32x96xf32>
    %cst = arith.constant dense<0.000000e+00> : vector<18x96xf32>
    %6 = tpu.matmul %3, %5, %cst {dimension_numbers = #tpu.dot_dimension_numbers<[1], [0], [0], [1], [0, 0, 1, 1], [], []>} : vector<18x32xf32>, vector<32x96xf32>, vector<18x96xf32> -> vector<18x96xf32>
    %c0_5 = arith.constant 0 : index
    %c0_6 = arith.constant 0 : index
    %c0_7 = arith.constant 0 : index
    %7 = vector.load %arg5[%c0_5, %c0_6, %c0_7] : memref<1x1x96xf32, #tpu.memory_space<vmem>>, vector<1x1x96xf32>
    %8 = vector.shape_cast %7 : vector<1x1x96xf32> to vector<1x96xf32>
    %9 = vector.broadcast %8 : vector<1x96xf32> to vector<18x96xf32>
    %10 = arith.addf %6, %9 : vector<18x96xf32>
    %11 = vector.extract_strided_slice %10 {offsets = [0, 0], sizes = [18, 32], strides = [1, 1]} : vector<18x96xf32> to vector<18x32xf32>
    %cst_8 = arith.constant 0.353553385 : f32
    %12 = vector.broadcast %cst_8 : f32 to vector<18x32xf32>
    %13 = arith.mulf %11, %12 : vector<18x32xf32>
    %14 = vector.extract_strided_slice %10 {offsets = [0, 32], sizes = [18, 32], strides = [1, 1]} : vector<18x96xf32> to vector<18x32xf32>
    %15 = vector.extract_strided_slice %10 {offsets = [0, 64], sizes = [18, 32], strides = [1, 1]} : vector<18x96xf32> to vector<18x32xf32>
    %16 = vector.extract_strided_slice %13 {offsets = [0, 0], sizes = [9, 32], strides = [1, 1]} : vector<18x32xf32> to vector<9x32xf32>
    %17 = vector.extract_strided_slice %14 {offsets = [0, 0], sizes = [9, 32], strides = [1, 1]} : vector<18x32xf32> to vector<9x32xf32>
    %18 = vector.extract_strided_slice %15 {offsets = [0, 0], sizes = [9, 32], strides = [1, 1]} : vector<18x32xf32> to vector<9x32xf32>
    %19 = vector.extract_strided_slice %16 {offsets = [0, 0], sizes = [9, 8], strides = [1, 1]} : vector<9x32xf32> to vector<9x8xf32>
    %20 = vector.extract_strided_slice %17 {offsets = [0, 0], sizes = [9, 8], strides = [1, 1]} : vector<9x32xf32> to vector<9x8xf32>
    %21 = vector.extract_strided_slice %18 {offsets = [0, 0], sizes = [9, 8], strides = [1, 1]} : vector<9x32xf32> to vector<9x8xf32>
    %cst_9 = arith.constant dense<0.000000e+00> : vector<9x9xf32>
    %22 = tpu.matmul %19, %20, %cst_9 {dimension_numbers = #tpu.dot_dimension_numbers<[1], [1], [0], [0], [0, 0, 1, 0], [], []>} : vector<9x8xf32>, vector<9x8xf32>, vector<9x9xf32> -> vector<9x9xf32>
    %cst_10 = arith.constant dense<0xFF800000> : vector<9xf32>
    %23 = vector.multi_reduction <maximumf>, %22, %cst_10 [1] : vector<9x9xf32> to vector<9xf32>
    %24 = vector.shape_cast %23 : vector<9xf32> to vector<9x1xf32>
    %25 = vector.broadcast %24 : vector<9x1xf32> to vector<9x9xf32>
    %26 = arith.subf %22, %25 : vector<9x9xf32>
    %27 = math.exp %26 : vector<9x9xf32>
    %cst_11 = arith.constant dense<0.000000e+00> : vector<9xf32>
    %28 = vector.multi_reduction <add>, %27, %cst_11 [1] : vector<9x9xf32> to vector<9xf32>
    %29 = vector.shape_cast %28 : vector<9xf32> to vector<9x1xf32>
    %30 = tpu.reciprocal %29 {approx = true} : vector<9x1xf32> -> vector<9x1xf32>
    %31 = vector.broadcast %30 : vector<9x1xf32> to vector<9x9xf32>
    %32 = arith.mulf %27, %31 : vector<9x9xf32>
    %cst_12 = arith.constant dense<0.000000e+00> : vector<9x8xf32>
    %33 = tpu.matmul %32, %21, %cst_12 {dimension_numbers = #tpu.dot_dimension_numbers<[1], [0], [0], [1], [0, 0, 1, 1], [], []>} : vector<9x9xf32>, vector<9x8xf32>, vector<9x8xf32> -> vector<9x8xf32>
    %34 = vector.extract_strided_slice %16 {offsets = [0, 8], sizes = [9, 8], strides = [1, 1]} : vector<9x32xf32> to vector<9x8xf32>
    %35 = vector.extract_strided_slice %17 {offsets = [0, 8], sizes = [9, 8], strides = [1, 1]} : vector<9x32xf32> to vector<9x8xf32>
    %36 = vector.extract_strided_slice %18 {offsets = [0, 8], sizes = [9, 8], strides = [1, 1]} : vector<9x32xf32> to vector<9x8xf32>
    %cst_13 = arith.constant dense<0.000000e+00> : vector<9x9xf32>
    %37 = tpu.matmul %34, %35, %cst_13 {dimension_numbers = #tpu.dot_dimension_numbers<[1], [1], [0], [0], [0, 0, 1, 0], [], []>} : vector<9x8xf32>, vector<9x8xf32>, vector<9x9xf32> -> vector<9x9xf32>
    %cst_14 = arith.constant dense<0xFF800000> : vector<9xf32>
    %38 = vector.multi_reduction <maximumf>, %37, %cst_14 [1] : vector<9x9xf32> to vector<9xf32>
    %39 = vector.shape_cast %38 : vector<9xf32> to vector<9x1xf32>
    %40 = vector.broadcast %39 : vector<9x1xf32> to vector<9x9xf32>
    %41 = arith.subf %37, %40 : vector<9x9xf32>
    %42 = math.exp %41 : vector<9x9xf32>
    %cst_15 = arith.constant dense<0.000000e+00> : vector<9xf32>
    %43 = vector.multi_reduction <add>, %42, %cst_15 [1] : vector<9x9xf32> to vector<9xf32>
    %44 = vector.shape_cast %43 : vector<9xf32> to vector<9x1xf32>
    %45 = tpu.reciprocal %44 {approx = true} : vector<9x1xf32> -> vector<9x1xf32>
    %46 = vector.broadcast %45 : vector<9x1xf32> to vector<9x9xf32>
    %47 = arith.mulf %42, %46 : vector<9x9xf32>
    %cst_16 = arith.constant dense<0.000000e+00> : vector<9x8xf32>
    %48 = tpu.matmul %47, %36, %cst_16 {dimension_numbers = #tpu.dot_dimension_numbers<[1], [0], [0], [1], [0, 0, 1, 1], [], []>} : vector<9x9xf32>, vector<9x8xf32>, vector<9x8xf32> -> vector<9x8xf32>
    %49 = vector.extract_strided_slice %16 {offsets = [0, 16], sizes = [9, 8], strides = [1, 1]} : vector<9x32xf32> to vector<9x8xf32>
    %50 = vector.extract_strided_slice %17 {offsets = [0, 16], sizes = [9, 8], strides = [1, 1]} : vector<9x32xf32> to vector<9x8xf32>
    %51 = vector.extract_strided_slice %18 {offsets = [0, 16], sizes = [9, 8], strides = [1, 1]} : vector<9x32xf32> to vector<9x8xf32>
    %cst_17 = arith.constant dense<0.000000e+00> : vector<9x9xf32>
    %52 = tpu.matmul %49, %50, %cst_17 {dimension_numbers = #tpu.dot_dimension_numbers<[1], [1], [0], [0], [0, 0, 1, 0], [], []>} : vector<9x8xf32>, vector<9x8xf32>, vector<9x9xf32> -> vector<9x9xf32>
    %cst_18 = arith.constant dense<0xFF800000> : vector<9xf32>
    %53 = vector.multi_reduction <maximumf>, %52, %cst_18 [1] : vector<9x9xf32> to vector<9xf32>
    %54 = vector.shape_cast %53 : vector<9xf32> to vector<9x1xf32>
    %55 = vector.broadcast %54 : vector<9x1xf32> to vector<9x9xf32>
    %56 = arith.subf %52, %55 : vector<9x9xf32>
    %57 = math.exp %56 : vector<9x9xf32>
    %cst_19 = arith.constant dense<0.000000e+00> : vector<9xf32>
    %58 = vector.multi_reduction <add>, %57, %cst_19 [1] : vector<9x9xf32> to vector<9xf32>
    %59 = vector.shape_cast %58 : vector<9xf32> to vector<9x1xf32>
    %60 = tpu.reciprocal %59 {approx = true} : vector<9x1xf32> -> vector<9x1xf32>
    %61 = vector.broadcast %60 : vector<9x1xf32> to vector<9x9xf32>
    %62 = arith.mulf %57, %61 : vector<9x9xf32>
    %cst_20 = arith.constant dense<0.000000e+00> : vector<9x8xf32>
    %63 = tpu.matmul %62, %51, %cst_20 {dimension_numbers = #tpu.dot_dimension_numbers<[1], [0], [0], [1], [0, 0, 1, 1], [], []>} : vector<9x9xf32>, vector<9x8xf32>, vector<9x8xf32> -> vector<9x8xf32>
    %64 = vector.extract_strided_slice %16 {offsets = [0, 24], sizes = [9, 8], strides = [1, 1]} : vector<9x32xf32> to vector<9x8xf32>
    %65 = vector.extract_strided_slice %17 {offsets = [0, 24], sizes = [9, 8], strides = [1, 1]} : vector<9x32xf32> to vector<9x8xf32>
    %66 = vector.extract_strided_slice %18 {offsets = [0, 24], sizes = [9, 8], strides = [1, 1]} : vector<9x32xf32> to vector<9x8xf32>
    %cst_21 = arith.constant dense<0.000000e+00> : vector<9x9xf32>
    %67 = tpu.matmul %64, %65, %cst_21 {dimension_numbers = #tpu.dot_dimension_numbers<[1], [1], [0], [0], [0, 0, 1, 0], [], []>} : vector<9x8xf32>, vector<9x8xf32>, vector<9x9xf32> -> vector<9x9xf32>
    %cst_22 = arith.constant dense<0xFF800000> : vector<9xf32>
    %68 = vector.multi_reduction <maximumf>, %67, %cst_22 [1] : vector<9x9xf32> to vector<9xf32>
    %69 = vector.shape_cast %68 : vector<9xf32> to vector<9x1xf32>
    %70 = vector.broadcast %69 : vector<9x1xf32> to vector<9x9xf32>
    %71 = arith.subf %67, %70 : vector<9x9xf32>
    %72 = math.exp %71 : vector<9x9xf32>
    %cst_23 = arith.constant dense<0.000000e+00> : vector<9xf32>
    %73 = vector.multi_reduction <add>, %72, %cst_23 [1] : vector<9x9xf32> to vector<9xf32>
    %74 = vector.shape_cast %73 : vector<9xf32> to vector<9x1xf32>
    %75 = tpu.reciprocal %74 {approx = true} : vector<9x1xf32> -> vector<9x1xf32>
    %76 = vector.broadcast %75 : vector<9x1xf32> to vector<9x9xf32>
    %77 = arith.mulf %72, %76 : vector<9x9xf32>
    %cst_24 = arith.constant dense<0.000000e+00> : vector<9x8xf32>
    %78 = tpu.matmul %77, %66, %cst_24 {dimension_numbers = #tpu.dot_dimension_numbers<[1], [0], [0], [1], [0, 0, 1, 1], [], []>} : vector<9x9xf32>, vector<9x8xf32>, vector<9x8xf32> -> vector<9x8xf32>
    %79 = tpu.concatenate %33, %48, %63, %78 in 1 : vector<9x8xf32>, vector<9x8xf32>, vector<9x8xf32>, vector<9x8xf32> -> vector<9x32xf32>
    %80 = vector.extract_strided_slice %13 {offsets = [9, 0], sizes = [9, 32], strides = [1, 1]} : vector<18x32xf32> to vector<9x32xf32>
    %81 = vector.extract_strided_slice %14 {offsets = [9, 0], sizes = [9, 32], strides = [1, 1]} : vector<18x32xf32> to vector<9x32xf32>
    %82 = vector.extract_strided_slice %15 {offsets = [9, 0], sizes = [9, 32], strides = [1, 1]} : vector<18x32xf32> to vector<9x32xf32>
    %83 = vector.extract_strided_slice %80 {offsets = [0, 0], sizes = [9, 8], strides = [1, 1]} : vector<9x32xf32> to vector<9x8xf32>
    %84 = vector.extract_strided_slice %81 {offsets = [0, 0], sizes = [9, 8], strides = [1, 1]} : vector<9x32xf32> to vector<9x8xf32>
    %85 = vector.extract_strided_slice %82 {offsets = [0, 0], sizes = [9, 8], strides = [1, 1]} : vector<9x32xf32> to vector<9x8xf32>
    %cst_25 = arith.constant dense<0.000000e+00> : vector<9x9xf32>
    %86 = tpu.matmul %83, %84, %cst_25 {dimension_numbers = #tpu.dot_dimension_numbers<[1], [1], [0], [0], [0, 0, 1, 0], [], []>} : vector<9x8xf32>, vector<9x8xf32>, vector<9x9xf32> -> vector<9x9xf32>
    %cst_26 = arith.constant dense<0xFF800000> : vector<9xf32>
    %87 = vector.multi_reduction <maximumf>, %86, %cst_26 [1] : vector<9x9xf32> to vector<9xf32>
    %88 = vector.shape_cast %87 : vector<9xf32> to vector<9x1xf32>
    %89 = vector.broadcast %88 : vector<9x1xf32> to vector<9x9xf32>
    %90 = arith.subf %86, %89 : vector<9x9xf32>
    %91 = math.exp %90 : vector<9x9xf32>
    %cst_27 = arith.constant dense<0.000000e+00> : vector<9xf32>
    %92 = vector.multi_reduction <add>, %91, %cst_27 [1] : vector<9x9xf32> to vector<9xf32>
    %93 = vector.shape_cast %92 : vector<9xf32> to vector<9x1xf32>
    %94 = tpu.reciprocal %93 {approx = true} : vector<9x1xf32> -> vector<9x1xf32>
    %95 = vector.broadcast %94 : vector<9x1xf32> to vector<9x9xf32>
    %96 = arith.mulf %91, %95 : vector<9x9xf32>
    %cst_28 = arith.constant dense<0.000000e+00> : vector<9x8xf32>
    %97 = tpu.matmul %96, %85, %cst_28 {dimension_numbers = #tpu.dot_dimension_numbers<[1], [0], [0], [1], [0, 0, 1, 1], [], []>} : vector<9x9xf32>, vector<9x8xf32>, vector<9x8xf32> -> vector<9x8xf32>
    %98 = vector.extract_strided_slice %80 {offsets = [0, 8], sizes = [9, 8], strides = [1, 1]} : vector<9x32xf32> to vector<9x8xf32>
    %99 = vector.extract_strided_slice %81 {offsets = [0, 8], sizes = [9, 8], strides = [1, 1]} : vector<9x32xf32> to vector<9x8xf32>
    %100 = vector.extract_strided_slice %82 {offsets = [0, 8], sizes = [9, 8], strides = [1, 1]} : vector<9x32xf32> to vector<9x8xf32>
    %cst_29 = arith.constant dense<0.000000e+00> : vector<9x9xf32>
    %101 = tpu.matmul %98, %99, %cst_29 {dimension_numbers = #tpu.dot_dimension_numbers<[1], [1], [0], [0], [0, 0, 1, 0], [], []>} : vector<9x8xf32>, vector<9x8xf32>, vector<9x9xf32> -> vector<9x9xf32>
    %cst_30 = arith.constant dense<0xFF800000> : vector<9xf32>
    %102 = vector.multi_reduction <maximumf>, %101, %cst_30 [1] : vector<9x9xf32> to vector<9xf32>
    %103 = vector.shape_cast %102 : vector<9xf32> to vector<9x1xf32>
    %104 = vector.broadcast %103 : vector<9x1xf32> to vector<9x9xf32>
    %105 = arith.subf %101, %104 : vector<9x9xf32>
    %106 = math.exp %105 : vector<9x9xf32>
    %cst_31 = arith.constant dense<0.000000e+00> : vector<9xf32>
    %107 = vector.multi_reduction <add>, %106, %cst_31 [1] : vector<9x9xf32> to vector<9xf32>
    %108 = vector.shape_cast %107 : vector<9xf32> to vector<9x1xf32>
    %109 = tpu.reciprocal %108 {approx = true} : vector<9x1xf32> -> vector<9x1xf32>
    %110 = vector.broadcast %109 : vector<9x1xf32> to vector<9x9xf32>
    %111 = arith.mulf %106, %110 : vector<9x9xf32>
    %cst_32 = arith.constant dense<0.000000e+00> : vector<9x8xf32>
    %112 = tpu.matmul %111, %100, %cst_32 {dimension_numbers = #tpu.dot_dimension_numbers<[1], [0], [0], [1], [0, 0, 1, 1], [], []>} : vector<9x9xf32>, vector<9x8xf32>, vector<9x8xf32> -> vector<9x8xf32>
    %113 = vector.extract_strided_slice %80 {offsets = [0, 16], sizes = [9, 8], strides = [1, 1]} : vector<9x32xf32> to vector<9x8xf32>
    %114 = vector.extract_strided_slice %81 {offsets = [0, 16], sizes = [9, 8], strides = [1, 1]} : vector<9x32xf32> to vector<9x8xf32>
    %115 = vector.extract_strided_slice %82 {offsets = [0, 16], sizes = [9, 8], strides = [1, 1]} : vector<9x32xf32> to vector<9x8xf32>
    %cst_33 = arith.constant dense<0.000000e+00> : vector<9x9xf32>
    %116 = tpu.matmul %113, %114, %cst_33 {dimension_numbers = #tpu.dot_dimension_numbers<[1], [1], [0], [0], [0, 0, 1, 0], [], []>} : vector<9x8xf32>, vector<9x8xf32>, vector<9x9xf32> -> vector<9x9xf32>
    %cst_34 = arith.constant dense<0xFF800000> : vector<9xf32>
    %117 = vector.multi_reduction <maximumf>, %116, %cst_34 [1] : vector<9x9xf32> to vector<9xf32>
    %118 = vector.shape_cast %117 : vector<9xf32> to vector<9x1xf32>
    %119 = vector.broadcast %118 : vector<9x1xf32> to vector<9x9xf32>
    %120 = arith.subf %116, %119 : vector<9x9xf32>
    %121 = math.exp %120 : vector<9x9xf32>
    %cst_35 = arith.constant dense<0.000000e+00> : vector<9xf32>
    %122 = vector.multi_reduction <add>, %121, %cst_35 [1] : vector<9x9xf32> to vector<9xf32>
    %123 = vector.shape_cast %122 : vector<9xf32> to vector<9x1xf32>
    %124 = tpu.reciprocal %123 {approx = true} : vector<9x1xf32> -> vector<9x1xf32>
    %125 = vector.broadcast %124 : vector<9x1xf32> to vector<9x9xf32>
    %126 = arith.mulf %121, %125 : vector<9x9xf32>
    %cst_36 = arith.constant dense<0.000000e+00> : vector<9x8xf32>
    %127 = tpu.matmul %126, %115, %cst_36 {dimension_numbers = #tpu.dot_dimension_numbers<[1], [0], [0], [1], [0, 0, 1, 1], [], []>} : vector<9x9xf32>, vector<9x8xf32>, vector<9x8xf32> -> vector<9x8xf32>
    %128 = vector.extract_strided_slice %80 {offsets = [0, 24], sizes = [9, 8], strides = [1, 1]} : vector<9x32xf32> to vector<9x8xf32>
    %129 = vector.extract_strided_slice %81 {offsets = [0, 24], sizes = [9, 8], strides = [1, 1]} : vector<9x32xf32> to vector<9x8xf32>
    %130 = vector.extract_strided_slice %82 {offsets = [0, 24], sizes = [9, 8], strides = [1, 1]} : vector<9x32xf32> to vector<9x8xf32>
    %cst_37 = arith.constant dense<0.000000e+00> : vector<9x9xf32>
    %131 = tpu.matmul %128, %129, %cst_37 {dimension_numbers = #tpu.dot_dimension_numbers<[1], [1], [0], [0], [0, 0, 1, 0], [], []>} : vector<9x8xf32>, vector<9x8xf32>, vector<9x9xf32> -> vector<9x9xf32>
    %cst_38 = arith.constant dense<0xFF800000> : vector<9xf32>
    %132 = vector.multi_reduction <maximumf>, %131, %cst_38 [1] : vector<9x9xf32> to vector<9xf32>
    %133 = vector.shape_cast %132 : vector<9xf32> to vector<9x1xf32>
    %134 = vector.broadcast %133 : vector<9x1xf32> to vector<9x9xf32>
    %135 = arith.subf %131, %134 : vector<9x9xf32>
    %136 = math.exp %135 : vector<9x9xf32>
    %cst_39 = arith.constant dense<0.000000e+00> : vector<9xf32>
    %137 = vector.multi_reduction <add>, %136, %cst_39 [1] : vector<9x9xf32> to vector<9xf32>
    %138 = vector.shape_cast %137 : vector<9xf32> to vector<9x1xf32>
    %139 = tpu.reciprocal %138 {approx = true} : vector<9x1xf32> -> vector<9x1xf32>
    %140 = vector.broadcast %139 : vector<9x1xf32> to vector<9x9xf32>
    %141 = arith.mulf %136, %140 : vector<9x9xf32>
    %cst_40 = arith.constant dense<0.000000e+00> : vector<9x8xf32>
    %142 = tpu.matmul %141, %130, %cst_40 {dimension_numbers = #tpu.dot_dimension_numbers<[1], [0], [0], [1], [0, 0, 1, 1], [], []>} : vector<9x9xf32>, vector<9x8xf32>, vector<9x8xf32> -> vector<9x8xf32>
    %143 = tpu.concatenate %97, %112, %127, %142 in 1 : vector<9x8xf32>, vector<9x8xf32>, vector<9x8xf32>, vector<9x8xf32> -> vector<9x32xf32>
    %144 = tpu.concatenate %79, %143 in 0 : vector<9x32xf32>, vector<9x32xf32> -> vector<18x32xf32>
    %c0_41 = arith.constant 0 : index
    %c0_42 = arith.constant 0 : index
    %c0_43 = arith.constant 0 : index
    %145 = vector.load %arg6[%c0_41, %c0_42, %c0_43] : memref<1x32x32xf32, #tpu.memory_space<vmem>>, vector<1x32x32xf32>
    %146 = vector.shape_cast %145 : vector<1x32x32xf32> to vector<32x32xf32>
    %cst_44 = arith.constant dense<0.000000e+00> : vector<18x32xf32>
    %147 = tpu.matmul %144, %146, %cst_44 {dimension_numbers = #tpu.dot_dimension_numbers<[1], [0], [0], [1], [0, 0, 1, 1], [], []>} : vector<18x32xf32>, vector<32x32xf32>, vector<18x32xf32> -> vector<18x32xf32>
    %c0_45 = arith.constant 0 : index
    %c0_46 = arith.constant 0 : index
    %c0_47 = arith.constant 0 : index
    %148 = vector.load %arg7[%c0_45, %c0_46, %c0_47] : memref<1x1x32xf32, #tpu.memory_space<vmem>>, vector<1x1x32xf32>
    %149 = vector.shape_cast %148 : vector<1x1x32xf32> to vector<1x32xf32>
    %150 = vector.broadcast %149 : vector<1x32xf32> to vector<18x32xf32>
    %151 = arith.addf %147, %150 : vector<18x32xf32>
    %152 = arith.addf %3, %151 : vector<18x32xf32>
    %c0_48 = arith.constant 0 : index
    %c0_49 = arith.constant 0 : index
    %c0_50 = arith.constant 0 : index
    %153 = vector.load %arg8[%c0_48, %c0_49, %c0_50] : memref<1x1x32xf32, #tpu.memory_space<vmem>>, vector<1x1x32xf32>
    %154 = vector.shape_cast %153 : vector<1x1x32xf32> to vector<1x32xf32>
    %c0_51 = arith.constant 0 : index
    %c0_52 = arith.constant 0 : index
    %c0_53 = arith.constant 0 : index
    %155 = vector.load %arg9[%c0_51, %c0_52, %c0_53] : memref<1x1x32xf32, #tpu.memory_space<vmem>>, vector<1x1x32xf32>
    %156 = vector.shape_cast %155 : vector<1x1x32xf32> to vector<1x32xf32>
    %cst_54 = arith.constant dense<0.000000e+00> : vector<18xf32>
    %157 = vector.multi_reduction <add>, %152, %cst_54 [1] : vector<18x32xf32> to vector<18xf32>
    %158 = vector.shape_cast %157 : vector<18xf32> to vector<18x1xf32>
    %cst_55 = arith.constant 3.200000e+01 : f32
    %159 = vector.broadcast %cst_55 : f32 to vector<18x1xf32>
    %160 = arith.divf %158, %159 : vector<18x1xf32>
    %161 = vector.broadcast %160 : vector<18x1xf32> to vector<18x32xf32>
    %162 = arith.subf %152, %161 : vector<18x32xf32>
    %163 = arith.mulf %162, %162 : vector<18x32xf32>
    %cst_56 = arith.constant dense<0.000000e+00> : vector<18xf32>
    %164 = vector.multi_reduction <add>, %163, %cst_56 [1] : vector<18x32xf32> to vector<18xf32>
    %165 = vector.shape_cast %164 : vector<18xf32> to vector<18x1xf32>
    %cst_57 = arith.constant 3.200000e+01 : f32
    %166 = vector.broadcast %cst_57 : f32 to vector<18x1xf32>
    %167 = arith.divf %165, %166 : vector<18x1xf32>
    %168 = vector.broadcast %160 : vector<18x1xf32> to vector<18x32xf32>
    %169 = arith.subf %152, %168 : vector<18x32xf32>
    %cst_58 = arith.constant 9.99999974E-6 : f32
    %170 = vector.broadcast %cst_58 : f32 to vector<18x1xf32>
    %171 = arith.addf %167, %170 : vector<18x1xf32>
    %172 = math.rsqrt %171 : vector<18x1xf32>
    %173 = vector.broadcast %172 : vector<18x1xf32> to vector<18x32xf32>
    %174 = arith.mulf %169, %173 : vector<18x32xf32>
    %175 = vector.broadcast %154 : vector<1x32xf32> to vector<18x32xf32>
    %176 = arith.mulf %174, %175 : vector<18x32xf32>
    %177 = vector.broadcast %156 : vector<1x32xf32> to vector<18x32xf32>
    %178 = arith.addf %176, %177 : vector<18x32xf32>
    %c0_59 = arith.constant 0 : index
    %c0_60 = arith.constant 0 : index
    %c0_61 = arith.constant 0 : index
    %179 = vector.load %arg10[%c0_59, %c0_60, %c0_61] : memref<1x32x64xf32, #tpu.memory_space<vmem>>, vector<1x32x64xf32>
    %180 = vector.shape_cast %179 : vector<1x32x64xf32> to vector<32x64xf32>
    %cst_62 = arith.constant dense<0.000000e+00> : vector<18x64xf32>
    %181 = tpu.matmul %178, %180, %cst_62 {dimension_numbers = #tpu.dot_dimension_numbers<[1], [0], [0], [1], [0, 0, 1, 1], [], []>} : vector<18x32xf32>, vector<32x64xf32>, vector<18x64xf32> -> vector<18x64xf32>
    %c0_63 = arith.constant 0 : index
    %c0_64 = arith.constant 0 : index
    %c0_65 = arith.constant 0 : index
    %182 = vector.load %arg11[%c0_63, %c0_64, %c0_65] : memref<1x1x64xf32, #tpu.memory_space<vmem>>, vector<1x1x64xf32>
    %183 = vector.shape_cast %182 : vector<1x1x64xf32> to vector<1x64xf32>
    %184 = vector.broadcast %183 : vector<1x64xf32> to vector<18x64xf32>
    %185 = arith.addf %181, %184 : vector<18x64xf32>
    %cst_66 = arith.constant 0.000000e+00 : f32
    %186 = vector.broadcast %cst_66 : f32 to vector<18x64xf32>
    %187 = arith.maximumf %185, %186 : vector<18x64xf32>
    %c0_67 = arith.constant 0 : index
    %c0_68 = arith.constant 0 : index
    %c0_69 = arith.constant 0 : index
    %188 = vector.load %arg12[%c0_67, %c0_68, %c0_69] : memref<1x64x32xf32, #tpu.memory_space<vmem>>, vector<1x64x32xf32>
    %189 = vector.shape_cast %188 : vector<1x64x32xf32> to vector<64x32xf32>
    %cst_70 = arith.constant dense<0.000000e+00> : vector<18x32xf32>
    %190 = tpu.matmul %187, %189, %cst_70 {dimension_numbers = #tpu.dot_dimension_numbers<[1], [0], [0], [1], [0, 0, 1, 1], [], []>} : vector<18x64xf32>, vector<64x32xf32>, vector<18x32xf32> -> vector<18x32xf32>
    %c0_71 = arith.constant 0 : index
    %c0_72 = arith.constant 0 : index
    %c0_73 = arith.constant 0 : index
    %191 = vector.load %arg13[%c0_71, %c0_72, %c0_73] : memref<1x1x32xf32, #tpu.memory_space<vmem>>, vector<1x1x32xf32>
    %192 = vector.shape_cast %191 : vector<1x1x32xf32> to vector<1x32xf32>
    %193 = vector.broadcast %192 : vector<1x32xf32> to vector<18x32xf32>
    %194 = arith.addf %190, %193 : vector<18x32xf32>
    %195 = arith.addf %178, %194 : vector<18x32xf32>
    %c0_74 = arith.constant 0 : index
    %c0_75 = arith.constant 0 : index
    %c0_76 = arith.constant 0 : index
    %196 = vector.load %arg14[%c0_74, %c0_75, %c0_76] : memref<1x1x32xf32, #tpu.memory_space<vmem>>, vector<1x1x32xf32>
    %197 = vector.shape_cast %196 : vector<1x1x32xf32> to vector<1x32xf32>
    %c0_77 = arith.constant 0 : index
    %c0_78 = arith.constant 0 : index
    %c0_79 = arith.constant 0 : index
    %198 = vector.load %arg15[%c0_77, %c0_78, %c0_79] : memref<1x1x32xf32, #tpu.memory_space<vmem>>, vector<1x1x32xf32>
    %199 = vector.shape_cast %198 : vector<1x1x32xf32> to vector<1x32xf32>
    %cst_80 = arith.constant dense<0.000000e+00> : vector<18xf32>
    %200 = vector.multi_reduction <add>, %195, %cst_80 [1] : vector<18x32xf32> to vector<18xf32>
    %201 = vector.shape_cast %200 : vector<18xf32> to vector<18x1xf32>
    %cst_81 = arith.constant 3.200000e+01 : f32
    %202 = vector.broadcast %cst_81 : f32 to vector<18x1xf32>
    %203 = arith.divf %201, %202 : vector<18x1xf32>
    %204 = vector.broadcast %203 : vector<18x1xf32> to vector<18x32xf32>
    %205 = arith.subf %195, %204 : vector<18x32xf32>
    %206 = arith.mulf %205, %205 : vector<18x32xf32>
    %cst_82 = arith.constant dense<0.000000e+00> : vector<18xf32>
    %207 = vector.multi_reduction <add>, %206, %cst_82 [1] : vector<18x32xf32> to vector<18xf32>
    %208 = vector.shape_cast %207 : vector<18xf32> to vector<18x1xf32>
    %cst_83 = arith.constant 3.200000e+01 : f32
    %209 = vector.broadcast %cst_83 : f32 to vector<18x1xf32>
    %210 = arith.divf %208, %209 : vector<18x1xf32>
    %211 = vector.broadcast %203 : vector<18x1xf32> to vector<18x32xf32>
    %212 = arith.subf %195, %211 : vector<18x32xf32>
    %cst_84 = arith.constant 9.99999974E-6 : f32
    %213 = vector.broadcast %cst_84 : f32 to vector<18x1xf32>
    %214 = arith.addf %210, %213 : vector<18x1xf32>
    %215 = math.rsqrt %214 : vector<18x1xf32>
    %216 = vector.broadcast %215 : vector<18x1xf32> to vector<18x32xf32>
    %217 = arith.mulf %212, %216 : vector<18x32xf32>
    %218 = vector.broadcast %197 : vector<1x32xf32> to vector<18x32xf32>
    %219 = arith.mulf %217, %218 : vector<18x32xf32>
    %220 = vector.broadcast %199 : vector<1x32xf32> to vector<18x32xf32>
    %221 = arith.addf %219, %220 : vector<18x32xf32>
    %c0_85 = arith.constant 0 : index
    %c0_86 = arith.constant 0 : index
    %222 = vector.load %arg19[%c0_85, %c0_86] : memref<18x32xf32, #tpu.memory_space<vmem>>, vector<18x32xf32>
    tpu.vector_store %arg19[%c0_85, %c0_86], %221 {strides = array<i32>} : memref<18x32xf32, #tpu.memory_space<vmem>>, vector<18x32xf32>,
    %c1_i32 = arith.constant 1 : i32
    %223 = arith.cmpi eq, %arg0, %c1_i32 : i32
    %224 = arith.extui %223 : i1 to i32
    %c0_i32_87 = arith.constant 0 : i32
    %225 = arith.cmpi ne, %224, %c0_i32_87 : i32
    scf.if %225 {
      %226 = vector.extract_strided_slice %221 {offsets = [0, 0], sizes = [1, 32], strides = [1, 1]} : vector<18x32xf32> to vector<1x32xf32>
      %227 = vector.extract_strided_slice %221 {offsets = [9, 0], sizes = [1, 32], strides = [1, 1]} : vector<18x32xf32> to vector<1x32xf32>
      %228 = tpu.concatenate %226, %227 in 0 : vector<1x32xf32>, vector<1x32xf32> -> vector<2x32xf32>
      %c0_88 = arith.constant 0 : index
      %c0_89 = arith.constant 0 : index
      %229 = vector.load %arg16[%c0_88, %c0_89] : memref<1x32xf32, #tpu.memory_space<vmem>>, vector<1x32xf32>
      %230 = vector.broadcast %229 : vector<1x32xf32> to vector<2x32xf32>
      %231 = arith.mulf %228, %230 : vector<2x32xf32>
      %cst_90 = arith.constant dense<0.000000e+00> : vector<2xf32>
      %232 = vector.multi_reduction <add>, %231, %cst_90 [1] : vector<2x32xf32> to vector<2xf32>
      %233 = vector.shape_cast %232 : vector<2xf32> to vector<2x1xf32>
      %c0_91 = arith.constant 0 : index
      %c0_92 = arith.constant 0 : index
      %234 = vector.load %arg17[%c0_91, %c0_92] : memref<1x1xf32, #tpu.memory_space<vmem>>, vector<1x1xf32>
      %235 = vector.broadcast %234 : vector<1x1xf32> to vector<2x1xf32>
      %236 = arith.addf %233, %235 : vector<2x1xf32>
      %cst_93 = arith.constant 0.000000e+00 : f32
      %237 = vector.broadcast %cst_93 : f32 to vector<2x1xf32>
      %238 = arith.subf %237, %236 : vector<2x1xf32>
      %239 = math.exp %238 : vector<2x1xf32>
      %cst_94 = arith.constant 1.000000e+00 : f32
      %240 = vector.broadcast %cst_94 : f32 to vector<2x1xf32>
      %241 = arith.addf %240, %239 : vector<2x1xf32>
      %cst_95 = arith.constant 1.000000e+00 : f32
      %242 = vector.broadcast %cst_95 : f32 to vector<2x1xf32>
      %243 = arith.divf %242, %241 : vector<2x1xf32>
      %c0_96 = arith.constant 0 : index
      %c0_97 = arith.constant 0 : index
      %244 = vector.load %arg18[%c0_96, %c0_97] : memref<2x1xf32, #tpu.memory_space<vmem>>, vector<2x1xf32>
      tpu.vector_store %arg18[%c0_96, %c0_97], %243 {strides = array<i32>} : memref<2x1xf32, #tpu.memory_space<vmem>>, vector<2x1xf32>,
    } else {
    }
    return
  }
  func.func @transform_0(%arg0: i32) -> (i32, i32) {
    %c0_i32 = arith.constant 0 : i32
    %c0_i32_0 = arith.constant 0 : i32
    %c0_i32_1 = arith.constant 0 : i32
    return %c0_i32, %c0_i32_0 : i32, i32
  }
  func.func @transform_1(%arg0: i32) -> (i32, i32) {
    %c0_i32 = arith.constant 0 : i32
    %c0_i32_0 = arith.constant 0 : i32
    %c0_i32_1 = arith.constant 0 : i32
    return %c0_i32, %c0_i32_0 : i32, i32
  }
  func.func @transform_2(%arg0: i32) -> (i32, i32) {
    %c0_i32 = arith.constant 0 : i32
    %c0_i32_0 = arith.constant 0 : i32
    %c0_i32_1 = arith.constant 0 : i32
    return %c0_i32, %c0_i32_0 : i32, i32
  }
  func.func @transform_3(%arg0: i32) -> (i32, i32, i32) {
    %c0_i32 = arith.constant 0 : i32
    %c0_i32_0 = arith.constant 0 : i32
    %c0_i32_1 = arith.constant 0 : i32
    return %arg0, %c0_i32, %c0_i32_0 : i32, i32, i32
  }
  func.func @transform_4(%arg0: i32) -> (i32, i32, i32) {
    %c0_i32 = arith.constant 0 : i32
    %c0_i32_0 = arith.constant 0 : i32
    %c0_i32_1 = arith.constant 0 : i32
    return %arg0, %c0_i32, %c0_i32_0 : i32, i32, i32
  }
  func.func @transform_5(%arg0: i32) -> (i32, i32, i32) {
    %c0_i32 = arith.constant 0 : i32
    %c0_i32_0 = arith.constant 0 : i32
    %c0_i32_1 = arith.constant 0 : i32
    return %arg0, %c0_i32, %c0_i32_0 : i32, i32, i32
  }
  func.func @transform_6(%arg0: i32) -> (i32, i32, i32) {
    %c0_i32 = arith.constant 0 : i32
    %c0_i32_0 = arith.constant 0 : i32
    %c0_i32_1 = arith.constant 0 : i32
    return %arg0, %c0_i32, %c0_i32_0 : i32, i32, i32
  }
  func.func @transform_7(%arg0: i32) -> (i32, i32, i32) {
    %c0_i32 = arith.constant 0 : i32
    %c0_i32_0 = arith.constant 0 : i32
    %c0_i32_1 = arith.constant 0 : i32
    return %arg0, %c0_i32, %c0_i32_0 : i32, i32, i32
  }
  func.func @transform_8(%arg0: i32) -> (i32, i32, i32) {
    %c0_i32 = arith.constant 0 : i32
    %c0_i32_0 = arith.constant 0 : i32
    %c0_i32_1 = arith.constant 0 : i32
    return %arg0, %c0_i32, %c0_i32_0 : i32, i32, i32
  }
  func.func @transform_9(%arg0: i32) -> (i32, i32, i32) {
    %c0_i32 = arith.constant 0 : i32
    %c0_i32_0 = arith.constant 0 : i32
    %c0_i32_1 = arith.constant 0 : i32
    return %arg0, %c0_i32, %c0_i32_0 : i32, i32, i32
  }
  func.func @transform_10(%arg0: i32) -> (i32, i32, i32) {
    %c0_i32 = arith.constant 0 : i32
    %c0_i32_0 = arith.constant 0 : i32
    %c0_i32_1 = arith.constant 0 : i32
    return %arg0, %c0_i32, %c0_i32_0 : i32, i32, i32
  }
  func.func @transform_11(%arg0: i32) -> (i32, i32, i32) {
    %c0_i32 = arith.constant 0 : i32
    %c0_i32_0 = arith.constant 0 : i32
    %c0_i32_1 = arith.constant 0 : i32
    return %arg0, %c0_i32, %c0_i32_0 : i32, i32, i32
  }
  func.func @transform_12(%arg0: i32) -> (i32, i32, i32) {
    %c0_i32 = arith.constant 0 : i32
    %c0_i32_0 = arith.constant 0 : i32
    %c0_i32_1 = arith.constant 0 : i32
    return %arg0, %c0_i32, %c0_i32_0 : i32, i32, i32
  }
  func.func @transform_13(%arg0: i32) -> (i32, i32, i32) {
    %c0_i32 = arith.constant 0 : i32
    %c0_i32_0 = arith.constant 0 : i32
    %c0_i32_1 = arith.constant 0 : i32
    return %arg0, %c0_i32, %c0_i32_0 : i32, i32, i32
  }
  func.func @transform_14(%arg0: i32) -> (i32, i32, i32) {
    %c0_i32 = arith.constant 0 : i32
    %c0_i32_0 = arith.constant 0 : i32
    %c0_i32_1 = arith.constant 0 : i32
    return %arg0, %c0_i32, %c0_i32_0 : i32, i32, i32
  }
  func.func @transform_15(%arg0: i32) -> (i32, i32) {
    %c0_i32 = arith.constant 0 : i32
    %c0_i32_0 = arith.constant 0 : i32
    %c0_i32_1 = arith.constant 0 : i32
    return %c0_i32, %c0_i32_0 : i32, i32
  }
  func.func @transform_16(%arg0: i32) -> (i32, i32) {
    %c0_i32 = arith.constant 0 : i32
    %c0_i32_0 = arith.constant 0 : i32
    %c0_i32_1 = arith.constant 0 : i32
    return %c0_i32, %c0_i32_0 : i32, i32
  }
  func.func @transform_17(%arg0: i32) -> (i32, i32) {
    %c0_i32 = arith.constant 0 : i32
    %c0_i32_0 = arith.constant 0 : i32
    %c0_i32_1 = arith.constant 0 : i32
    return %c0_i32, %c0_i32_0 : i32, i32
  }
}

</mosaic_0001>

<llo_original>
// kernel: tpu_custom_call.1
$region0: #{tpu_custom_call.1}
  #allocation0 [shape = 'u32[]', space=smem, size = 0x4, offset = 0x4, fixed_abs, tag = 'smem constant byte address 0x4 - core index']
  #allocation1 [shape = 'u32[144,128]{1,0:T(1,128)}', space=vmem, size = 0x12000, scoped, tag = 'internal scratch']
  #allocation2 [shape = 'f32[18,32]{1,0:T(8,128)}', space=vmem, size = 0x3000, scoped, tag = 'scratch operand']
  #allocation3 [shape = 'f32[1,1]{1,0:T(1,128)S(1)}', space=vmem, size = 0x200, scoped, tag = 'scoped memory for tpu_custom_call.1']
  %s0 = inlined_call_operand.vmem [shape: f32[18,16], index: 0, kind: input, shape index: {}]
  %s1 = inlined_call_operand.vmem [shape: f32[16,32], index: 1, kind: input, shape index: {}]
  %s2 = inlined_call_operand.vmem [shape: f32[18,32], index: 2, kind: input, shape index: {}]
  %s3 = inlined_call_operand.vmem [shape: f32[2,32,96], index: 3, kind: input, shape index: {}]
  %s4 = inlined_call_operand.vmem [shape: f32[2,1,96], index: 4, kind: input, shape index: {}]
  %s5 = inlined_call_operand.vmem [shape: f32[2,32,32], index: 5, kind: input, shape index: {}]
  %s6 = inlined_call_operand.vmem [shape: f32[2,1,32], index: 6, kind: input, shape index: {}]
  %s7 = inlined_call_operand.vmem [shape: f32[2,1,32], index: 7, kind: input, shape index: {}]
  %s8 = inlined_call_operand.vmem [shape: f32[2,1,32], index: 8, kind: input, shape index: {}]
  %s9 = inlined_call_operand.vmem [shape: f32[2,32,64], index: 9, kind: input, shape index: {}]
  %s10 = inlined_call_operand.vmem [shape: f32[2,1,64], index: 10, kind: input, shape index: {}]
  %s11 = inlined_call_operand.vmem [shape: f32[2,64,32], index: 11, kind: input, shape index: {}]
  %s12 = inlined_call_operand.vmem [shape: f32[2,1,32], index: 12, kind: input, shape index: {}]
  %s13 = inlined_call_operand.vmem [shape: f32[2,1,32], index: 13, kind: input, shape index: {}]
  %s14 = inlined_call_operand.vmem [shape: f32[2,1,32], index: 14, kind: input, shape index: {}]
  %s15 = inlined_call_operand.vmem [shape: f32[1,32], index: 15, kind: input, shape index: {}]
  %s16 = inlined_call_operand.<no memory space> [shape: f32[1,1], index: 16, kind: input, shape index: {}]
  %s17 = inlined_call_operand.vmem [shape: f32[2,1], index: 17, kind: output, shape index: {}]
  %s18 = sld [smem:[#allocation0]]
  $region109: #{tpu_custom_call.1} parent=0
    _
  %s20 = ssub.s32 1, %s18
  %s21 = scalar_select 0, %s20, %s18
  %v22 = vstv %s16
  %23 = vst [vmem:[#allocation3] sm:$0x1] %v22
  loop: start=0, step=1, limit=4
  $region2: #{tpu_custom_call.1} parent=0 // loop_pre_header
    _
  $region3: #{tpu_custom_call.1} parent=0 // loop_header
    %s25 = sphi 0, %s29
    %p26 = scmp.ge.s32.totalorder %s25, 4
    %s33 = sphi 0, %s33
    %s35 = sphi 0, %s33
    %s36 = sphi 0, %s35
    %s50 = sphi 0, %s36
    %s54 = sphi 0, %s54
    %s56 = sphi 0, %s54
    %s57 = sphi 0, %s56
    %s71 = sphi 0, %s57
    %s75 = sphi 0, %s75
    %s77 = sphi 0, %s75
    %s78 = sphi 0, %s77
    %s92 = sphi 0, %s78
    %s98 = sphi 0, %s100
    %s101 = sphi 0, %s98
    %s102 = sphi 0, %s101
    %s118 = sphi 0, %s102
    %s124 = sphi 0, %s126
    %s127 = sphi 0, %s124
    %s128 = sphi 0, %s127
    %s144 = sphi 0, %s128
    %s150 = sphi 0, %s152
    %s153 = sphi 0, %s150
    %s154 = sphi 0, %s153
    %s170 = sphi 0, %s154
    %s176 = sphi 0, %s178
    %s179 = sphi 0, %s176
    %s180 = sphi 0, %s179
    %s196 = sphi 0, %s180
    %s202 = sphi 0, %s204
    %s205 = sphi 0, %s202
    %s206 = sphi 0, %s205
    %s222 = sphi 0, %s206
    %s228 = sphi 0, %s230
    %s231 = sphi 0, %s228
    %s232 = sphi 0, %s231
    %s248 = sphi 0, %s232
    %s254 = sphi 0, %s256
    %s257 = sphi 0, %s254
    %s258 = sphi 0, %s257
    %s274 = sphi 0, %s258
    %s280 = sphi 0, %s282
    %s283 = sphi 0, %s280
    %s284 = sphi 0, %s283
    %s300 = sphi 0, %s284
    %s306 = sphi 0, %s308
    %s309 = sphi 0, %s306
    %s310 = sphi 0, %s309
    %s326 = sphi 0, %s310
    %s332 = sphi 0, %s334
    %s335 = sphi 0, %s332
    %s336 = sphi 0, %s335
    %s352 = sphi 0, %s336
    %s358 = sphi 0, %s360
    %s361 = sphi 0, %s358
    %s362 = sphi 0, %s361
    %s378 = sphi 0, %s362
    %s384 = sphi 0, %s386
    %s387 = sphi 0, %s384
    %s388 = sphi 0, %s387
    %s404 = sphi 0, %s388
    %s408 = sphi 0, %s408
    %s410 = sphi 0, %s408
    %s411 = sphi 0, %s410
    %s425 = sphi 0, %s411
    %s429 = sphi 0, %s429
    %s431 = sphi 0, %s429
    %s432 = sphi 0, %s431
    %s446 = sphi 0, %s432
    %s450 = sphi 0, %s450
    %s452 = sphi 0, %s450
    %s453 = sphi 0, %s452
    %s467 = sphi 0, %s453
  $region4: #{tpu_custom_call.1} parent=0 // loop_header_branch
    %28 = sbr.rel (%p26) target = $region8
  $region5: #{tpu_custom_call.1} parent=0 // loop_body
    %s30 = ssub.s32 %s25, 1
    %s31 = ssub.s32 %s25, 2
    %s32 = sadd.s32 %s25, 1
    %s34 = sadd.s32 %s33, 1
    %p37 = scmp.eq.s32.totalorder %s25, 1
    %p38 = scmp.ne.s32.totalorder %s33, %s35
    %p39 = scmp.eq.s32.totalorder %s25, 0
    %p40 = por %p38, %p39
    %p41 = scmp.ne.s32.totalorder %s33, %s35
    %p42 = scmp.eq.s32.totalorder %s30, 1
    %p43 = por %p41, %p42
    %p44 = scmp.ne.s32.totalorder %s35, %s36
    %p45 = scmp.eq.s32.totalorder %s30, 0
    %p46 = por %p44, %p45
    %p47 = scmp.ne.s32.totalorder %s35, %s36
    %p48 = scmp.eq.s32.totalorder %s31, 1
    %p49 = por %p47, %p48
    %p51 = scmp.ne.s32.totalorder %s36, %s50
    %p52 = scmp.eq.s32.totalorder %s31, 0
    %p53 = por %p51, %p52
    %s55 = sadd.s32 %s54, 1
    %p58 = scmp.eq.s32.totalorder %s25, 1
    %p59 = scmp.ne.s32.totalorder %s54, %s56
    %p60 = scmp.eq.s32.totalorder %s25, 0
    %p61 = por %p59, %p60
    %p62 = scmp.ne.s32.totalorder %s54, %s56
    %p63 = scmp.eq.s32.totalorder %s30, 1
    %p64 = por %p62, %p63
    %p65 = scmp.ne.s32.totalorder %s56, %s57
    %p66 = scmp.eq.s32.totalorder %s30, 0
    %p67 = por %p65, %p66
    %p68 = scmp.ne.s32.totalorder %s56, %s57
    %p69 = scmp.eq.s32.totalorder %s31, 1
    %p70 = por %p68, %p69
    %p72 = scmp.ne.s32.totalorder %s57, %s71
    %p73 = scmp.eq.s32.totalorder %s31, 0
    %p74 = por %p72, %p73
    %s76 = sadd.s32 %s75, 1
    %p79 = scmp.eq.s32.totalorder %s25, 1
    %p80 = scmp.ne.s32.totalorder %s75, %s77
    %p81 = scmp.eq.s32.totalorder %s25, 0
    %p82 = por %p80, %p81
    %p83 = scmp.ne.s32.totalorder %s75, %s77
    %p84 = scmp.eq.s32.totalorder %s30, 1
    %p85 = por %p83, %p84
    %p86 = scmp.ne.s32.totalorder %s77, %s78
    %p87 = scmp.eq.s32.totalorder %s30, 0
    %p88 = por %p86, %p87
    %p89 = scmp.ne.s32.totalorder %s77, %s78
    %p90 = scmp.eq.s32.totalorder %s31, 1
    %p91 = por %p89, %p90
    %p93 = scmp.ne.s32.totalorder %s78, %s92
    %p94 = scmp.eq.s32.totalorder %s31, 0
    %p95 = por %p93, %p94
    %s96 = ssub.s32 %s25, %s32
    %p97 = scmp.eq.s32.totalorder %s96, 0
    %s99 = sadd.s32 %s98, 1
    %s100 = scalar_select %p97, %s98, %s99
    %p103 = pneg %p97
    %p104 = scmp.eq.s32.totalorder %s25, 1
    %p105 = por %p103, %p104
    %p106 = scmp.ne.s32.totalorder %s98, %s101
    %p107 = scmp.eq.s32.totalorder %s25, 0
    %p108 = por %p106, %p107
    %p109 = scmp.ne.s32.totalorder %s98, %s101
    %p110 = scmp.eq.s32.totalorder %s30, 1
    %p111 = por %p109, %p110
    %p112 = scmp.ne.s32.totalorder %s101, %s102
    %p113 = scmp.eq.s32.totalorder %s30, 0
    %p114 = por %p112, %p113
    %p115 = scmp.ne.s32.totalorder %s101, %s102
    %p116 = scmp.eq.s32.totalorder %s31, 1
    %p117 = por %p115, %p116
    %p119 = scmp.ne.s32.totalorder %s102, %s118
    %p120 = scmp.eq.s32.totalorder %s31, 0
    %p121 = por %p119, %p120
    %s122 = ssub.s32 %s25, %s32
    %p123 = scmp.eq.s32.totalorder %s122, 0
    %s125 = sadd.s32 %s124, 1
    %s126 = scalar_select %p123, %s124, %s125
    %p129 = pneg %p123
    %p130 = scmp.eq.s32.totalorder %s25, 1
    %p131 = por %p129, %p130
    %p132 = scmp.ne.s32.totalorder %s124, %s127
    %p133 = scmp.eq.s32.totalorder %s25, 0
    %p134 = por %p132, %p133
    %p135 = scmp.ne.s32.totalorder %s124, %s127
    %p136 = scmp.eq.s32.totalorder %s30, 1
    %p137 = por %p135, %p136
    %p138 = scmp.ne.s32.totalorder %s127, %s128
    %p139 = scmp.eq.s32.totalorder %s30, 0
    %p140 = por %p138, %p139
    %p141 = scmp.ne.s32.totalorder %s127, %s128
    %p142 = scmp.eq.s32.totalorder %s31, 1
    %p143 = por %p141, %p142
    %p145 = scmp.ne.s32.totalorder %s128, %s144
    %p146 = scmp.eq.s32.totalorder %s31, 0
    %p147 = por %p145, %p146
    %s148 = ssub.s32 %s25, %s32
    %p149 = scmp.eq.s32.totalorder %s148, 0
    %s151 = sadd.s32 %s150, 1
    %s152 = scalar_select %p149, %s150, %s151
    %p155 = pneg %p149
    %p156 = scmp.eq.s32.totalorder %s25, 1
    %p157 = por %p155, %p156
    %p158 = scmp.ne.s32.totalorder %s150, %s153
    %p159 = scmp.eq.s32.totalorder %s25, 0
    %p160 = por %p158, %p159
    %p161 = scmp.ne.s32.totalorder %s150, %s153
    %p162 = scmp.eq.s32.totalorder %s30, 1
    %p163 = por %p161, %p162
    %p164 = scmp.ne.s32.totalorder %s153, %s154
    %p165 = scmp.eq.s32.totalorder %s30, 0
    %p166 = por %p164, %p165
    %p167 = scmp.ne.s32.totalorder %s153, %s154
    %p168 = scmp.eq.s32.totalorder %s31, 1
    %p169 = por %p167, %p168
    %p171 = scmp.ne.s32.totalorder %s154, %s170
    %p172 = scmp.eq.s32.totalorder %s31, 0
    %p173 = por %p171, %p172
    %s174 = ssub.s32 %s25, %s32
    %p175 = scmp.eq.s32.totalorder %s174, 0
    %s177 = sadd.s32 %s176, 1
    %s178 = scalar_select %p175, %s176, %s177
    %p181 = pneg %p175
    %p182 = scmp.eq.s32.totalorder %s25, 1
    %p183 = por %p181, %p182
    %p184 = scmp.ne.s32.totalorder %s176, %s179
    %p185 = scmp.eq.s32.totalorder %s25, 0
    %p186 = por %p184, %p185
    %p187 = scmp.ne.s32.totalorder %s176, %s179
    %p188 = scmp.eq.s32.totalorder %s30, 1
    %p189 = por %p187, %p188
    %p190 = scmp.ne.s32.totalorder %s179, %s180
    %p191 = scmp.eq.s32.totalorder %s30, 0
    %p192 = por %p190, %p191
    %p193 = scmp.ne.s32.totalorder %s179, %s180
    %p194 = scmp.eq.s32.totalorder %s31, 1
    %p195 = por %p193, %p194
    %p197 = scmp.ne.s32.totalorder %s180, %s196
    %p198 = scmp.eq.s32.totalorder %s31, 0
    %p199 = por %p197, %p198
    %s200 = ssub.s32 %s25, %s32
    %p201 = scmp.eq.s32.totalorder %s200, 0
    %s203 = sadd.s32 %s202, 1
    %s204 = scalar_select %p201, %s202, %s203
    %p207 = pneg %p201
    %p208 = scmp.eq.s32.totalorder %s25, 1
    %p209 = por %p207, %p208
    %p210 = scmp.ne.s32.totalorder %s202, %s205
    %p211 = scmp.eq.s32.totalorder %s25, 0
    %p212 = por %p210, %p211
    %p213 = scmp.ne.s32.totalorder %s202, %s205
    %p214 = scmp.eq.s32.totalorder %s30, 1
    %p215 = por %p213, %p214
    %p216 = scmp.ne.s32.totalorder %s205, %s206
    %p217 = scmp.eq.s32.totalorder %s30, 0
    %p218 = por %p216, %p217
    %p219 = scmp.ne.s32.totalorder %s205, %s206
    %p220 = scmp.eq.s32.totalorder %s31, 1
    %p221 = por %p219, %p220
    %p223 = scmp.ne.s32.totalorder %s206, %s222
    %p224 = scmp.eq.s32.totalorder %s31, 0
    %p225 = por %p223, %p224
    %s226 = ssub.s32 %s25, %s32
    %p227 = scmp.eq.s32.totalorder %s226, 0
    %s229 = sadd.s32 %s228, 1
    %s230 = scalar_select %p227, %s228, %s229
    %p233 = pneg %p227
    %p234 = scmp.eq.s32.totalorder %s25, 1
    %p235 = por %p233, %p234
    %p236 = scmp.ne.s32.totalorder %s228, %s231
    %p237 = scmp.eq.s32.totalorder %s25, 0
    %p238 = por %p236, %p237
    %p239 = scmp.ne.s32.totalorder %s228, %s231
    %p240 = scmp.eq.s32.totalorder %s30, 1
    %p241 = por %p239, %p240
    %p242 = scmp.ne.s32.totalorder %s231, %s232
    %p243 = scmp.eq.s32.totalorder %s30, 0
    %p244 = por %p242, %p243
    %p245 = scmp.ne.s32.totalorder %s231, %s232
    %p246 = scmp.eq.s32.totalorder %s31, 1
    %p247 = por %p245, %p246
    %p249 = scmp.ne.s32.totalorder %s232, %s248
    %p250 = scmp.eq.s32.totalorder %s31, 0
    %p251 = por %p249, %p250
    %s252 = ssub.s32 %s25, %s32
    %p253 = scmp.eq.s32.totalorder %s252, 0
    %s255 = sadd.s32 %s254, 1
    %s256 = scalar_select %p253, %s254, %s255
    %p259 = pneg %p253
    %p260 = scmp.eq.s32.totalorder %s25, 1
    %p261 = por %p259, %p260
    %p262 = scmp.ne.s32.totalorder %s254, %s257
    %p263 = scmp.eq.s32.totalorder %s25, 0
    %p264 = por %p262, %p263
    %p265 = scmp.ne.s32.totalorder %s254, %s257
    %p266 = scmp.eq.s32.totalorder %s30, 1
    %p267 = por %p265, %p266
    %p268 = scmp.ne.s32.totalorder %s257, %s258
    %p269 = scmp.eq.s32.totalorder %s30, 0
    %p270 = por %p268, %p269
    %p271 = scmp.ne.s32.totalorder %s257, %s258
    %p272 = scmp.eq.s32.totalorder %s31, 1
    %p273 = por %p271, %p272
    %p275 = scmp.ne.s32.totalorder %s258, %s274
    %p276 = scmp.eq.s32.totalorder %s31, 0
    %p277 = por %p275, %p276
    %s278 = ssub.s32 %s25, %s32
    %p279 = scmp.eq.s32.totalorder %s278, 0
    %s281 = sadd.s32 %s280, 1
    %s282 = scalar_select %p279, %s280, %s281
    %p285 = pneg %p279
    %p286 = scmp.eq.s32.totalorder %s25, 1
    %p287 = por %p285, %p286
    %p288 = scmp.ne.s32.totalorder %s280, %s283
    %p289 = scmp.eq.s32.totalorder %s25, 0
    %p290 = por %p288, %p289
    %p291 = scmp.ne.s32.totalorder %s280, %s283
    %p292 = scmp.eq.s32.totalorder %s30, 1
    %p293 = por %p291, %p292
    %p294 = scmp.ne.s32.totalorder %s283, %s284
    %p295 = scmp.eq.s32.totalorder %s30, 0
    %p296 = por %p294, %p295
    %p297 = scmp.ne.s32.totalorder %s283, %s284
    %p298 = scmp.eq.s32.totalorder %s31, 1
    %p299 = por %p297, %p298
    %p301 = scmp.ne.s32.totalorder %s284, %s300
    %p302 = scmp.eq.s32.totalorder %s31, 0
    %p303 = por %p301, %p302
    %s304 = ssub.s32 %s25, %s32
    %p305 = scmp.eq.s32.totalorder %s304, 0
    %s307 = sadd.s32 %s306, 1
    %s308 = scalar_select %p305, %s306, %s307
    %p311 = pneg %p305
    %p312 = scmp.eq.s32.totalorder %s25, 1
    %p313 = por %p311, %p312
    %p314 = scmp.ne.s32.totalorder %s306, %s309
    %p315 = scmp.eq.s32.totalorder %s25, 0
    %p316 = por %p314, %p315
    %p317 = scmp.ne.s32.totalorder %s306, %s309
    %p318 = scmp.eq.s32.totalorder %s30, 1
    %p319 = por %p317, %p318
    %p320 = scmp.ne.s32.totalorder %s309, %s310
    %p321 = scmp.eq.s32.totalorder %s30, 0
    %p322 = por %p320, %p321
    %p323 = scmp.ne.s32.totalorder %s309, %s310
    %p324 = scmp.eq.s32.totalorder %s31, 1
    %p325 = por %p323, %p324
    %p327 = scmp.ne.s32.totalorder %s310, %s326
    %p328 = scmp.eq.s32.totalorder %s31, 0
    %p329 = por %p327, %p328
    %s330 = ssub.s32 %s25, %s32
    %p331 = scmp.eq.s32.totalorder %s330, 0
    %s333 = sadd.s32 %s332, 1
    %s334 = scalar_select %p331, %s332, %s333
    %p337 = pneg %p331
    %p338 = scmp.eq.s32.totalorder %s25, 1
    %p339 = por %p337, %p338
    %p340 = scmp.ne.s32.totalorder %s332, %s335
    %p341 = scmp.eq.s32.totalorder %s25, 0
    %p342 = por %p340, %p341
    %p343 = scmp.ne.s32.totalorder %s332, %s335
    %p344 = scmp.eq.s32.totalorder %s30, 1
    %p345 = por %p343, %p344
    %p346 = scmp.ne.s32.totalorder %s335, %s336
    %p347 = scmp.eq.s32.totalorder %s30, 0
    %p348 = por %p346, %p347
    %p349 = scmp.ne.s32.totalorder %s335, %s336
    %p350 = scmp.eq.s32.totalorder %s31, 1
    %p351 = por %p349, %p350
    %p353 = scmp.ne.s32.totalorder %s336, %s352
    %p354 = scmp.eq.s32.totalorder %s31, 0
    %p355 = por %p353, %p354
    %s356 = ssub.s32 %s25, %s32
    %p357 = scmp.eq.s32.totalorder %s356, 0
    %s359 = sadd.s32 %s358, 1
    %s360 = scalar_select %p357, %s358, %s359
    %p363 = pneg %p357
    %p364 = scmp.eq.s32.totalorder %s25, 1
    %p365 = por %p363, %p364
    %p366 = scmp.ne.s32.totalorder %s358, %s361
    %p367 = scmp.eq.s32.totalorder %s25, 0
    %p368 = por %p366, %p367
    %p369 = scmp.ne.s32.totalorder %s358, %s361
    %p370 = scmp.eq.s32.totalorder %s30, 1
    %p371 = por %p369, %p370
    %p372 = scmp.ne.s32.totalorder %s361, %s362
    %p373 = scmp.eq.s32.totalorder %s30, 0
    %p374 = por %p372, %p373
    %p375 = scmp.ne.s32.totalorder %s361, %s362
    %p376 = scmp.eq.s32.totalorder %s31, 1
    %p377 = por %p375, %p376
    %p379 = scmp.ne.s32.totalorder %s362, %s378
    %p380 = scmp.eq.s32.totalorder %s31, 0
    %p381 = por %p379, %p380
    %s382 = ssub.s32 %s25, %s32
    %p383 = scmp.eq.s32.totalorder %s382, 0
    %s385 = sadd.s32 %s384, 1
    %s386 = scalar_select %p383, %s384, %s385
    %p389 = pneg %p383
    %p390 = scmp.eq.s32.totalorder %s25, 1
    %p391 = por %p389, %p390
    %p392 = scmp.ne.s32.totalorder %s384, %s387
    %p393 = scmp.eq.s32.totalorder %s25, 0
    %p394 = por %p392, %p393
    %p395 = scmp.ne.s32.totalorder %s384, %s387
    %p396 = scmp.eq.s32.totalorder %s30, 1
    %p397 = por %p395, %p396
    %p398 = scmp.ne.s32.totalorder %s387, %s388
    %p399 = scmp.eq.s32.totalorder %s30, 0
    %p400 = por %p398, %p399
    %p401 = scmp.ne.s32.totalorder %s387, %s388
    %p402 = scmp.eq.s32.totalorder %s31, 1
    %p403 = por %p401, %p402
    %p405 = scmp.ne.s32.totalorder %s388, %s404
    %p406 = scmp.eq.s32.totalorder %s31, 0
    %p407 = por %p405, %p406
    %s409 = sadd.s32 %s408, 1
    %p412 = scmp.eq.s32.totalorder %s25, 1
    %p413 = scmp.ne.s32.totalorder %s408, %s410
    %p414 = scmp.eq.s32.totalorder %s25, 0
    %p415 = por %p413, %p414
    %p416 = scmp.ne.s32.totalorder %s408, %s410
    %p417 = scmp.eq.s32.totalorder %s30, 1
    %p418 = por %p416, %p417
    %p419 = scmp.ne.s32.totalorder %s410, %s411
    %p420 = scmp.eq.s32.totalorder %s30, 0
    %p421 = por %p419, %p420
    %p422 = scmp.ne.s32.totalorder %s410, %s411
    %p423 = scmp.eq.s32.totalorder %s31, 1
    %p424 = por %p422, %p423
    %p426 = scmp.ne.s32.totalorder %s411, %s425
    %p427 = scmp.eq.s32.totalorder %s31, 0
    %p428 = por %p426, %p427
    %s430 = sadd.s32 %s429, 1
    %p433 = scmp.eq.s32.totalorder %s25, 1
    %p434 = scmp.ne.s32.totalorder %s429, %s431
    %p435 = scmp.eq.s32.totalorder %s25, 0
    %p436 = por %p434, %p435
    %p437 = scmp.ne.s32.totalorder %s429, %s431
    %p438 = scmp.eq.s32.totalorder %s30, 1
    %p439 = por %p437, %p438
    %p440 = scmp.ne.s32.totalorder %s431, %s432
    %p441 = scmp.eq.s32.totalorder %s30, 0
    %p442 = por %p440, %p441
    %p443 = scmp.ne.s32.totalorder %s431, %s432
    %p444 = scmp.eq.s32.totalorder %s31, 1
    %p445 = por %p443, %p444
    %p447 = scmp.ne.s32.totalorder %s432, %s446
    %p448 = scmp.eq.s32.totalorder %s31, 0
    %p449 = por %p447, %p448
    %s451 = sadd.s32 %s450, 1
    %p454 = scmp.eq.s32.totalorder %s25, 1
    %p455 = scmp.ne.s32.totalorder %s450, %s452
    %p456 = scmp.eq.s32.totalorder %s25, 0
    %p457 = por %p455, %p456
    %p458 = scmp.ne.s32.totalorder %s450, %s452
    %p459 = scmp.eq.s32.totalorder %s30, 1
    %p460 = por %p458, %p459
    %p461 = scmp.ne.s32.totalorder %s452, %s453
    %p462 = scmp.eq.s32.totalorder %s30, 0
    %p463 = por %p461, %p462
    %p464 = scmp.ne.s32.totalorder %s452, %s453
    %p465 = scmp.eq.s32.totalorder %s31, 1
    %p466 = por %p464, %p465
    %p468 = scmp.ne.s32.totalorder %s453, %s467
    %p469 = scmp.eq.s32.totalorder %s31, 0
    %p470 = por %p468, %p469
    %p471 = scmp.le.s32.totalorder 1, %s25
    %p472 = scmp.lt.s32.totalorder %s25, 3
    %p473 = pnand %p471, %p472
    %p474 = pneg %p473
    // Predicated region
    $region9: #{tpu_custom_call.1} parent=5 // pred_check
      _
    $region10: #{tpu_custom_call.1} parent=5 // pred_check_branch
      %476 = sbr.rel (%p473) target = $region12
    $region11: #{tpu_custom_call.1} parent=5 // pred_region
      %s477 = ssub.s32 %s25, 1
      // Predicated region
      $region13: #{tpu_custom_call.1} parent=11 // pred_check
        %p478 = pneg %p46
      $region14: #{tpu_custom_call.1} parent=11 // pred_check_branch
        %480 = sbr.rel (%p478) target = $region16
      $region15: #{tpu_custom_call.1} parent=11 // pred_region
        _
      $region16: #{tpu_custom_call.1} parent=11 // pred_fallthru
        _
      // Predicated region
      $region17: #{tpu_custom_call.1} parent=11 // pred_check
        %p481 = pneg %p67
      $region18: #{tpu_custom_call.1} parent=11 // pred_check_branch
        %483 = sbr.rel (%p481) target = $region20
      $region19: #{tpu_custom_call.1} parent=11 // pred_region
        _
      $region20: #{tpu_custom_call.1} parent=11 // pred_fallthru
        _
      // Predicated region
      $region21: #{tpu_custom_call.1} parent=11 // pred_check
        %p484 = pneg %p88
      $region22: #{tpu_custom_call.1} parent=11 // pred_check_branch
        %486 = sbr.rel (%p484) target = $region24
      $region23: #{tpu_custom_call.1} parent=11 // pred_region
        _
      $region24: #{tpu_custom_call.1} parent=11 // pred_fallthru
        _
      // Predicated region
      $region25: #{tpu_custom_call.1} parent=11 // pred_check
        %p487 = pneg %p421
      $region26: #{tpu_custom_call.1} parent=11 // pred_check_branch
        %489 = sbr.rel (%p487) target = $region28
      $region27: #{tpu_custom_call.1} parent=11 // pred_region
        _
      $region28: #{tpu_custom_call.1} parent=11 // pred_fallthru
        _
      // Predicated region
      $region29: #{tpu_custom_call.1} parent=11 // pred_check
        %p490 = pneg %p442
      $region30: #{tpu_custom_call.1} parent=11 // pred_check_branch
        %492 = sbr.rel (%p490) target = $region32
      $region31: #{tpu_custom_call.1} parent=11 // pred_region
        _
      $region32: #{tpu_custom_call.1} parent=11 // pred_fallthru
        _
    $region12: #{tpu_custom_call.1} parent=5 // pred_fallthru
      _
    %p493 = scmp.lt.s32.totalorder %s25, 2
    // Predicated region
    $region33: #{tpu_custom_call.1} parent=5 // pred_check
      %p494 = pneg %p493
    $region34: #{tpu_custom_call.1} parent=5 // pred_check_branch
      %496 = sbr.rel (%p494) target = $region36
    $region35: #{tpu_custom_call.1} parent=5 // pred_region
      // Predicated region
      $region37: #{tpu_custom_call.1} parent=35 // pred_check
        %p497 = pneg %p108
      $region38: #{tpu_custom_call.1} parent=35 // pred_check_branch
        %499 = sbr.rel (%p497) target = $region40
      $region39: #{tpu_custom_call.1} parent=35 // pred_region
        %p500 = scmp.lt.s32.totalorder %s25, 1
        %s501 = scalar_select %p500, %s25, 1
        %s502 = smul.addr %s501, 4
        %s503 = smul.addr %s502, 8
        %s504 = scalar_lea.vmem %s3, %s503
      $region40: #{tpu_custom_call.1} parent=35 // pred_fallthru
        _
      // Predicated region
      $region41: #{tpu_custom_call.1} parent=35 // pred_check
        %p505 = pneg %p134
      $region42: #{tpu_custom_call.1} parent=35 // pred_check_branch
        %507 = sbr.rel (%p505) target = $region44
      $region43: #{tpu_custom_call.1} parent=35 // pred_region
        %p508 = scmp.lt.s32.totalorder %s25, 1
        %s509 = scalar_select %p508, %s25, 1
        %s510 = scalar_lea.vmem %s4, %s509
      $region44: #{tpu_custom_call.1} parent=35 // pred_fallthru
        _
      // Predicated region
      $region45: #{tpu_custom_call.1} parent=35 // pred_check
        %p511 = pneg %p160
      $region46: #{tpu_custom_call.1} parent=35 // pred_check_branch
        %513 = sbr.rel (%p511) target = $region48
      $region47: #{tpu_custom_call.1} parent=35 // pred_region
        %p514 = scmp.lt.s32.totalorder %s25, 1
        %s515 = scalar_select %p514, %s25, 1
        %s516 = smul.addr %s515, 4
        %s517 = smul.addr %s516, 8
        %s518 = scalar_lea.vmem %s5, %s517
      $region48: #{tpu_custom_call.1} parent=35 // pred_fallthru
        _
      // Predicated region
      $region49: #{tpu_custom_call.1} parent=35 // pred_check
        %p519 = pneg %p186
      $region50: #{tpu_custom_call.1} parent=35 // pred_check_branch
        %521 = sbr.rel (%p519) target = $region52
      $region51: #{tpu_custom_call.1} parent=35 // pred_region
        %p522 = scmp.lt.s32.totalorder %s25, 1
        %s523 = scalar_select %p522, %s25, 1
        %s524 = scalar_lea.vmem %s6, %s523
      $region52: #{tpu_custom_call.1} parent=35 // pred_fallthru
        _
      // Predicated region
      $region53: #{tpu_custom_call.1} parent=35 // pred_check
        %p525 = pneg %p212
      $region54: #{tpu_custom_call.1} parent=35 // pred_check_branch
        %527 = sbr.rel (%p525) target = $region56
      $region55: #{tpu_custom_call.1} parent=35 // pred_region
        %p528 = scmp.lt.s32.totalorder %s25, 1
        %s529 = scalar_select %p528, %s25, 1
        %s530 = scalar_lea.vmem %s7, %s529
      $region56: #{tpu_custom_call.1} parent=35 // pred_fallthru
        _
      // Predicated region
      $region57: #{tpu_custom_call.1} parent=35 // pred_check
        %p531 = pneg %p238
      $region58: #{tpu_custom_call.1} parent=35 // pred_check_branch
        %533 = sbr.rel (%p531) target = $region60
      $region59: #{tpu_custom_call.1} parent=35 // pred_region
        %p534 = scmp.lt.s32.totalorder %s25, 1
        %s535 = scalar_select %p534, %s25, 1
        %s536 = scalar_lea.vmem %s8, %s535
      $region60: #{tpu_custom_call.1} parent=35 // pred_fallthru
        _
      // Predicated region
      $region61: #{tpu_custom_call.1} parent=35 // pred_check
        %p537 = pneg %p264
      $region62: #{tpu_custom_call.1} parent=35 // pred_check_branch
        %539 = sbr.rel (%p537) target = $region64
      $region63: #{tpu_custom_call.1} parent=35 // pred_region
        %p540 = scmp.lt.s32.totalorder %s25, 1
        %s541 = scalar_select %p540, %s25, 1
        %s542 = smul.addr %s541, 4
        %s543 = smul.addr %s542, 8
        %s544 = scalar_lea.vmem %s9, %s543
      $region64: #{tpu_custom_call.1} parent=35 // pred_fallthru
        _
      // Predicated region
      $region65: #{tpu_custom_call.1} parent=35 // pred_check
        %p545 = pneg %p290
      $region66: #{tpu_custom_call.1} parent=35 // pred_check_branch
        %547 = sbr.rel (%p545) target = $region68
      $region67: #{tpu_custom_call.1} parent=35 // pred_region
        %p548 = scmp.lt.s32.totalorder %s25, 1
        %s549 = scalar_select %p548, %s25, 1
        %s550 = scalar_lea.vmem %s10, %s549
      $region68: #{tpu_custom_call.1} parent=35 // pred_fallthru
        _
      // Predicated region
      $region69: #{tpu_custom_call.1} parent=35 // pred_check
        %p551 = pneg %p316
      $region70: #{tpu_custom_call.1} parent=35 // pred_check_branch
        %553 = sbr.rel (%p551) target = $region72
      $region71: #{tpu_custom_call.1} parent=35 // pred_region
        %p554 = scmp.lt.s32.totalorder %s25, 1
        %s555 = scalar_select %p554, %s25, 1
        %s556 = smul.addr %s555, 8
        %s557 = smul.addr %s556, 8
        %s558 = scalar_lea.vmem %s11, %s557
      $region72: #{tpu_custom_call.1} parent=35 // pred_fallthru
        _
      // Predicated region
      $region73: #{tpu_custom_call.1} parent=35 // pred_check
        %p559 = pneg %p342
      $region74: #{tpu_custom_call.1} parent=35 // pred_check_branch
        %561 = sbr.rel (%p559) target = $region76
      $region75: #{tpu_custom_call.1} parent=35 // pred_region
        %p562 = scmp.lt.s32.totalorder %s25, 1
        %s563 = scalar_select %p562, %s25, 1
        %s564 = scalar_lea.vmem %s12, %s563
      $region76: #{tpu_custom_call.1} parent=35 // pred_fallthru
        _
      // Predicated region
      $region77: #{tpu_custom_call.1} parent=35 // pred_check
        %p565 = pneg %p368
      $region78: #{tpu_custom_call.1} parent=35 // pred_check_branch
        %567 = sbr.rel (%p565) target = $region80
      $region79: #{tpu_custom_call.1} parent=35 // pred_region
        %p568 = scmp.lt.s32.totalorder %s25, 1
        %s569 = scalar_select %p568, %s25, 1
        %s570 = scalar_lea.vmem %s13, %s569
      $region80: #{tpu_custom_call.1} parent=35 // pred_fallthru
        _
      // Predicated region
      $region81: #{tpu_custom_call.1} parent=35 // pred_check
        %p571 = pneg %p394
      $region82: #{tpu_custom_call.1} parent=35 // pred_check_branch
        %573 = sbr.rel (%p571) target = $region84
      $region83: #{tpu_custom_call.1} parent=35 // pred_region
        %p574 = scmp.lt.s32.totalorder %s25, 1
        %s575 = scalar_select %p574, %s25, 1
        %s576 = scalar_lea.vmem %s14, %s575
      $region84: #{tpu_custom_call.1} parent=35 // pred_fallthru
        _
    $region36: #{tpu_custom_call.1} parent=5 // pred_fallthru
      _
    %p577 = scmp.le.s32.totalorder 1, %s25
    %p578 = scmp.lt.s32.totalorder %s25, 3
    %p579 = pnand %p577, %p578
    %p580 = pneg %p579
    // Predicated region
    $region85: #{tpu_custom_call.1} parent=5 // pred_check
      _
    $region86: #{tpu_custom_call.1} parent=5 // pred_check_branch
      %582 = sbr.rel (%p579) target = $region88
    $region87: #{tpu_custom_call.1} parent=5 // pred_region
      %s583 = ssub.s32 %s25, 1
      %p584 = pneg %p46
      %p585 = pneg %p43
      %p586 = pneg %p67
      %p587 = pneg %p64
      %p588 = pneg %p88
      %p589 = pneg %p85
      %p590 = scmp.lt.s32.totalorder %s30, 1
      %s591 = scalar_select %p590, %s30, 1
      %s592 = smul.addr %s591, 4
      %s593 = smul.addr %s592, 8
      %s594 = scalar_lea.vmem %s3, %s593
      %p595 = pneg %p114
      %p596 = pneg %p111
      %p597 = scmp.lt.s32.totalorder %s30, 1
      %s598 = scalar_select %p597, %s30, 1
      %s599 = scalar_lea.vmem %s4, %s598
      %p600 = pneg %p140
      %p601 = pneg %p137
      %p602 = scmp.lt.s32.totalorder %s30, 1
      %s603 = scalar_select %p602, %s30, 1
      %s604 = smul.addr %s603, 4
      %s605 = smul.addr %s604, 8
      %s606 = scalar_lea.vmem %s5, %s605
      %p607 = pneg %p166
      %p608 = pneg %p163
      %p609 = scmp.lt.s32.totalorder %s30, 1
      %s610 = scalar_select %p609, %s30, 1
      %s611 = scalar_lea.vmem %s6, %s610
      %p612 = pneg %p192
      %p613 = pneg %p189
      %p614 = scmp.lt.s32.totalorder %s30, 1
      %s615 = scalar_select %p614, %s30, 1
      %s616 = scalar_lea.vmem %s7, %s615
      %p617 = pneg %p218
      %p618 = pneg %p215
      %p619 = scmp.lt.s32.totalorder %s30, 1
      %s620 = scalar_select %p619, %s30, 1
      %s621 = scalar_lea.vmem %s8, %s620
      %p622 = pneg %p244
      %p623 = pneg %p241
      %p624 = scmp.lt.s32.totalorder %s30, 1
      %s625 = scalar_select %p624, %s30, 1
      %s626 = smul.addr %s625, 4
      %s627 = smul.addr %s626, 8
      %s628 = scalar_lea.vmem %s9, %s627
      %p629 = pneg %p270
      %p630 = pneg %p267
      %p631 = scmp.lt.s32.totalorder %s30, 1
      %s632 = scalar_select %p631, %s30, 1
      %s633 = scalar_lea.vmem %s10, %s632
      %p634 = pneg %p296
      %p635 = pneg %p293
      %p636 = scmp.lt.s32.totalorder %s30, 1
      %s637 = scalar_select %p636, %s30, 1
      %s638 = smul.addr %s637, 8
      %s639 = smul.addr %s638, 8
      %s640 = scalar_lea.vmem %s11, %s639
      %p641 = pneg %p322
      %p642 = pneg %p319
      %p643 = scmp.lt.s32.totalorder %s30, 1
      %s644 = scalar_select %p643, %s30, 1
      %s645 = scalar_lea.vmem %s12, %s644
      %p646 = pneg %p348
      %p647 = pneg %p345
      %p648 = scmp.lt.s32.totalorder %s30, 1
      %s649 = scalar_select %p648, %s30, 1
      %s650 = scalar_lea.vmem %s13, %s649
      %p651 = pneg %p374
      %p652 = pneg %p371
      %p653 = scmp.lt.s32.totalorder %s30, 1
      %s654 = scalar_select %p653, %s30, 1
      %s655 = scalar_lea.vmem %s14, %s654
      %p656 = pneg %p400
      %p657 = pneg %p397
      %p658 = pneg %p421
      %p659 = pneg %p418
      %p660 = pneg %p442
      %p661 = pneg %p439
      %p662 = pneg %p463
      %p663 = pneg %p460
      %p664 = scmp.lt.s32.totalorder %s30, 1
      %s665 = scalar_select %p664, %s30, 1
      %s666 = smul.addr %s665, 4
      %s667 = smul.addr %s666, 8
      %s668 = scalar_lea.vmem %s3, %s667
      %p669 = scmp.lt.s32.totalorder %s30, 1
      %s670 = scalar_select %p669, %s30, 1
      %s671 = scalar_lea.vmem %s4, %s670
      %p672 = scmp.lt.s32.totalorder %s30, 1
      %s673 = scalar_select %p672, %s30, 1
      %s674 = smul.addr %s673, 4
      %s675 = smul.addr %s674, 8
      %s676 = scalar_lea.vmem %s5, %s675
      %p677 = scmp.lt.s32.totalorder %s30, 1
      %s678 = scalar_select %p677, %s30, 1
      %s679 = scalar_lea.vmem %s6, %s678
      %p680 = scmp.lt.s32.totalorder %s30, 1
      %s681 = scalar_select %p680, %s30, 1
      %s682 = scalar_lea.vmem %s7, %s681
      %p683 = scmp.lt.s32.totalorder %s30, 1
      %s684 = scalar_select %p683, %s30, 1
      %s685 = scalar_lea.vmem %s8, %s684
      %p686 = scmp.lt.s32.totalorder %s30, 1
      %s687 = scalar_select %p686, %s30, 1
      %s688 = smul.addr %s687, 4
      %s689 = smul.addr %s688, 8
      %s690 = scalar_lea.vmem %s9, %s689
      %p691 = scmp.lt.s32.totalorder %s30, 1
      %s692 = scalar_select %p691, %s30, 1
      %s693 = scalar_lea.vmem %s10, %s692
      %p694 = scmp.lt.s32.totalorder %s30, 1
      %s695 = scalar_select %p694, %s30, 1
      %s696 = smul.addr %s695, 8
      %s697 = smul.addr %s696, 8
      %s698 = scalar_lea.vmem %s11, %s697
      %p699 = scmp.lt.s32.totalorder %s30, 1
      %s700 = scalar_select %p699, %s30, 1
      %s701 = scalar_lea.vmem %s12, %s700
      %p702 = scmp.lt.s32.totalorder %s30, 1
      %s703 = scalar_select %p702, %s30, 1
      %s704 = scalar_lea.vmem %s13, %s703
      %p705 = scmp.lt.s32.totalorder %s30, 1
      %s706 = scalar_select %p705, %s30, 1
      %s707 = scalar_lea.vmem %s14, %s706
      %p708 = scmp.eq.s32.totalorder %s30, 0
      // Predicated region
      $region89: #{tpu_custom_call.1} parent=87 // pred_check
        %p709 = pneg %p708
      $region90: #{tpu_custom_call.1} parent=87 // pred_check_branch
        %711 = sbr.rel (%p709) target = $region92
      $region91: #{tpu_custom_call.1} parent=87 // pred_region
        %v712 = vld [vmem:[%s0] sm:$0xff]
        %v713 = vld [vmem:[%s0 + $0x8] sm:$0xff]
        %v714 = vld [vmem:[%s0 + $0x10] sm:$0x3]
        %v715 = vld [vmem:[%s1] sm:$0xff]
        %v716 = vld [vmem:[%s1 + $0x8] sm:$0xff]
        %vm717 = vcmask 130048
        %v719 = vsel %vm717, %v712, 0
        %v722 = vsel %vm717, %v713, 0
        %v725 = vsel %vm717, %v714, 0
        %727 = vmatprep.subr.mxu0 0.0
        %728 = vmatpush1.msra.mxu0 0.0
        %729 = vmatprep.subr.mxu0 0.0
        %730 = vmatpush1.msra.mxu0 0.0
        %731 = vmatprep.subr.mxu0 0.0
        %732 = vmatpush1.msra.mxu0 0.0
        %733 = vmatprep.subr.mxu0 0.0
        %734 = vmatpush1.msra.mxu0 0.0
        %735 = vmatprep.subr.mxu0 0.0
        %736 = vmatpush1.msra.mxu0 0.0
        %737 = vmatprep.subr.mxu0 0.0
        %738 = vmatpush1.msra.mxu0 0.0
        %739 = vmatprep.subr.mxu0 0.0
        %740 = vmatpush1.msra.mxu0 0.0
        %741 = vmatprep.subr.mxu0 0.0
        %742 = vmatpush1.msra.mxu0 0.0
        %743 = vmatprep.subr.mxu0 0.0
        %744 = vmatpush1.msra.mxu0 0.0
        %745 = vmatprep.subr.mxu0 0.0
        %746 = vmatpush1.msra.mxu0 0.0
        %747 = vmatprep.subr.mxu0 0.0
        %748 = vmatpush1.msra.mxu0 0.0
        %749 = vmatprep.subr.mxu0 0.0
        %750 = vmatpush1.msra.mxu0 0.0
        %751 = vmatprep.subr.mxu0 0.0
        %752 = vmatpush1.msra.mxu0 0.0
        %753 = vmatprep.subr.mxu0 0.0
        %754 = vmatpush1.msra.mxu0 0.0
        %755 = vmatprep.subr.mxu0 0.0
        %756 = vmatpush1.msra.mxu0 %v716
        %757 = vmatprep.subr.mxu0 0.0
        %758 = vmatpush1.msra.mxu0 %v715
        %759 = vmatprep.subr.mxu0 0.0
        %760 = vmatpush2.msra.mxu0 0.0
        %761 = vmatprep.subr.mxu0 0.0
        %762 = vmatpush2.msra.mxu0 0.0
        %763 = vmatprep.subr.mxu0 0.0
        %764 = vmatpush2.msra.mxu0 0.0
        %765 = vmatprep.subr.mxu0 0.0
        %766 = vmatpush2.msra.mxu0 0.0
        %767 = vmatprep.subr.mxu0 0.0
        %768 = vmatpush2.msra.mxu0 0.0
        %769 = vmatprep.subr.mxu0 0.0
        %770 = vmatpush2.msra.mxu0 0.0
        %771 = vmatprep.subr.mxu0 0.0
        %772 = vmatpush2.msra.mxu0 0.0
        %773 = vmatprep.subr.mxu0 0.0
        %774 = vmatpush2.msra.mxu0 0.0
        %775 = vmatprep.subr.mxu0 0.0
        %776 = vmatpush2.msra.mxu0 0.0
        %777 = vmatprep.subr.mxu0 0.0
        %778 = vmatpush2.msra.mxu0 0.0
        %779 = vmatprep.subr.mxu0 0.0
        %780 = vmatpush2.msra.mxu0 0.0
        %781 = vmatprep.subr.mxu0 0.0
        %782 = vmatpush2.msra.mxu0 0.0
        %783 = vmatprep.subr.mxu0 0.0
        %784 = vmatpush2.msra.mxu0 0.0
        %785 = vmatprep.subr.mxu0 0.0
        %786 = vmatpush2.msra.mxu0 0.0
        %787 = vmatprep.subr.mxu0 0.0
        %788 = vmatpush2.msra.mxu0 0.0
        %789 = vmatprep.subr.mxu0 0.0
        %790 = vmatpush2.msra.mxu0 0.0
        %791 = vmatprep.mubr.f32.mxu0 0.0
        %792 = vmatmul.mubr.f32.gmra.mxu0 %v719
        %v793 = vpop.f32.mrf.mxu0
        %v794 = vadd.f32 0.0, %v793
        %v795 = vpop.f32.mrf.mxu0
        %796 = vmatprep.mubr.f32.mxu0 0.0
        %797 = vmatmul.mubr.f32.gmra.mxu0 %v722
        %v798 = vpop.f32.mrf.mxu0
        %v799 = vadd.f32 0.0, %v798
        %v800 = vpop.f32.mrf.mxu0
        %801 = vmatprep.mubr.f32.mxu0 0.0
        %802 = vmatmul.mubr.f32.gmra.mxu0 %v725
        %v803 = vpop.f32.mrf.mxu0
        %v804 = vadd.f32 0.0, %v803
        %v805 = vpop.f32.mrf.mxu0
        %806 = vdwg.mxu0
        %v807 = vmul.f32 %v794, 5.656854
        %v808 = vmul.f32 %v799, 5.656854
        %v809 = vmul.f32 %v804, 5.656854
        %v810 = vld [vmem:[%s2] sm:$0xff]
        %v811 = vld [vmem:[%s2 + $0x8] sm:$0xff]
        %v812 = vld [vmem:[%s2 + $0x10] sm:$0x3]
        %v813 = vadd.f32 %v807, %v810
        %v814 = vadd.f32 %v808, %v811
        %v815 = vadd.f32 %v809, %v812
        %vm816 = vcmask 261120
        %817 = vst.msk [vmem:[#allocation2] sm:$0xff] %vm816, %v813
        %818 = vst.msk [vmem:[#allocation2 + $0x8] sm:$0xff] %vm816, %v814
        %vm819 = vcmask 254976
        %820 = vst.msk [vmem:[#allocation2 + $0x10] sm:$0x3] %vm819, %v815
      $region92: #{tpu_custom_call.1} parent=87 // pred_fallthru
        _
      %v821 = vld [vmem:[#allocation2] sm:$0xff]
      %v822 = vld [vmem:[#allocation2 + $0x8] sm:$0xff]
      %v823 = vld [vmem:[#allocation2 + $0x10] sm:$0x3]
      %v824 = vld [vmem:[%s668] sm:$0xff]
      %v825 = vld [vmem:[%s668 + $0x8] sm:$0xff]
      %v826 = vld [vmem:[%s668 + $0x10] sm:$0xff]
      %v827 = vld [vmem:[%s668 + $0x18] sm:$0xff]
      %v828 = vld [vmem:[%s671] sm:$0x1]
      %v830 = vlaneseq
      %v831 = vshrl.u32 %v830, 7
      %v832 = vsub.s32 0, %v831
      %v833 = vrot.slane %v828, %v832
      %vm835 = vcmask 261120
      %v837 = vsel %vm835, %v821, 0
      %v840 = vsel %vm835, %v822, 0
      %v843 = vsel %vm835, %v823, 0
      %845 = vmatprep.subr.mxu0 0.0
      %846 = vmatpush1.msra.mxu0 0.0
      %847 = vmatprep.subr.mxu0 0.0
      %848 = vmatpush1.msra.mxu0 0.0
      %849 = vmatprep.subr.mxu0 0.0
      %850 = vmatpush1.msra.mxu0 0.0
      %851 = vmatprep.subr.mxu0 0.0
      %852 = vmatpush1.msra.mxu0 0.0
      %853 = vmatprep.subr.mxu0 0.0
      %854 = vmatpush1.msra.mxu0 0.0
      %855 = vmatprep.subr.mxu0 0.0
      %856 = vmatpush1.msra.mxu0 0.0
      %857 = vmatprep.subr.mxu0 0.0
      %858 = vmatpush1.msra.mxu0 0.0
      %859 = vmatprep.subr.mxu0 0.0
      %860 = vmatpush1.msra.mxu0 0.0
      %861 = vmatprep.subr.mxu0 0.0
      %862 = vmatpush1.msra.mxu0 0.0
      %863 = vmatprep.subr.mxu0 0.0
      %864 = vmatpush1.msra.mxu0 0.0
      %865 = vmatprep.subr.mxu0 0.0
      %866 = vmatpush1.msra.mxu0 0.0
      %867 = vmatprep.subr.mxu0 0.0
      %868 = vmatpush1.msra.mxu0 0.0
      %869 = vmatprep.subr.mxu0 0.0
      %870 = vmatpush1.msra.mxu0 %v827
      %871 = vmatprep.subr.mxu0 0.0
      %872 = vmatpush1.msra.mxu0 %v826
      %873 = vmatprep.subr.mxu0 0.0
      %874 = vmatpush1.msra.mxu0 %v825
      %875 = vmatprep.subr.mxu0 0.0
      %876 = vmatpush1.msra.mxu0 %v824
      %877 = vmatprep.subr.mxu0 0.0
      %878 = vmatpush2.msra.mxu0 0.0
      %879 = vmatprep.subr.mxu0 0.0
      %880 = vmatpush2.msra.mxu0 0.0
      %881 = vmatprep.subr.mxu0 0.0
      %882 = vmatpush2.msra.mxu0 0.0
      %883 = vmatprep.subr.mxu0 0.0
      %884 = vmatpush2.msra.mxu0 0.0
      %885 = vmatprep.subr.mxu0 0.0
      %886 = vmatpush2.msra.mxu0 0.0
      %887 = vmatprep.subr.mxu0 0.0
      %888 = vmatpush2.msra.mxu0 0.0
      %889 = vmatprep.subr.mxu0 0.0
      %890 = vmatpush2.msra.mxu0 0.0
      %891 = vmatprep.subr.mxu0 0.0
      %892 = vmatpush2.msra.mxu0 0.0
      %893 = vmatprep.subr.mxu0 0.0
      %894 = vmatpush2.msra.mxu0 0.0
      %895 = vmatprep.subr.mxu0 0.0
      %896 = vmatpush2.msra.mxu0 0.0
      %897 = vmatprep.subr.mxu0 0.0
      %898 = vmatpush2.msra.mxu0 0.0
      %899 = vmatprep.subr.mxu0 0.0
      %900 = vmatpush2.msra.mxu0 0.0
      %901 = vmatprep.subr.mxu0 0.0
      %902 = vmatpush2.msra.mxu0 0.0
      %903 = vmatprep.subr.mxu0 0.0
      %904 = vmatpush2.msra.mxu0 0.0
      %905 = vmatprep.subr.mxu0 0.0
      %906 = vmatpush2.msra.mxu0 0.0
      %907 = vmatprep.subr.mxu0 0.0
      %908 = vmatpush2.msra.mxu0 0.0
      %909 = vmatprep.mubr.f32.mxu0 0.0
      %910 = vmatmul.mubr.f32.gmra.mxu0 %v837
      %v911 = vpop.f32.mrf.mxu0
      %v912 = vadd.f32 %v833, %v911
      %v913 = vpop.f32.mrf.mxu0
      %914 = vmatprep.mubr.f32.mxu0 0.0
      %915 = vmatmul.mubr.f32.gmra.mxu0 %v840
      %v916 = vpop.f32.mrf.mxu0
      %v917 = vadd.f32 %v833, %v916
      %v918 = vpop.f32.mrf.mxu0
      %919 = vmatprep.mubr.f32.mxu0 0.0
      %920 = vmatmul.mubr.f32.gmra.mxu0 %v843
      %v921 = vpop.f32.mrf.mxu0
      %v922 = vadd.f32 %v833, %v921
      %v923 = vpop.f32.mrf.mxu0
      %924 = vdwg.mxu0
      %v925 = vmul.f32 %v912, 0.35355338
      %v926 = vmul.f32 %v917, 0.35355338
      %v927 = vmul.f32 %v922, 0.35355338
      %930 = vrot.lane.b32.xlu0 %v912, 96
      %v931 = vpop.permute.xlu0 %930
      %932 = vrot.lane.b32.xlu0 %v917, 96
      %v933 = vpop.permute.xlu0 %932
      %vm934 = vcmask 64512
      %v936 = vsel %vm934, %v925, 0
      %v939 = vsel %vm934, %v926, 0
      %v941 = vsel %vm934, %v931, 0
      %v943 = vsel %vm934, %v933, 0
      %945 = vmatprep.subr.mxu0 0.0
      %946 = vmatpush1.xpose.msra.mxu0 0.0
      %947 = vmatprep.subr.mxu0 0.0
      %948 = vmatpush1.xpose.msra.mxu0 0.0
      %949 = vmatprep.subr.mxu0 0.0
      %950 = vmatpush1.xpose.msra.mxu0 0.0
      %951 = vmatprep.subr.mxu0 0.0
      %952 = vmatpush1.xpose.msra.mxu0 0.0
      %953 = vmatprep.subr.mxu0 0.0
      %954 = vmatpush1.xpose.msra.mxu0 0.0
      %955 = vmatprep.subr.mxu0 0.0
      %956 = vmatpush1.xpose.msra.mxu0 0.0
      %957 = vmatprep.subr.mxu0 0.0
      %958 = vmatpush1.xpose.msra.mxu0 0.0
      %959 = vmatprep.subr.mxu0 0.0
      %960 = vmatpush1.xpose.msra.mxu0 0.0
      %961 = vmatprep.subr.mxu0 0.0
      %962 = vmatpush1.xpose.msra.mxu0 0.0
      %963 = vmatprep.subr.mxu0 0.0
      %964 = vmatpush1.xpose.msra.mxu0 0.0
      %965 = vmatprep.subr.mxu0 0.0
      %966 = vmatpush1.xpose.msra.mxu0 0.0
      %967 = vmatprep.subr.mxu0 0.0
      %968 = vmatpush1.xpose.msra.mxu0 0.0
      %969 = vmatprep.subr.mxu0 0.0
      %970 = vmatpush1.xpose.msra.mxu0 0.0
      %971 = vmatprep.subr.mxu0 0.0
      %972 = vmatpush1.xpose.msra.mxu0 0.0
      %973 = vmatprep.subr.mxu0 0.0
      %974 = vmatpush1.xpose.msra.mxu0 %v943
      %975 = vmatprep.subr.mxu0 0.0
      %976 = vmatpush1.xpose.msra.mxu0 %v941
      %977 = vmatprep.subr.mxu0 0.0
      %978 = vmatpush2.xpose.msra.mxu0 0.0
      %979 = vmatprep.subr.mxu0 0.0
      %980 = vmatpush2.xpose.msra.mxu0 0.0
      %981 = vmatprep.subr.mxu0 0.0
      %982 = vmatpush2.xpose.msra.mxu0 0.0
      %983 = vmatprep.subr.mxu0 0.0
      %984 = vmatpush2.xpose.msra.mxu0 0.0
      %985 = vmatprep.subr.mxu0 0.0
      %986 = vmatpush2.xpose.msra.mxu0 0.0
      %987 = vmatprep.subr.mxu0 0.0
      %988 = vmatpush2.xpose.msra.mxu0 0.0
      %989 = vmatprep.subr.mxu0 0.0
      %990 = vmatpush2.xpose.msra.mxu0 0.0
      %991 = vmatprep.subr.mxu0 0.0
      %992 = vmatpush2.xpose.msra.mxu0 0.0
      %993 = vmatprep.subr.mxu0 0.0
      %994 = vmatpush2.xpose.msra.mxu0 0.0
      %995 = vmatprep.subr.mxu0 0.0
      %996 = vmatpush2.xpose.msra.mxu0 0.0
      %997 = vmatprep.subr.mxu0 0.0
      %998 = vmatpush2.xpose.msra.mxu0 0.0
      %999 = vmatprep.subr.mxu0 0.0
      %1000 = vmatpush2.xpose.msra.mxu0 0.0
      %1001 = vmatprep.subr.mxu0 0.0
      %1002 = vmatpush2.xpose.msra.mxu0 0.0
      %1003 = vmatprep.subr.mxu0 0.0
      %1004 = vmatpush2.xpose.msra.mxu0 0.0
      %1005 = vmatprep.subr.mxu0 0.0
      %1006 = vmatpush2.xpose.msra.mxu0 0.0
      %1007 = vmatprep.subr.mxu0 0.0
      %1008 = vmatpush2.xpose.msra.mxu0 0.0
      %1009 = vmatprep.mubr.f32.mxu0 0.0
      %1010 = vmatmul.mubr.f32.gmra.mxu0 %v936
      %v1011 = vpop.f32.mrf.mxu0
      %v1012 = vadd.f32 0.0, %v1011
      %v1013 = vpop.f32.mrf.mxu0
      %1014 = vmatprep.mubr.f32.mxu0 0.0
      %1015 = vmatmul.mubr.f32.gmra.mxu0 %v939
      %v1016 = vpop.f32.mrf.mxu0
      %v1017 = vadd.f32 0.0, %v1016
      %v1018 = vpop.f32.mrf.mxu0
      %1019 = vdwg.mxu0
      %vm1020 = vcmask 72704
      %v1021 = vsel %vm1020, %v1012, -inf
      %1022 = vmax.xlane.f32.xlu0 %v1021
      %v1023 = vpop.xlane.xlu0 %1022
      %vm1024 = vcmask 65536
      %v1025 = vsel %vm1024, %v1017, -inf
      %1026 = vmax.xlane.f32.xlu0 %v1025
      %v1027 = vpop.xlane.xlu0 %1026
      %v1028 = vsub.f32 %v1012, %v1023
      %v1029 = vsub.f32 %v1017, %v1027
      %v1030 = vmul.f32 %v1028, 1.442695
      %v1031 = vpow.pop %v1030
      %v1032 = vmul.f32 %v1029, 1.442695
      %v1033 = vpow.pop %v1032
      %v1034 = vsel %vm1020, %v1031, 0.0
      %1035 = vadd.xlane.f32.xlu0 %v1034
      %v1036 = vpop.xlane.xlu0 %1035
      %v1037 = vsel %vm1024, %v1033, 0.0
      %1038 = vadd.xlane.f32.xlu0 %v1037
      %v1039 = vpop.xlane.xlu0 %1038
      %v1040 = vrcp.pop %v1036
      %v1041 = vrcp.pop %v1039
      %v1042 = vmul.f32 %v1031, %v1040
      %v1043 = vmul.f32 %v1033, %v1041
      %1044 = vrot.lane.b32.xlu0 %v912, 64
      %v1045 = vpop.permute.xlu0 %1044
      %1046 = vrot.lane.b32.xlu0 %v917, 64
      %v1047 = vpop.permute.xlu0 %1046
      %v1050 = vsel %vm1020, %v1042, 0
      %v1053 = vsel %vm1020, %v1043, 0
      %vm1055 = vcmask 1040384
      %v1056 = vsel %vm1055, %v1047, 0
      %1058 = vmatprep.subr.mxu0 0.0
      %1059 = vmatpush1.msra.mxu0 0.0
      %1060 = vmatprep.subr.mxu0 0.0
      %1061 = vmatpush1.msra.mxu0 0.0
      %1062 = vmatprep.subr.mxu0 0.0
      %1063 = vmatpush1.msra.mxu0 0.0
      %1064 = vmatprep.subr.mxu0 0.0
      %1065 = vmatpush1.msra.mxu0 0.0
      %1066 = vmatprep.subr.mxu0 0.0
      %1067 = vmatpush1.msra.mxu0 0.0
      %1068 = vmatprep.subr.mxu0 0.0
      %1069 = vmatpush1.msra.mxu0 0.0
      %1070 = vmatprep.subr.mxu0 0.0
      %1071 = vmatpush1.msra.mxu0 0.0
      %1072 = vmatprep.subr.mxu0 0.0
      %1073 = vmatpush1.msra.mxu0 0.0
      %1074 = vmatprep.subr.mxu0 0.0
      %1075 = vmatpush1.msra.mxu0 0.0
      %1076 = vmatprep.subr.mxu0 0.0
      %1077 = vmatpush1.msra.mxu0 0.0
      %1078 = vmatprep.subr.mxu0 0.0
      %1079 = vmatpush1.msra.mxu0 0.0
      %1080 = vmatprep.subr.mxu0 0.0
      %1081 = vmatpush1.msra.mxu0 0.0
      %1082 = vmatprep.subr.mxu0 0.0
      %1083 = vmatpush1.msra.mxu0 0.0
      %1084 = vmatprep.subr.mxu0 0.0
      %1085 = vmatpush1.msra.mxu0 0.0
      %1086 = vmatprep.subr.mxu0 0.0
      %1087 = vmatpush1.msra.mxu0 %v1056
      %1088 = vmatprep.subr.mxu0 0.0
      %1089 = vmatpush1.msra.mxu0 %v1045
      %1090 = vmatprep.subr.mxu0 0.0
      %1091 = vmatpush2.msra.mxu0 0.0
      %1092 = vmatprep.subr.mxu0 0.0
      %1093 = vmatpush2.msra.mxu0 0.0
      %1094 = vmatprep.subr.mxu0 0.0
      %1095 = vmatpush2.msra.mxu0 0.0
      %1096 = vmatprep.subr.mxu0 0.0
      %1097 = vmatpush2.msra.mxu0 0.0
      %1098 = vmatprep.subr.mxu0 0.0
      %1099 = vmatpush2.msra.mxu0 0.0
      %1100 = vmatprep.subr.mxu0 0.0
      %1101 = vmatpush2.msra.mxu0 0.0
      %1102 = vmatprep.subr.mxu0 0.0
      %1103 = vmatpush2.msra.mxu0 0.0
      %1104 = vmatprep.subr.mxu0 0.0
      %1105 = vmatpush2.msra.mxu0 0.0
      %1106 = vmatprep.subr.mxu0 0.0
      %1107 = vmatpush2.msra.mxu0 0.0
      %1108 = vmatprep.subr.mxu0 0.0
      %1109 = vmatpush2.msra.mxu0 0.0
      %1110 = vmatprep.subr.mxu0 0.0
      %1111 = vmatpush2.msra.mxu0 0.0
      %1112 = vmatprep.subr.mxu0 0.0
      %1113 = vmatpush2.msra.mxu0 0.0
      %1114 = vmatprep.subr.mxu0 0.0
      %1115 = vmatpush2.msra.mxu0 0.0
      %1116 = vmatprep.subr.mxu0 0.0
      %1117 = vmatpush2.msra.mxu0 0.0
      %1118 = vmatprep.subr.mxu0 0.0
      %1119 = vmatpush2.msra.mxu0 0.0
      %1120 = vmatprep.subr.mxu0 0.0
      %1121 = vmatpush2.msra.mxu0 0.0
      %1122 = vmatprep.mubr.f32.mxu0 0.0
      %1123 = vmatmul.mubr.f32.gmra.mxu0 %v1050
      %v1124 = vpop.f32.mrf.mxu0
      %v1125 = vadd.f32 0.0, %v1124
      %v1126 = vpop.f32.mrf.mxu0
      %1127 = vmatprep.mubr.f32.mxu0 0.0
      %1128 = vmatmul.mubr.f32.gmra.mxu0 %v1053
      %v1129 = vpop.f32.mrf.mxu0
      %v1130 = vadd.f32 0.0, %v1129
      %v1131 = vpop.f32.mrf.mxu0
      %1132 = vdwg.mxu0
      %1133 = vrot.lane.b32.xlu0 %v925, 120
      %v1134 = vpop.permute.xlu0 %1133
      %1135 = vrot.lane.b32.xlu0 %v926, 120
      %v1136 = vpop.permute.xlu0 %1135
      %1137 = vrot.lane.b32.xlu0 %v912, 88
      %v1138 = vpop.permute.xlu0 %1137
      %1139 = vrot.lane.b32.xlu0 %v917, 88
      %v1140 = vpop.permute.xlu0 %1139
      %v1141 = vsel %vm934, %v1134, 0
      %v1143 = vsel %vm934, %v1136, 0
      %v1145 = vsel %vm934, %v1138, 0
      %v1147 = vsel %vm934, %v1140, 0
      %1149 = vmatprep.subr.mxu0 0.0
      %1150 = vmatpush1.xpose.msra.mxu0 0.0
      %1151 = vmatprep.subr.mxu0 0.0
      %1152 = vmatpush1.xpose.msra.mxu0 0.0
      %1153 = vmatprep.subr.mxu0 0.0
      %1154 = vmatpush1.xpose.msra.mxu0 0.0
      %1155 = vmatprep.subr.mxu0 0.0
      %1156 = vmatpush1.xpose.msra.mxu0 0.0
      %1157 = vmatprep.subr.mxu0 0.0
      %1158 = vmatpush1.xpose.msra.mxu0 0.0
      %1159 = vmatprep.subr.mxu0 0.0
      %1160 = vmatpush1.xpose.msra.mxu0 0.0
      %1161 = vmatprep.subr.mxu0 0.0
      %1162 = vmatpush1.xpose.msra.mxu0 0.0
      %1163 = vmatprep.subr.mxu0 0.0
      %1164 = vmatpush1.xpose.msra.mxu0 0.0
      %1165 = vmatprep.subr.mxu0 0.0
      %1166 = vmatpush1.xpose.msra.mxu0 0.0
      %1167 = vmatprep.subr.mxu0 0.0
      %1168 = vmatpush1.xpose.msra.mxu0 0.0
      %1169 = vmatprep.subr.mxu0 0.0
      %1170 = vmatpush1.xpose.msra.mxu0 0.0
      %1171 = vmatprep.subr.mxu0 0.0
      %1172 = vmatpush1.xpose.msra.mxu0 0.0
      %1173 = vmatprep.subr.mxu0 0.0
      %1174 = vmatpush1.xpose.msra.mxu0 0.0
      %1175 = vmatprep.subr.mxu0 0.0
      %1176 = vmatpush1.xpose.msra.mxu0 0.0
      %1177 = vmatprep.subr.mxu0 0.0
      %1178 = vmatpush1.xpose.msra.mxu0 %v1147
      %1179 = vmatprep.subr.mxu0 0.0
      %1180 = vmatpush1.xpose.msra.mxu0 %v1145
      %1181 = vmatprep.subr.mxu0 0.0
      %1182 = vmatpush2.xpose.msra.mxu0 0.0
      %1183 = vmatprep.subr.mxu0 0.0
      %1184 = vmatpush2.xpose.msra.mxu0 0.0
      %1185 = vmatprep.subr.mxu0 0.0
      %1186 = vmatpush2.xpose.msra.mxu0 0.0
      %1187 = vmatprep.subr.mxu0 0.0
      %1188 = vmatpush2.xpose.msra.mxu0 0.0
      %1189 = vmatprep.subr.mxu0 0.0
      %1190 = vmatpush2.xpose.msra.mxu0 0.0
      %1191 = vmatprep.subr.mxu0 0.0
      %1192 = vmatpush2.xpose.msra.mxu0 0.0
      %1193 = vmatprep.subr.mxu0 0.0
      %1194 = vmatpush2.xpose.msra.mxu0 0.0
      %1195 = vmatprep.subr.mxu0 0.0
      %1196 = vmatpush2.xpose.msra.mxu0 0.0
      %1197 = vmatprep.subr.mxu0 0.0
      %1198 = vmatpush2.xpose.msra.mxu0 0.0
      %1199 = vmatprep.subr.mxu0 0.0
      %1200 = vmatpush2.xpose.msra.mxu0 0.0
      %1201 = vmatprep.subr.mxu0 0.0
      %1202 = vmatpush2.xpose.msra.mxu0 0.0
      %1203 = vmatprep.subr.mxu0 0.0
      %1204 = vmatpush2.xpose.msra.mxu0 0.0
      %1205 = vmatprep.subr.mxu0 0.0
      %1206 = vmatpush2.xpose.msra.mxu0 0.0
      %1207 = vmatprep.subr.mxu0 0.0
      %1208 = vmatpush2.xpose.msra.mxu0 0.0
      %1209 = vmatprep.subr.mxu0 0.0
      %1210 = vmatpush2.xpose.msra.mxu0 0.0
      %1211 = vmatprep.subr.mxu0 0.0
      %1212 = vmatpush2.xpose.msra.mxu0 0.0
      %1213 = vmatprep.mubr.f32.mxu0 0.0
      %1214 = vmatmul.mubr.f32.gmra.mxu0 %v1141
      %v1215 = vpop.f32.mrf.mxu0
      %v1216 = vadd.f32 0.0, %v1215
      %v1217 = vpop.f32.mrf.mxu0
      %1218 = vmatprep.mubr.f32.mxu0 0.0
      %1219 = vmatmul.mubr.f32.gmra.mxu0 %v1143
      %v1220 = vpop.f32.mrf.mxu0
      %v1221 = vadd.f32 0.0, %v1220
      %v1222 = vpop.f32.mrf.mxu0
      %1223 = vdwg.mxu0
      %v1224 = vsel %vm1020, %v1216, -inf
      %1225 = vmax.xlane.f32.xlu0 %v1224
      %v1226 = vpop.xlane.xlu0 %1225
      %v1227 = vsel %vm1024, %v1221, -inf
      %1228 = vmax.xlane.f32.xlu0 %v1227
      %v1229 = vpop.xlane.xlu0 %1228
      %v1230 = vsub.f32 %v1216, %v1226
      %v1231 = vsub.f32 %v1221, %v1229
      %v1232 = vmul.f32 %v1230, 1.442695
      %v1233 = vpow.pop %v1232
      %v1234 = vmul.f32 %v1231, 1.442695
      %v1235 = vpow.pop %v1234
      %v1236 = vsel %vm1020, %v1233, 0.0
      %1237 = vadd.xlane.f32.xlu0 %v1236
      %v1238 = vpop.xlane.xlu0 %1237
      %v1239 = vsel %vm1024, %v1235, 0.0
      %1240 = vadd.xlane.f32.xlu0 %v1239
      %v1241 = vpop.xlane.xlu0 %1240
      %v1242 = vrcp.pop %v1238
      %v1243 = vrcp.pop %v1241
      %v1244 = vmul.f32 %v1233, %v1242
      %v1245 = vmul.f32 %v1235, %v1243
      %1246 = vrot.lane.b32.xlu0 %v912, 56
      %v1247 = vpop.permute.xlu0 %1246
      %1248 = vrot.lane.b32.xlu0 %v917, 56
      %v1249 = vpop.permute.xlu0 %1248
      %v1252 = vsel %vm1020, %v1244, 0
      %v1255 = vsel %vm1020, %v1245, 0
      %v1257 = vsel %vm1055, %v1249, 0
      %1259 = vmatprep.subr.mxu0 0.0
      %1260 = vmatpush1.msra.mxu0 0.0
      %1261 = vmatprep.subr.mxu0 0.0
      %1262 = vmatpush1.msra.mxu0 0.0
      %1263 = vmatprep.subr.mxu0 0.0
      %1264 = vmatpush1.msra.mxu0 0.0
      %1265 = vmatprep.subr.mxu0 0.0
      %1266 = vmatpush1.msra.mxu0 0.0
      %1267 = vmatprep.subr.mxu0 0.0
      %1268 = vmatpush1.msra.mxu0 0.0
      %1269 = vmatprep.subr.mxu0 0.0
      %1270 = vmatpush1.msra.mxu0 0.0
      %1271 = vmatprep.subr.mxu0 0.0
      %1272 = vmatpush1.msra.mxu0 0.0
      %1273 = vmatprep.subr.mxu0 0.0
      %1274 = vmatpush1.msra.mxu0 0.0
      %1275 = vmatprep.subr.mxu0 0.0
      %1276 = vmatpush1.msra.mxu0 0.0
      %1277 = vmatprep.subr.mxu0 0.0
      %1278 = vmatpush1.msra.mxu0 0.0
      %1279 = vmatprep.subr.mxu0 0.0
      %1280 = vmatpush1.msra.mxu0 0.0
      %1281 = vmatprep.subr.mxu0 0.0
      %1282 = vmatpush1.msra.mxu0 0.0
      %1283 = vmatprep.subr.mxu0 0.0
      %1284 = vmatpush1.msra.mxu0 0.0
      %1285 = vmatprep.subr.mxu0 0.0
      %1286 = vmatpush1.msra.mxu0 0.0
      %1287 = vmatprep.subr.mxu0 0.0
      %1288 = vmatpush1.msra.mxu0 %v1257
      %1289 = vmatprep.subr.mxu0 0.0
      %1290 = vmatpush1.msra.mxu0 %v1247
      %1291 = vmatprep.subr.mxu0 0.0
      %1292 = vmatpush2.msra.mxu0 0.0
      %1293 = vmatprep.subr.mxu0 0.0
      %1294 = vmatpush2.msra.mxu0 0.0
      %1295 = vmatprep.subr.mxu0 0.0
      %1296 = vmatpush2.msra.mxu0 0.0
      %1297 = vmatprep.subr.mxu0 0.0
      %1298 = vmatpush2.msra.mxu0 0.0
      %1299 = vmatprep.subr.mxu0 0.0
      %1300 = vmatpush2.msra.mxu0 0.0
      %1301 = vmatprep.subr.mxu0 0.0
      %1302 = vmatpush2.msra.mxu0 0.0
      %1303 = vmatprep.subr.mxu0 0.0
      %1304 = vmatpush2.msra.mxu0 0.0
      %1305 = vmatprep.subr.mxu0 0.0
      %1306 = vmatpush2.msra.mxu0 0.0
      %1307 = vmatprep.subr.mxu0 0.0
      %1308 = vmatpush2.msra.mxu0 0.0
      %1309 = vmatprep.subr.mxu0 0.0
      %1310 = vmatpush2.msra.mxu0 0.0
      %1311 = vmatprep.subr.mxu0 0.0
      %1312 = vmatpush2.msra.mxu0 0.0
      %1313 = vmatprep.subr.mxu0 0.0
      %1314 = vmatpush2.msra.mxu0 0.0
      %1315 = vmatprep.subr.mxu0 0.0
      %1316 = vmatpush2.msra.mxu0 0.0
      %1317 = vmatprep.subr.mxu0 0.0
      %1318 = vmatpush2.msra.mxu0 0.0
      %1319 = vmatprep.subr.mxu0 0.0
      %1320 = vmatpush2.msra.mxu0 0.0
      %1321 = vmatprep.subr.mxu0 0.0
      %1322 = vmatpush2.msra.mxu0 0.0
      %1323 = vmatprep.mubr.f32.mxu0 0.0
      %1324 = vmatmul.mubr.f32.gmra.mxu0 %v1252
      %v1325 = vpop.f32.mrf.mxu0
      %v1326 = vadd.f32 0.0, %v1325
      %v1327 = vpop.f32.mrf.mxu0
      %1328 = vmatprep.mubr.f32.mxu0 0.0
      %1329 = vmatmul.mubr.f32.gmra.mxu0 %v1255
      %v1330 = vpop.f32.mrf.mxu0
      %v1331 = vadd.f32 0.0, %v1330
      %v1332 = vpop.f32.mrf.mxu0
      %1333 = vdwg.mxu0
      %1334 = vrot.lane.b32.xlu0 %v925, 112
      %v1335 = vpop.permute.xlu0 %1334
      %1336 = vrot.lane.b32.xlu0 %v926, 112
      %v1337 = vpop.permute.xlu0 %1336
      %1338 = vrot.lane.b32.xlu0 %v912, 80
      %v1339 = vpop.permute.xlu0 %1338
      %1340 = vrot.lane.b32.xlu0 %v917, 80
      %v1341 = vpop.permute.xlu0 %1340
      %v1342 = vsel %vm934, %v1335, 0
      %v1344 = vsel %vm934, %v1337, 0
      %v1346 = vsel %vm934, %v1339, 0
      %v1348 = vsel %vm934, %v1341, 0
      %1350 = vmatprep.subr.mxu0 0.0
      %1351 = vmatpush1.xpose.msra.mxu0 0.0
      %1352 = vmatprep.subr.mxu0 0.0
      %1353 = vmatpush1.xpose.msra.mxu0 0.0
      %1354 = vmatprep.subr.mxu0 0.0
      %1355 = vmatpush1.xpose.msra.mxu0 0.0
      %1356 = vmatprep.subr.mxu0 0.0
      %1357 = vmatpush1.xpose.msra.mxu0 0.0
      %1358 = vmatprep.subr.mxu0 0.0
      %1359 = vmatpush1.xpose.msra.mxu0 0.0
      %1360 = vmatprep.subr.mxu0 0.0
      %1361 = vmatpush1.xpose.msra.mxu0 0.0
      %1362 = vmatprep.subr.mxu0 0.0
      %1363 = vmatpush1.xpose.msra.mxu0 0.0
      %1364 = vmatprep.subr.mxu0 0.0
      %1365 = vmatpush1.xpose.msra.mxu0 0.0
      %1366 = vmatprep.subr.mxu0 0.0
      %1367 = vmatpush1.xpose.msra.mxu0 0.0
      %1368 = vmatprep.subr.mxu0 0.0
      %1369 = vmatpush1.xpose.msra.mxu0 0.0
      %1370 = vmatprep.subr.mxu0 0.0
      %1371 = vmatpush1.xpose.msra.mxu0 0.0
      %1372 = vmatprep.subr.mxu0 0.0
      %1373 = vmatpush1.xpose.msra.mxu0 0.0
      %1374 = vmatprep.subr.mxu0 0.0
      %1375 = vmatpush1.xpose.msra.mxu0 0.0
      %1376 = vmatprep.subr.mxu0 0.0
      %1377 = vmatpush1.xpose.msra.mxu0 0.0
      %1378 = vmatprep.subr.mxu0 0.0
      %1379 = vmatpush1.xpose.msra.mxu0 %v1348
      %1380 = vmatprep.subr.mxu0 0.0
      %1381 = vmatpush1.xpose.msra.mxu0 %v1346
      %1382 = vmatprep.subr.mxu0 0.0
      %1383 = vmatpush2.xpose.msra.mxu0 0.0
      %1384 = vmatprep.subr.mxu0 0.0
      %1385 = vmatpush2.xpose.msra.mxu0 0.0
      %1386 = vmatprep.subr.mxu0 0.0
      %1387 = vmatpush2.xpose.msra.mxu0 0.0
      %1388 = vmatprep.subr.mxu0 0.0
      %1389 = vmatpush2.xpose.msra.mxu0 0.0
      %1390 = vmatprep.subr.mxu0 0.0
      %1391 = vmatpush2.xpose.msra.mxu0 0.0
      %1392 = vmatprep.subr.mxu0 0.0
      %1393 = vmatpush2.xpose.msra.mxu0 0.0
      %1394 = vmatprep.subr.mxu0 0.0
      %1395 = vmatpush2.xpose.msra.mxu0 0.0
      %1396 = vmatprep.subr.mxu0 0.0
      %1397 = vmatpush2.xpose.msra.mxu0 0.0
      %1398 = vmatprep.subr.mxu0 0.0
      %1399 = vmatpush2.xpose.msra.mxu0 0.0
      %1400 = vmatprep.subr.mxu0 0.0
      %1401 = vmatpush2.xpose.msra.mxu0 0.0
      %1402 = vmatprep.subr.mxu0 0.0
      %1403 = vmatpush2.xpose.msra.mxu0 0.0
      %1404 = vmatprep.subr.mxu0 0.0
      %1405 = vmatpush2.xpose.msra.mxu0 0.0
      %1406 = vmatprep.subr.mxu0 0.0
      %1407 = vmatpush2.xpose.msra.mxu0 0.0
      %1408 = vmatprep.subr.mxu0 0.0
      %1409 = vmatpush2.xpose.msra.mxu0 0.0
      %1410 = vmatprep.subr.mxu0 0.0
      %1411 = vmatpush2.xpose.msra.mxu0 0.0
      %1412 = vmatprep.subr.mxu0 0.0
      %1413 = vmatpush2.xpose.msra.mxu0 0.0
      %1414 = vmatprep.mubr.f32.mxu0 0.0
      %1415 = vmatmul.mubr.f32.gmra.mxu0 %v1342
      %v1416 = vpop.f32.mrf.mxu0
      %v1417 = vadd.f32 0.0, %v1416
      %v1418 = vpop.f32.mrf.mxu0
      %1419 = vmatprep.mubr.f32.mxu0 0.0
      %1420 = vmatmul.mubr.f32.gmra.mxu0 %v1344
      %v1421 = vpop.f32.mrf.mxu0
      %v1422 = vadd.f32 0.0, %v1421
      %v1423 = vpop.f32.mrf.mxu0
      %1424 = vdwg.mxu0
      %v1425 = vsel %vm1020, %v1417, -inf
      %1426 = vmax.xlane.f32.xlu0 %v1425
      %v1427 = vpop.xlane.xlu0 %1426
      %v1428 = vsel %vm1024, %v1422, -inf
      %1429 = vmax.xlane.f32.xlu0 %v1428
      %v1430 = vpop.xlane.xlu0 %1429
      %v1431 = vsub.f32 %v1417, %v1427
      %v1432 = vsub.f32 %v1422, %v1430
      %v1433 = vmul.f32 %v1431, 1.442695
      %v1434 = vpow.pop %v1433
      %v1435 = vmul.f32 %v1432, 1.442695
      %v1436 = vpow.pop %v1435
      %v1437 = vsel %vm1020, %v1434, 0.0
      %1438 = vadd.xlane.f32.xlu0 %v1437
      %v1439 = vpop.xlane.xlu0 %1438
      %v1440 = vsel %vm1024, %v1436, 0.0
      %1441 = vadd.xlane.f32.xlu0 %v1440
      %v1442 = vpop.xlane.xlu0 %1441
      %v1443 = vrcp.pop %v1439
      %v1444 = vrcp.pop %v1442
      %v1445 = vmul.f32 %v1434, %v1443
      %v1446 = vmul.f32 %v1436, %v1444
      %1447 = vrot.lane.b32.xlu0 %v912, 48
      %v1448 = vpop.permute.xlu0 %1447
      %1449 = vrot.lane.b32.xlu0 %v917, 48
      %v1450 = vpop.permute.xlu0 %1449
      %v1453 = vsel %vm1020, %v1445, 0
      %v1456 = vsel %vm1020, %v1446, 0
      %v1458 = vsel %vm1055, %v1450, 0
      %1460 = vmatprep.subr.mxu0 0.0
      %1461 = vmatpush1.msra.mxu0 0.0
      %1462 = vmatprep.subr.mxu0 0.0
      %1463 = vmatpush1.msra.mxu0 0.0
      %1464 = vmatprep.subr.mxu0 0.0
      %1465 = vmatpush1.msra.mxu0 0.0
      %1466 = vmatprep.subr.mxu0 0.0
      %1467 = vmatpush1.msra.mxu0 0.0
      %1468 = vmatprep.subr.mxu0 0.0
      %1469 = vmatpush1.msra.mxu0 0.0
      %1470 = vmatprep.subr.mxu0 0.0
      %1471 = vmatpush1.msra.mxu0 0.0
      %1472 = vmatprep.subr.mxu0 0.0
      %1473 = vmatpush1.msra.mxu0 0.0
      %1474 = vmatprep.subr.mxu0 0.0
      %1475 = vmatpush1.msra.mxu0 0.0
      %1476 = vmatprep.subr.mxu0 0.0
      %1477 = vmatpush1.msra.mxu0 0.0
      %1478 = vmatprep.subr.mxu0 0.0
      %1479 = vmatpush1.msra.mxu0 0.0
      %1480 = vmatprep.subr.mxu0 0.0
      %1481 = vmatpush1.msra.mxu0 0.0
      %1482 = vmatprep.subr.mxu0 0.0
      %1483 = vmatpush1.msra.mxu0 0.0
      %1484 = vmatprep.subr.mxu0 0.0
      %1485 = vmatpush1.msra.mxu0 0.0
      %1486 = vmatprep.subr.mxu0 0.0
      %1487 = vmatpush1.msra.mxu0 0.0
      %1488 = vmatprep.subr.mxu0 0.0
      %1489 = vmatpush1.msra.mxu0 %v1458
      %1490 = vmatprep.subr.mxu0 0.0
      %1491 = vmatpush1.msra.mxu0 %v1448
      %1492 = vmatprep.subr.mxu0 0.0
      %1493 = vmatpush2.msra.mxu0 0.0
      %1494 = vmatprep.subr.mxu0 0.0
      %1495 = vmatpush2.msra.mxu0 0.0
      %1496 = vmatprep.subr.mxu0 0.0
      %1497 = vmatpush2.msra.mxu0 0.0
      %1498 = vmatprep.subr.mxu0 0.0
      %1499 = vmatpush2.msra.mxu0 0.0
      %1500 = vmatprep.subr.mxu0 0.0
      %1501 = vmatpush2.msra.mxu0 0.0
      %1502 = vmatprep.subr.mxu0 0.0
      %1503 = vmatpush2.msra.mxu0 0.0
      %1504 = vmatprep.subr.mxu0 0.0
      %1505 = vmatpush2.msra.mxu0 0.0
      %1506 = vmatprep.subr.mxu0 0.0
      %1507 = vmatpush2.msra.mxu0 0.0
      %1508 = vmatprep.subr.mxu0 0.0
      %1509 = vmatpush2.msra.mxu0 0.0
      %1510 = vmatprep.subr.mxu0 0.0
      %1511 = vmatpush2.msra.mxu0 0.0
      %1512 = vmatprep.subr.mxu0 0.0
      %1513 = vmatpush2.msra.mxu0 0.0
      %1514 = vmatprep.subr.mxu0 0.0
      %1515 = vmatpush2.msra.mxu0 0.0
      %1516 = vmatprep.subr.mxu0 0.0
      %1517 = vmatpush2.msra.mxu0 0.0
      %1518 = vmatprep.subr.mxu0 0.0
      %1519 = vmatpush2.msra.mxu0 0.0
      %1520 = vmatprep.subr.mxu0 0.0
      %1521 = vmatpush2.msra.mxu0 0.0
      %1522 = vmatprep.subr.mxu0 0.0
      %1523 = vmatpush2.msra.mxu0 0.0
      %1524 = vmatprep.mubr.f32.mxu0 0.0
      %1525 = vmatmul.mubr.f32.gmra.mxu0 %v1453
      %v1526 = vpop.f32.mrf.mxu0
      %v1527 = vadd.f32 0.0, %v1526
      %v1528 = vpop.f32.mrf.mxu0
      %1529 = vmatprep.mubr.f32.mxu0 0.0
      %1530 = vmatmul.mubr.f32.gmra.mxu0 %v1456
      %v1531 = vpop.f32.mrf.mxu0
      %v1532 = vadd.f32 0.0, %v1531
      %v1533 = vpop.f32.mrf.mxu0
      %1534 = vdwg.mxu0
      %1535 = vrot.lane.b32.xlu0 %v925, 104
      %v1536 = vpop.permute.xlu0 %1535
      %1537 = vrot.lane.b32.xlu0 %v926, 104
      %v1538 = vpop.permute.xlu0 %1537
      %1539 = vrot.lane.b32.xlu0 %v912, 72
      %v1540 = vpop.permute.xlu0 %1539
      %1541 = vrot.lane.b32.xlu0 %v917, 72
      %v1542 = vpop.permute.xlu0 %1541
      %v1543 = vsel %vm934, %v1536, 0
      %v1545 = vsel %vm934, %v1538, 0
      %v1547 = vsel %vm934, %v1540, 0
      %v1549 = vsel %vm934, %v1542, 0
      %1551 = vmatprep.subr.mxu0 0.0
      %1552 = vmatpush1.xpose.msra.mxu0 0.0
      %1553 = vmatprep.subr.mxu0 0.0
      %1554 = vmatpush1.xpose.msra.mxu0 0.0
      %1555 = vmatprep.subr.mxu0 0.0
      %1556 = vmatpush1.xpose.msra.mxu0 0.0
      %1557 = vmatprep.subr.mxu0 0.0
      %1558 = vmatpush1.xpose.msra.mxu0 0.0
      %1559 = vmatprep.subr.mxu0 0.0
      %1560 = vmatpush1.xpose.msra.mxu0 0.0
      %1561 = vmatprep.subr.mxu0 0.0
      %1562 = vmatpush1.xpose.msra.mxu0 0.0
      %1563 = vmatprep.subr.mxu0 0.0
      %1564 = vmatpush1.xpose.msra.mxu0 0.0
      %1565 = vmatprep.subr.mxu0 0.0
      %1566 = vmatpush1.xpose.msra.mxu0 0.0
      %1567 = vmatprep.subr.mxu0 0.0
      %1568 = vmatpush1.xpose.msra.mxu0 0.0
      %1569 = vmatprep.subr.mxu0 0.0
      %1570 = vmatpush1.xpose.msra.mxu0 0.0
      %1571 = vmatprep.subr.mxu0 0.0
      %1572 = vmatpush1.xpose.msra.mxu0 0.0
      %1573 = vmatprep.subr.mxu0 0.0
      %1574 = vmatpush1.xpose.msra.mxu0 0.0
      %1575 = vmatprep.subr.mxu0 0.0
      %1576 = vmatpush1.xpose.msra.mxu0 0.0
      %1577 = vmatprep.subr.mxu0 0.0
      %1578 = vmatpush1.xpose.msra.mxu0 0.0
      %1579 = vmatprep.subr.mxu0 0.0
      %1580 = vmatpush1.xpose.msra.mxu0 %v1549
      %1581 = vmatprep.subr.mxu0 0.0
      %1582 = vmatpush1.xpose.msra.mxu0 %v1547
      %1583 = vmatprep.subr.mxu0 0.0
      %1584 = vmatpush2.xpose.msra.mxu0 0.0
      %1585 = vmatprep.subr.mxu0 0.0
      %1586 = vmatpush2.xpose.msra.mxu0 0.0
      %1587 = vmatprep.subr.mxu0 0.0
      %1588 = vmatpush2.xpose.msra.mxu0 0.0
      %1589 = vmatprep.subr.mxu0 0.0
      %1590 = vmatpush2.xpose.msra.mxu0 0.0
      %1591 = vmatprep.subr.mxu0 0.0
      %1592 = vmatpush2.xpose.msra.mxu0 0.0
      %1593 = vmatprep.subr.mxu0 0.0
      %1594 = vmatpush2.xpose.msra.mxu0 0.0
      %1595 = vmatprep.subr.mxu0 0.0
      %1596 = vmatpush2.xpose.msra.mxu0 0.0
      %1597 = vmatprep.subr.mxu0 0.0
      %1598 = vmatpush2.xpose.msra.mxu0 0.0
      %1599 = vmatprep.subr.mxu0 0.0
      %1600 = vmatpush2.xpose.msra.mxu0 0.0
      %1601 = vmatprep.subr.mxu0 0.0
      %1602 = vmatpush2.xpose.msra.mxu0 0.0
      %1603 = vmatprep.subr.mxu0 0.0
      %1604 = vmatpush2.xpose.msra.mxu0 0.0
      %1605 = vmatprep.subr.mxu0 0.0
      %1606 = vmatpush2.xpose.msra.mxu0 0.0
      %1607 = vmatprep.subr.mxu0 0.0
      %1608 = vmatpush2.xpose.msra.mxu0 0.0
      %1609 = vmatprep.subr.mxu0 0.0
      %1610 = vmatpush2.xpose.msra.mxu0 0.0
      %1611 = vmatprep.subr.mxu0 0.0
      %1612 = vmatpush2.xpose.msra.mxu0 0.0
      %1613 = vmatprep.subr.mxu0 0.0
      %1614 = vmatpush2.xpose.msra.mxu0 0.0
      %1615 = vmatprep.mubr.f32.mxu0 0.0
      %1616 = vmatmul.mubr.f32.gmra.mxu0 %v1543
      %v1617 = vpop.f32.mrf.mxu0
      %v1618 = vadd.f32 0.0, %v1617
      %v1619 = vpop.f32.mrf.mxu0
      %1620 = vmatprep.mubr.f32.mxu0 0.0
      %1621 = vmatmul.mubr.f32.gmra.mxu0 %v1545
      %v1622 = vpop.f32.mrf.mxu0
      %v1623 = vadd.f32 0.0, %v1622
      %v1624 = vpop.f32.mrf.mxu0
      %1625 = vdwg.mxu0
      %v1626 = vsel %vm1020, %v1618, -inf
      %1627 = vmax.xlane.f32.xlu0 %v1626
      %v1628 = vpop.xlane.xlu0 %1627
      %v1629 = vsel %vm1024, %v1623, -inf
      %1630 = vmax.xlane.f32.xlu0 %v1629
      %v1631 = vpop.xlane.xlu0 %1630
      %v1632 = vsub.f32 %v1618, %v1628
      %v1633 = vsub.f32 %v1623, %v1631
      %v1634 = vmul.f32 %v1632, 1.442695
      %v1635 = vpow.pop %v1634
      %v1636 = vmul.f32 %v1633, 1.442695
      %v1637 = vpow.pop %v1636
      %v1638 = vsel %vm1020, %v1635, 0.0
      %1639 = vadd.xlane.f32.xlu0 %v1638
      %v1640 = vpop.xlane.xlu0 %1639
      %v1641 = vsel %vm1024, %v1637, 0.0
      %1642 = vadd.xlane.f32.xlu0 %v1641
      %v1643 = vpop.xlane.xlu0 %1642
      %v1644 = vrcp.pop %v1640
      %v1645 = vrcp.pop %v1643
      %v1646 = vmul.f32 %v1635, %v1644
      %v1647 = vmul.f32 %v1637, %v1645
      %1648 = vrot.lane.b32.xlu0 %v912, 40
      %v1649 = vpop.permute.xlu0 %1648
      %1650 = vrot.lane.b32.xlu0 %v917, 40
      %v1651 = vpop.permute.xlu0 %1650
      %v1654 = vsel %vm1020, %v1646, 0
      %v1657 = vsel %vm1020, %v1647, 0
      %v1659 = vsel %vm1055, %v1651, 0
      %1661 = vmatprep.subr.mxu0 0.0
      %1662 = vmatpush1.msra.mxu0 0.0
      %1663 = vmatprep.subr.mxu0 0.0
      %1664 = vmatpush1.msra.mxu0 0.0
      %1665 = vmatprep.subr.mxu0 0.0
      %1666 = vmatpush1.msra.mxu0 0.0
      %1667 = vmatprep.subr.mxu0 0.0
      %1668 = vmatpush1.msra.mxu0 0.0
      %1669 = vmatprep.subr.mxu0 0.0
      %1670 = vmatpush1.msra.mxu0 0.0
      %1671 = vmatprep.subr.mxu0 0.0
      %1672 = vmatpush1.msra.mxu0 0.0
      %1673 = vmatprep.subr.mxu0 0.0
      %1674 = vmatpush1.msra.mxu0 0.0
      %1675 = vmatprep.subr.mxu0 0.0
      %1676 = vmatpush1.msra.mxu0 0.0
      %1677 = vmatprep.subr.mxu0 0.0
      %1678 = vmatpush1.msra.mxu0 0.0
      %1679 = vmatprep.subr.mxu0 0.0
      %1680 = vmatpush1.msra.mxu0 0.0
      %1681 = vmatprep.subr.mxu0 0.0
      %1682 = vmatpush1.msra.mxu0 0.0
      %1683 = vmatprep.subr.mxu0 0.0
      %1684 = vmatpush1.msra.mxu0 0.0
      %1685 = vmatprep.subr.mxu0 0.0
      %1686 = vmatpush1.msra.mxu0 0.0
      %1687 = vmatprep.subr.mxu0 0.0
      %1688 = vmatpush1.msra.mxu0 0.0
      %1689 = vmatprep.subr.mxu0 0.0
      %1690 = vmatpush1.msra.mxu0 %v1659
      %1691 = vmatprep.subr.mxu0 0.0
      %1692 = vmatpush1.msra.mxu0 %v1649
      %1693 = vmatprep.subr.mxu0 0.0
      %1694 = vmatpush2.msra.mxu0 0.0
      %1695 = vmatprep.subr.mxu0 0.0
      %1696 = vmatpush2.msra.mxu0 0.0
      %1697 = vmatprep.subr.mxu0 0.0
      %1698 = vmatpush2.msra.mxu0 0.0
      %1699 = vmatprep.subr.mxu0 0.0
      %1700 = vmatpush2.msra.mxu0 0.0
      %1701 = vmatprep.subr.mxu0 0.0
      %1702 = vmatpush2.msra.mxu0 0.0
      %1703 = vmatprep.subr.mxu0 0.0
      %1704 = vmatpush2.msra.mxu0 0.0
      %1705 = vmatprep.subr.mxu0 0.0
      %1706 = vmatpush2.msra.mxu0 0.0
      %1707 = vmatprep.subr.mxu0 0.0
      %1708 = vmatpush2.msra.mxu0 0.0
      %1709 = vmatprep.subr.mxu0 0.0
      %1710 = vmatpush2.msra.mxu0 0.0
      %1711 = vmatprep.subr.mxu0 0.0
      %1712 = vmatpush2.msra.mxu0 0.0
      %1713 = vmatprep.subr.mxu0 0.0
      %1714 = vmatpush2.msra.mxu0 0.0
      %1715 = vmatprep.subr.mxu0 0.0
      %1716 = vmatpush2.msra.mxu0 0.0
      %1717 = vmatprep.subr.mxu0 0.0
      %1718 = vmatpush2.msra.mxu0 0.0
      %1719 = vmatprep.subr.mxu0 0.0
      %1720 = vmatpush2.msra.mxu0 0.0
      %1721 = vmatprep.subr.mxu0 0.0
      %1722 = vmatpush2.msra.mxu0 0.0
      %1723 = vmatprep.subr.mxu0 0.0
      %1724 = vmatpush2.msra.mxu0 0.0
      %1725 = vmatprep.mubr.f32.mxu0 0.0
      %1726 = vmatmul.mubr.f32.gmra.mxu0 %v1654
      %v1727 = vpop.f32.mrf.mxu0
      %v1728 = vadd.f32 0.0, %v1727
      %v1729 = vpop.f32.mrf.mxu0
      %1730 = vmatprep.mubr.f32.mxu0 0.0
      %1731 = vmatmul.mubr.f32.gmra.mxu0 %v1657
      %v1732 = vpop.f32.mrf.mxu0
      %v1733 = vadd.f32 0.0, %v1732
      %v1734 = vpop.f32.mrf.mxu0
      %1735 = vdwg.mxu0
      %1738 = vrot.lane.b32.xlu0 %v1326, 8
      %v1739 = vpop.permute.xlu0 %1738
      %1740 = vrot.lane.b32.xlu0 %v1331, 8
      %v1741 = vpop.permute.xlu0 %1740
      %1746 = vrot.lane.b32.xlu0 %v1527, 16
      %v1747 = vpop.permute.xlu0 %1746
      %1748 = vrot.lane.b32.xlu0 %v1532, 16
      %v1749 = vpop.permute.xlu0 %1748
      %1754 = vrot.lane.b32.xlu0 %v1728, 24
      %v1755 = vpop.permute.xlu0 %1754
      %1756 = vrot.lane.b32.xlu0 %v1733, 24
      %v1757 = vpop.permute.xlu0 %1756
      %v1760 = vsel %vm934, %v1125, %v1739
      %v1761 = vsel %vm934, %v1130, %v1741
      %vm1762 = vcmask 130048
      %v1763 = vsel %vm1762, %v1760, %v1747
      %v1764 = vsel %vm1762, %v1761, %v1749
      %vm1765 = vcmask 195584
      %v1766 = vsel %vm1765, %v1763, %v1755
      %v1767 = vsel %vm1765, %v1764, %v1757
      %vm1769 = vcmask 1046528
      %v1770 = vrot.slane %v926, 1
      %v1771 = vrot.slane %v927, 1
      %v1772 = vsel %vm1769, %v1770, %v1771
      %v1774 = vrot.slane %v917, 1
      %v1775 = vrot.slane %v922, 1
      %v1776 = vsel %vm1769, %v1774, %v1775
      %1777 = vrot.lane.b32.xlu0 %v1776, 96
      %v1778 = vpop.permute.xlu0 %1777
      %1779 = vrot.lane.b32.xlu0 %v1775, 96
      %v1780 = vpop.permute.xlu0 %1779
      %v1781 = vsel %vm934, %v1772, 0
      %v1783 = vsel %vm934, %v1771, 0
      %v1785 = vsel %vm934, %v1778, 0
      %v1787 = vsel %vm934, %v1780, 0
      %1789 = vmatprep.subr.mxu0 0.0
      %1790 = vmatpush1.xpose.msra.mxu0 0.0
      %1791 = vmatprep.subr.mxu0 0.0
      %1792 = vmatpush1.xpose.msra.mxu0 0.0
      %1793 = vmatprep.subr.mxu0 0.0
      %1794 = vmatpush1.xpose.msra.mxu0 0.0
      %1795 = vmatprep.subr.mxu0 0.0
      %1796 = vmatpush1.xpose.msra.mxu0 0.0
      %1797 = vmatprep.subr.mxu0 0.0
      %1798 = vmatpush1.xpose.msra.mxu0 0.0
      %1799 = vmatprep.subr.mxu0 0.0
      %1800 = vmatpush1.xpose.msra.mxu0 0.0
      %1801 = vmatprep.subr.mxu0 0.0
      %1802 = vmatpush1.xpose.msra.mxu0 0.0
      %1803 = vmatprep.subr.mxu0 0.0
      %1804 = vmatpush1.xpose.msra.mxu0 0.0
      %1805 = vmatprep.subr.mxu0 0.0
      %1806 = vmatpush1.xpose.msra.mxu0 0.0
      %1807 = vmatprep.subr.mxu0 0.0
      %1808 = vmatpush1.xpose.msra.mxu0 0.0
      %1809 = vmatprep.subr.mxu0 0.0
      %1810 = vmatpush1.xpose.msra.mxu0 0.0
      %1811 = vmatprep.subr.mxu0 0.0
      %1812 = vmatpush1.xpose.msra.mxu0 0.0
      %1813 = vmatprep.subr.mxu0 0.0
      %1814 = vmatpush1.xpose.msra.mxu0 0.0
      %1815 = vmatprep.subr.mxu0 0.0
      %1816 = vmatpush1.xpose.msra.mxu0 0.0
      %1817 = vmatprep.subr.mxu0 0.0
      %1818 = vmatpush1.xpose.msra.mxu0 %v1787
      %1819 = vmatprep.subr.mxu0 0.0
      %1820 = vmatpush1.xpose.msra.mxu0 %v1785
      %1821 = vmatprep.subr.mxu0 0.0
      %1822 = vmatpush2.xpose.msra.mxu0 0.0
      %1823 = vmatprep.subr.mxu0 0.0
      %1824 = vmatpush2.xpose.msra.mxu0 0.0
      %1825 = vmatprep.subr.mxu0 0.0
      %1826 = vmatpush2.xpose.msra.mxu0 0.0
      %1827 = vmatprep.subr.mxu0 0.0
      %1828 = vmatpush2.xpose.msra.mxu0 0.0
      %1829 = vmatprep.subr.mxu0 0.0
      %1830 = vmatpush2.xpose.msra.mxu0 0.0
      %1831 = vmatprep.subr.mxu0 0.0
      %1832 = vmatpush2.xpose.msra.mxu0 0.0
      %1833 = vmatprep.subr.mxu0 0.0
      %1834 = vmatpush2.xpose.msra.mxu0 0.0
      %1835 = vmatprep.subr.mxu0 0.0
      %1836 = vmatpush2.xpose.msra.mxu0 0.0
      %1837 = vmatprep.subr.mxu0 0.0
      %1838 = vmatpush2.xpose.msra.mxu0 0.0
      %1839 = vmatprep.subr.mxu0 0.0
      %1840 = vmatpush2.xpose.msra.mxu0 0.0
      %1841 = vmatprep.subr.mxu0 0.0
      %1842 = vmatpush2.xpose.msra.mxu0 0.0
      %1843 = vmatprep.subr.mxu0 0.0
      %1844 = vmatpush2.xpose.msra.mxu0 0.0
      %1845 = vmatprep.subr.mxu0 0.0
      %1846 = vmatpush2.xpose.msra.mxu0 0.0
      %1847 = vmatprep.subr.mxu0 0.0
      %1848 = vmatpush2.xpose.msra.mxu0 0.0
      %1849 = vmatprep.subr.mxu0 0.0
      %1850 = vmatpush2.xpose.msra.mxu0 0.0
      %1851 = vmatprep.subr.mxu0 0.0
      %1852 = vmatpush2.xpose.msra.mxu0 0.0
      %1853 = vmatprep.mubr.f32.mxu0 0.0
      %1854 = vmatmul.mubr.f32.gmra.mxu0 %v1781
      %v1855 = vpop.f32.mrf.mxu0
      %v1856 = vadd.f32 0.0, %v1855
      %v1857 = vpop.f32.mrf.mxu0
      %1858 = vmatprep.mubr.f32.mxu0 0.0
      %1859 = vmatmul.mubr.f32.gmra.mxu0 %v1783
      %v1860 = vpop.f32.mrf.mxu0
      %v1861 = vadd.f32 0.0, %v1860
      %v1862 = vpop.f32.mrf.mxu0
      %1863 = vdwg.mxu0
      %v1864 = vsel %vm1020, %v1856, -inf
      %1865 = vmax.xlane.f32.xlu0 %v1864
      %v1866 = vpop.xlane.xlu0 %1865
      %v1867 = vsel %vm1024, %v1861, -inf
      %1868 = vmax.xlane.f32.xlu0 %v1867
      %v1869 = vpop.xlane.xlu0 %1868
      %v1870 = vsub.f32 %v1856, %v1866
      %v1871 = vsub.f32 %v1861, %v1869
      %v1872 = vmul.f32 %v1870, 1.442695
      %v1873 = vpow.pop %v1872
      %v1874 = vmul.f32 %v1871, 1.442695
      %v1875 = vpow.pop %v1874
      %v1876 = vsel %vm1020, %v1873, 0.0
      %1877 = vadd.xlane.f32.xlu0 %v1876
      %v1878 = vpop.xlane.xlu0 %1877
      %v1879 = vsel %vm1024, %v1875, 0.0
      %1880 = vadd.xlane.f32.xlu0 %v1879
      %v1881 = vpop.xlane.xlu0 %1880
      %v1882 = vrcp.pop %v1878
      %v1883 = vrcp.pop %v1881
      %v1884 = vmul.f32 %v1873, %v1882
      %v1885 = vmul.f32 %v1875, %v1883
      %1886 = vrot.lane.b32.xlu0 %v1776, 64
      %v1887 = vpop.permute.xlu0 %1886
      %1888 = vrot.lane.b32.xlu0 %v1775, 64
      %v1889 = vpop.permute.xlu0 %1888
      %v1892 = vsel %vm1020, %v1884, 0
      %v1895 = vsel %vm1020, %v1885, 0
      %v1897 = vsel %vm1055, %v1889, 0
      %1899 = vmatprep.subr.mxu0 0.0
      %1900 = vmatpush1.msra.mxu0 0.0
      %1901 = vmatprep.subr.mxu0 0.0
      %1902 = vmatpush1.msra.mxu0 0.0
      %1903 = vmatprep.subr.mxu0 0.0
      %1904 = vmatpush1.msra.mxu0 0.0
      %1905 = vmatprep.subr.mxu0 0.0
      %1906 = vmatpush1.msra.mxu0 0.0
      %1907 = vmatprep.subr.mxu0 0.0
      %1908 = vmatpush1.msra.mxu0 0.0
      %1909 = vmatprep.subr.mxu0 0.0
      %1910 = vmatpush1.msra.mxu0 0.0
      %1911 = vmatprep.subr.mxu0 0.0
      %1912 = vmatpush1.msra.mxu0 0.0
      %1913 = vmatprep.subr.mxu0 0.0
      %1914 = vmatpush1.msra.mxu0 0.0
      %1915 = vmatprep.subr.mxu0 0.0
      %1916 = vmatpush1.msra.mxu0 0.0
      %1917 = vmatprep.subr.mxu0 0.0
      %1918 = vmatpush1.msra.mxu0 0.0
      %1919 = vmatprep.subr.mxu0 0.0
      %1920 = vmatpush1.msra.mxu0 0.0
      %1921 = vmatprep.subr.mxu0 0.0
      %1922 = vmatpush1.msra.mxu0 0.0
      %1923 = vmatprep.subr.mxu0 0.0
      %1924 = vmatpush1.msra.mxu0 0.0
      %1925 = vmatprep.subr.mxu0 0.0
      %1926 = vmatpush1.msra.mxu0 0.0
      %1927 = vmatprep.subr.mxu0 0.0
      %1928 = vmatpush1.msra.mxu0 %v1897
      %1929 = vmatprep.subr.mxu0 0.0
      %1930 = vmatpush1.msra.mxu0 %v1887
      %1931 = vmatprep.subr.mxu0 0.0
      %1932 = vmatpush2.msra.mxu0 0.0
      %1933 = vmatprep.subr.mxu0 0.0
      %1934 = vmatpush2.msra.mxu0 0.0
      %1935 = vmatprep.subr.mxu0 0.0
      %1936 = vmatpush2.msra.mxu0 0.0
      %1937 = vmatprep.subr.mxu0 0.0
      %1938 = vmatpush2.msra.mxu0 0.0
      %1939 = vmatprep.subr.mxu0 0.0
      %1940 = vmatpush2.msra.mxu0 0.0
      %1941 = vmatprep.subr.mxu0 0.0
      %1942 = vmatpush2.msra.mxu0 0.0
      %1943 = vmatprep.subr.mxu0 0.0
      %1944 = vmatpush2.msra.mxu0 0.0
      %1945 = vmatprep.subr.mxu0 0.0
      %1946 = vmatpush2.msra.mxu0 0.0
      %1947 = vmatprep.subr.mxu0 0.0
      %1948 = vmatpush2.msra.mxu0 0.0
      %1949 = vmatprep.subr.mxu0 0.0
      %1950 = vmatpush2.msra.mxu0 0.0
      %1951 = vmatprep.subr.mxu0 0.0
      %1952 = vmatpush2.msra.mxu0 0.0
      %1953 = vmatprep.subr.mxu0 0.0
      %1954 = vmatpush2.msra.mxu0 0.0
      %1955 = vmatprep.subr.mxu0 0.0
      %1956 = vmatpush2.msra.mxu0 0.0
      %1957 = vmatprep.subr.mxu0 0.0
      %1958 = vmatpush2.msra.mxu0 0.0
      %1959 = vmatprep.subr.mxu0 0.0
      %1960 = vmatpush2.msra.mxu0 0.0
      %1961 = vmatprep.subr.mxu0 0.0
      %1962 = vmatpush2.msra.mxu0 0.0
      %1963 = vmatprep.mubr.f32.mxu0 0.0
      %1964 = vmatmul.mubr.f32.gmra.mxu0 %v1892
      %v1965 = vpop.f32.mrf.mxu0
      %v1966 = vadd.f32 0.0, %v1965
      %v1967 = vpop.f32.mrf.mxu0
      %1968 = vmatprep.mubr.f32.mxu0 0.0
      %1969 = vmatmul.mubr.f32.gmra.mxu0 %v1895
      %v1970 = vpop.f32.mrf.mxu0
      %v1971 = vadd.f32 0.0, %v1970
      %v1972 = vpop.f32.mrf.mxu0
      %1973 = vdwg.mxu0
      %1974 = vrot.lane.b32.xlu0 %v1772, 120
      %v1975 = vpop.permute.xlu0 %1974
      %1976 = vrot.lane.b32.xlu0 %v1771, 120
      %v1977 = vpop.permute.xlu0 %1976
      %1978 = vrot.lane.b32.xlu0 %v1776, 88
      %v1979 = vpop.permute.xlu0 %1978
      %1980 = vrot.lane.b32.xlu0 %v1775, 88
      %v1981 = vpop.permute.xlu0 %1980
      %v1982 = vsel %vm934, %v1975, 0
      %v1984 = vsel %vm934, %v1977, 0
      %v1986 = vsel %vm934, %v1979, 0
      %v1988 = vsel %vm934, %v1981, 0
      %1990 = vmatprep.subr.mxu0 0.0
      %1991 = vmatpush1.xpose.msra.mxu0 0.0
      %1992 = vmatprep.subr.mxu0 0.0
      %1993 = vmatpush1.xpose.msra.mxu0 0.0
      %1994 = vmatprep.subr.mxu0 0.0
      %1995 = vmatpush1.xpose.msra.mxu0 0.0
      %1996 = vmatprep.subr.mxu0 0.0
      %1997 = vmatpush1.xpose.msra.mxu0 0.0
      %1998 = vmatprep.subr.mxu0 0.0
      %1999 = vmatpush1.xpose.msra.mxu0 0.0
      %2000 = vmatprep.subr.mxu0 0.0
      %2001 = vmatpush1.xpose.msra.mxu0 0.0
      %2002 = vmatprep.subr.mxu0 0.0
      %2003 = vmatpush1.xpose.msra.mxu0 0.0
      %2004 = vmatprep.subr.mxu0 0.0
      %2005 = vmatpush1.xpose.msra.mxu0 0.0
      %2006 = vmatprep.subr.mxu0 0.0
      %2007 = vmatpush1.xpose.msra.mxu0 0.0
      %2008 = vmatprep.subr.mxu0 0.0
      %2009 = vmatpush1.xpose.msra.mxu0 0.0
      %2010 = vmatprep.subr.mxu0 0.0
      %2011 = vmatpush1.xpose.msra.mxu0 0.0
      %2012 = vmatprep.subr.mxu0 0.0
      %2013 = vmatpush1.xpose.msra.mxu0 0.0
      %2014 = vmatprep.subr.mxu0 0.0
      %2015 = vmatpush1.xpose.msra.mxu0 0.0
      %2016 = vmatprep.subr.mxu0 0.0
      %2017 = vmatpush1.xpose.msra.mxu0 0.0
      %2018 = vmatprep.subr.mxu0 0.0
      %2019 = vmatpush1.xpose.msra.mxu0 %v1988
      %2020 = vmatprep.subr.mxu0 0.0
      %2021 = vmatpush1.xpose.msra.mxu0 %v1986
      %2022 = vmatprep.subr.mxu0 0.0
      %2023 = vmatpush2.xpose.msra.mxu0 0.0
      %2024 = vmatprep.subr.mxu0 0.0
      %2025 = vmatpush2.xpose.msra.mxu0 0.0
      %2026 = vmatprep.subr.mxu0 0.0
      %2027 = vmatpush2.xpose.msra.mxu0 0.0
      %2028 = vmatprep.subr.mxu0 0.0
      %2029 = vmatpush2.xpose.msra.mxu0 0.0
      %2030 = vmatprep.subr.mxu0 0.0
      %2031 = vmatpush2.xpose.msra.mxu0 0.0
      %2032 = vmatprep.subr.mxu0 0.0
      %2033 = vmatpush2.xpose.msra.mxu0 0.0
      %2034 = vmatprep.subr.mxu0 0.0
      %2035 = vmatpush2.xpose.msra.mxu0 0.0
      %2036 = vmatprep.subr.mxu0 0.0
      %2037 = vmatpush2.xpose.msra.mxu0 0.0
      %2038 = vmatprep.subr.mxu0 0.0
      %2039 = vmatpush2.xpose.msra.mxu0 0.0
      %2040 = vmatprep.subr.mxu0 0.0
      %2041 = vmatpush2.xpose.msra.mxu0 0.0
      %2042 = vmatprep.subr.mxu0 0.0
      %2043 = vmatpush2.xpose.msra.mxu0 0.0
      %2044 = vmatprep.subr.mxu0 0.0
      %2045 = vmatpush2.xpose.msra.mxu0 0.0
      %2046 = vmatprep.subr.mxu0 0.0
      %2047 = vmatpush2.xpose.msra.mxu0 0.0
      %2048 = vmatprep.subr.mxu0 0.0
      %2049 = vmatpush2.xpose.msra.mxu0 0.0
      %2050 = vmatprep.subr.mxu0 0.0
      %2051 = vmatpush2.xpose.msra.mxu0 0.0
      %2052 = vmatprep.subr.mxu0 0.0
      %2053 = vmatpush2.xpose.msra.mxu0 0.0
      %2054 = vmatprep.mubr.f32.mxu0 0.0
      %2055 = vmatmul.mubr.f32.gmra.mxu0 %v1982
      %v2056 = vpop.f32.mrf.mxu0
      %v2057 = vadd.f32 0.0, %v2056
      %v2058 = vpop.f32.mrf.mxu0
      %2059 = vmatprep.mubr.f32.mxu0 0.0
      %2060 = vmatmul.mubr.f32.gmra.mxu0 %v1984
      %v2061 = vpop.f32.mrf.mxu0
      %v2062 = vadd.f32 0.0, %v2061
      %v2063 = vpop.f32.mrf.mxu0
      %2064 = vdwg.mxu0
      %v2065 = vsel %vm1020, %v2057, -inf
      %2066 = vmax.xlane.f32.xlu0 %v2065
      %v2067 = vpop.xlane.xlu0 %2066
      %v2068 = vsel %vm1024, %v2062, -inf
      %2069 = vmax.xlane.f32.xlu0 %v2068
      %v2070 = vpop.xlane.xlu0 %2069
      %v2071 = vsub.f32 %v2057, %v2067
      %v2072 = vsub.f32 %v2062, %v2070
      %v2073 = vmul.f32 %v2071, 1.442695
      %v2074 = vpow.pop %v2073
      %v2075 = vmul.f32 %v2072, 1.442695
      %v2076 = vpow.pop %v2075
      %v2077 = vsel %vm1020, %v2074, 0.0
      %2078 = vadd.xlane.f32.xlu0 %v2077
      %v2079 = vpop.xlane.xlu0 %2078
      %v2080 = vsel %vm1024, %v2076, 0.0
      %2081 = vadd.xlane.f32.xlu0 %v2080
      %v2082 = vpop.xlane.xlu0 %2081
      %v2083 = vrcp.pop %v2079
      %v2084 = vrcp.pop %v2082
      %v2085 = vmul.f32 %v2074, %v2083
      %v2086 = vmul.f32 %v2076, %v2084
      %2087 = vrot.lane.b32.xlu0 %v1776, 56
      %v2088 = vpop.permute.xlu0 %2087
      %2089 = vrot.lane.b32.xlu0 %v1775, 56
      %v2090 = vpop.permute.xlu0 %2089
      %v2093 = vsel %vm1020, %v2085, 0
      %v2096 = vsel %vm1020, %v2086, 0
      %v2098 = vsel %vm1055, %v2090, 0
      %2100 = vmatprep.subr.mxu0 0.0
      %2101 = vmatpush1.msra.mxu0 0.0
      %2102 = vmatprep.subr.mxu0 0.0
      %2103 = vmatpush1.msra.mxu0 0.0
      %2104 = vmatprep.subr.mxu0 0.0
      %2105 = vmatpush1.msra.mxu0 0.0
      %2106 = vmatprep.subr.mxu0 0.0
      %2107 = vmatpush1.msra.mxu0 0.0
      %2108 = vmatprep.subr.mxu0 0.0
      %2109 = vmatpush1.msra.mxu0 0.0
      %2110 = vmatprep.subr.mxu0 0.0
      %2111 = vmatpush1.msra.mxu0 0.0
      %2112 = vmatprep.subr.mxu0 0.0
      %2113 = vmatpush1.msra.mxu0 0.0
      %2114 = vmatprep.subr.mxu0 0.0
      %2115 = vmatpush1.msra.mxu0 0.0
      %2116 = vmatprep.subr.mxu0 0.0
      %2117 = vmatpush1.msra.mxu0 0.0
      %2118 = vmatprep.subr.mxu0 0.0
      %2119 = vmatpush1.msra.mxu0 0.0
      %2120 = vmatprep.subr.mxu0 0.0
      %2121 = vmatpush1.msra.mxu0 0.0
      %2122 = vmatprep.subr.mxu0 0.0
      %2123 = vmatpush1.msra.mxu0 0.0
      %2124 = vmatprep.subr.mxu0 0.0
      %2125 = vmatpush1.msra.mxu0 0.0
      %2126 = vmatprep.subr.mxu0 0.0
      %2127 = vmatpush1.msra.mxu0 0.0
      %2128 = vmatprep.subr.mxu0 0.0
      %2129 = vmatpush1.msra.mxu0 %v2098
      %2130 = vmatprep.subr.mxu0 0.0
      %2131 = vmatpush1.msra.mxu0 %v2088
      %2132 = vmatprep.subr.mxu0 0.0
      %2133 = vmatpush2.msra.mxu0 0.0
      %2134 = vmatprep.subr.mxu0 0.0
      %2135 = vmatpush2.msra.mxu0 0.0
      %2136 = vmatprep.subr.mxu0 0.0
      %2137 = vmatpush2.msra.mxu0 0.0
      %2138 = vmatprep.subr.mxu0 0.0
      %2139 = vmatpush2.msra.mxu0 0.0
      %2140 = vmatprep.subr.mxu0 0.0
      %2141 = vmatpush2.msra.mxu0 0.0
      %2142 = vmatprep.subr.mxu0 0.0
      %2143 = vmatpush2.msra.mxu0 0.0
      %2144 = vmatprep.subr.mxu0 0.0
      %2145 = vmatpush2.msra.mxu0 0.0
      %2146 = vmatprep.subr.mxu0 0.0
      %2147 = vmatpush2.msra.mxu0 0.0
      %2148 = vmatprep.subr.mxu0 0.0
      %2149 = vmatpush2.msra.mxu0 0.0
      %2150 = vmatprep.subr.mxu0 0.0
      %2151 = vmatpush2.msra.mxu0 0.0
      %2152 = vmatprep.subr.mxu0 0.0
      %2153 = vmatpush2.msra.mxu0 0.0
      %2154 = vmatprep.subr.mxu0 0.0
      %2155 = vmatpush2.msra.mxu0 0.0
      %2156 = vmatprep.subr.mxu0 0.0
      %2157 = vmatpush2.msra.mxu0 0.0
      %2158 = vmatprep.subr.mxu0 0.0
      %2159 = vmatpush2.msra.mxu0 0.0
      %2160 = vmatprep.subr.mxu0 0.0
      %2161 = vmatpush2.msra.mxu0 0.0
      %2162 = vmatprep.subr.mxu0 0.0
      %2163 = vmatpush2.msra.mxu0 0.0
      %2164 = vmatprep.mubr.f32.mxu0 0.0
      %2165 = vmatmul.mubr.f32.gmra.mxu0 %v2093
      %v2166 = vpop.f32.mrf.mxu0
      %v2167 = vadd.f32 0.0, %v2166
      %v2168 = vpop.f32.mrf.mxu0
      %2169 = vmatprep.mubr.f32.mxu0 0.0
      %2170 = vmatmul.mubr.f32.gmra.mxu0 %v2096
      %v2171 = vpop.f32.mrf.mxu0
      %v2172 = vadd.f32 0.0, %v2171
      %v2173 = vpop.f32.mrf.mxu0
      %2174 = vdwg.mxu0
      %2175 = vrot.lane.b32.xlu0 %v1772, 112
      %v2176 = vpop.permute.xlu0 %2175
      %2177 = vrot.lane.b32.xlu0 %v1771, 112
      %v2178 = vpop.permute.xlu0 %2177
      %2179 = vrot.lane.b32.xlu0 %v1776, 80
      %v2180 = vpop.permute.xlu0 %2179
      %2181 = vrot.lane.b32.xlu0 %v1775, 80
      %v2182 = vpop.permute.xlu0 %2181
      %v2183 = vsel %vm934, %v2176, 0
      %v2185 = vsel %vm934, %v2178, 0
      %v2187 = vsel %vm934, %v2180, 0
      %v2189 = vsel %vm934, %v2182, 0
      %2191 = vmatprep.subr.mxu0 0.0
      %2192 = vmatpush1.xpose.msra.mxu0 0.0
      %2193 = vmatprep.subr.mxu0 0.0
      %2194 = vmatpush1.xpose.msra.mxu0 0.0
      %2195 = vmatprep.subr.mxu0 0.0
      %2196 = vmatpush1.xpose.msra.mxu0 0.0
      %2197 = vmatprep.subr.mxu0 0.0
      %2198 = vmatpush1.xpose.msra.mxu0 0.0
      %2199 = vmatprep.subr.mxu0 0.0
      %2200 = vmatpush1.xpose.msra.mxu0 0.0
      %2201 = vmatprep.subr.mxu0 0.0
      %2202 = vmatpush1.xpose.msra.mxu0 0.0
      %2203 = vmatprep.subr.mxu0 0.0
      %2204 = vmatpush1.xpose.msra.mxu0 0.0
      %2205 = vmatprep.subr.mxu0 0.0
      %2206 = vmatpush1.xpose.msra.mxu0 0.0
      %2207 = vmatprep.subr.mxu0 0.0
      %2208 = vmatpush1.xpose.msra.mxu0 0.0
      %2209 = vmatprep.subr.mxu0 0.0
      %2210 = vmatpush1.xpose.msra.mxu0 0.0
      %2211 = vmatprep.subr.mxu0 0.0
      %2212 = vmatpush1.xpose.msra.mxu0 0.0
      %2213 = vmatprep.subr.mxu0 0.0
      %2214 = vmatpush1.xpose.msra.mxu0 0.0
      %2215 = vmatprep.subr.mxu0 0.0
      %2216 = vmatpush1.xpose.msra.mxu0 0.0
      %2217 = vmatprep.subr.mxu0 0.0
      %2218 = vmatpush1.xpose.msra.mxu0 0.0
      %2219 = vmatprep.subr.mxu0 0.0
      %2220 = vmatpush1.xpose.msra.mxu0 %v2189
      %2221 = vmatprep.subr.mxu0 0.0
      %2222 = vmatpush1.xpose.msra.mxu0 %v2187
      %2223 = vmatprep.subr.mxu0 0.0
      %2224 = vmatpush2.xpose.msra.mxu0 0.0
      %2225 = vmatprep.subr.mxu0 0.0
      %2226 = vmatpush2.xpose.msra.mxu0 0.0
      %2227 = vmatprep.subr.mxu0 0.0
      %2228 = vmatpush2.xpose.msra.mxu0 0.0
      %2229 = vmatprep.subr.mxu0 0.0
      %2230 = vmatpush2.xpose.msra.mxu0 0.0
      %2231 = vmatprep.subr.mxu0 0.0
      %2232 = vmatpush2.xpose.msra.mxu0 0.0
      %2233 = vmatprep.subr.mxu0 0.0
      %2234 = vmatpush2.xpose.msra.mxu0 0.0
      %2235 = vmatprep.subr.mxu0 0.0
      %2236 = vmatpush2.xpose.msra.mxu0 0.0
      %2237 = vmatprep.subr.mxu0 0.0
      %2238 = vmatpush2.xpose.msra.mxu0 0.0
      %2239 = vmatprep.subr.mxu0 0.0
      %2240 = vmatpush2.xpose.msra.mxu0 0.0
      %2241 = vmatprep.subr.mxu0 0.0
      %2242 = vmatpush2.xpose.msra.mxu0 0.0
      %2243 = vmatprep.subr.mxu0 0.0
      %2244 = vmatpush2.xpose.msra.mxu0 0.0
      %2245 = vmatprep.subr.mxu0 0.0
      %2246 = vmatpush2.xpose.msra.mxu0 0.0
      %2247 = vmatprep.subr.mxu0 0.0
      %2248 = vmatpush2.xpose.msra.mxu0 0.0
      %2249 = vmatprep.subr.mxu0 0.0
      %2250 = vmatpush2.xpose.msra.mxu0 0.0
      %2251 = vmatprep.subr.mxu0 0.0
      %2252 = vmatpush2.xpose.msra.mxu0 0.0
      %2253 = vmatprep.subr.mxu0 0.0
      %2254 = vmatpush2.xpose.msra.mxu0 0.0
      %2255 = vmatprep.mubr.f32.mxu0 0.0
      %2256 = vmatmul.mubr.f32.gmra.mxu0 %v2183
      %v2257 = vpop.f32.mrf.mxu0
      %v2258 = vadd.f32 0.0, %v2257
      %v2259 = vpop.f32.mrf.mxu0
      %2260 = vmatprep.mubr.f32.mxu0 0.0
      %2261 = vmatmul.mubr.f32.gmra.mxu0 %v2185
      %v2262 = vpop.f32.mrf.mxu0
      %v2263 = vadd.f32 0.0, %v2262
      %v2264 = vpop.f32.mrf.mxu0
      %2265 = vdwg.mxu0
      %v2266 = vsel %vm1020, %v2258, -inf
      %2267 = vmax.xlane.f32.xlu0 %v2266
      %v2268 = vpop.xlane.xlu0 %2267
      %v2269 = vsel %vm1024, %v2263, -inf
      %2270 = vmax.xlane.f32.xlu0 %v2269
      %v2271 = vpop.xlane.xlu0 %2270
      %v2272 = vsub.f32 %v2258, %v2268
      %v2273 = vsub.f32 %v2263, %v2271
      %v2274 = vmul.f32 %v2272, 1.442695
      %v2275 = vpow.pop %v2274
      %v2276 = vmul.f32 %v2273, 1.442695
      %v2277 = vpow.pop %v2276
      %v2278 = vsel %vm1020, %v2275, 0.0
      %2279 = vadd.xlane.f32.xlu0 %v2278
      %v2280 = vpop.xlane.xlu0 %2279
      %v2281 = vsel %vm1024, %v2277, 0.0
      %2282 = vadd.xlane.f32.xlu0 %v2281
      %v2283 = vpop.xlane.xlu0 %2282
      %v2284 = vrcp.pop %v2280
      %v2285 = vrcp.pop %v2283
      %v2286 = vmul.f32 %v2275, %v2284
      %v2287 = vmul.f32 %v2277, %v2285
      %2288 = vrot.lane.b32.xlu0 %v1776, 48
      %v2289 = vpop.permute.xlu0 %2288
      %2290 = vrot.lane.b32.xlu0 %v1775, 48
      %v2291 = vpop.permute.xlu0 %2290
      %v2294 = vsel %vm1020, %v2286, 0
      %v2297 = vsel %vm1020, %v2287, 0
      %v2299 = vsel %vm1055, %v2291, 0
      %2301 = vmatprep.subr.mxu0 0.0
      %2302 = vmatpush1.msra.mxu0 0.0
      %2303 = vmatprep.subr.mxu0 0.0
      %2304 = vmatpush1.msra.mxu0 0.0
      %2305 = vmatprep.subr.mxu0 0.0
      %2306 = vmatpush1.msra.mxu0 0.0
      %2307 = vmatprep.subr.mxu0 0.0
      %2308 = vmatpush1.msra.mxu0 0.0
      %2309 = vmatprep.subr.mxu0 0.0
      %2310 = vmatpush1.msra.mxu0 0.0
      %2311 = vmatprep.subr.mxu0 0.0
      %2312 = vmatpush1.msra.mxu0 0.0
      %2313 = vmatprep.subr.mxu0 0.0
      %2314 = vmatpush1.msra.mxu0 0.0
      %2315 = vmatprep.subr.mxu0 0.0
      %2316 = vmatpush1.msra.mxu0 0.0
      %2317 = vmatprep.subr.mxu0 0.0
      %2318 = vmatpush1.msra.mxu0 0.0
      %2319 = vmatprep.subr.mxu0 0.0
      %2320 = vmatpush1.msra.mxu0 0.0
      %2321 = vmatprep.subr.mxu0 0.0
      %2322 = vmatpush1.msra.mxu0 0.0
      %2323 = vmatprep.subr.mxu0 0.0
      %2324 = vmatpush1.msra.mxu0 0.0
      %2325 = vmatprep.subr.mxu0 0.0
      %2326 = vmatpush1.msra.mxu0 0.0
      %2327 = vmatprep.subr.mxu0 0.0
      %2328 = vmatpush1.msra.mxu0 0.0
      %2329 = vmatprep.subr.mxu0 0.0
      %2330 = vmatpush1.msra.mxu0 %v2299
      %2331 = vmatprep.subr.mxu0 0.0
      %2332 = vmatpush1.msra.mxu0 %v2289
      %2333 = vmatprep.subr.mxu0 0.0
      %2334 = vmatpush2.msra.mxu0 0.0
      %2335 = vmatprep.subr.mxu0 0.0
      %2336 = vmatpush2.msra.mxu0 0.0
      %2337 = vmatprep.subr.mxu0 0.0
      %2338 = vmatpush2.msra.mxu0 0.0
      %2339 = vmatprep.subr.mxu0 0.0
      %2340 = vmatpush2.msra.mxu0 0.0
      %2341 = vmatprep.subr.mxu0 0.0
      %2342 = vmatpush2.msra.mxu0 0.0
      %2343 = vmatprep.subr.mxu0 0.0
      %2344 = vmatpush2.msra.mxu0 0.0
      %2345 = vmatprep.subr.mxu0 0.0
      %2346 = vmatpush2.msra.mxu0 0.0
      %2347 = vmatprep.subr.mxu0 0.0
      %2348 = vmatpush2.msra.mxu0 0.0
      %2349 = vmatprep.subr.mxu0 0.0
      %2350 = vmatpush2.msra.mxu0 0.0
      %2351 = vmatprep.subr.mxu0 0.0
      %2352 = vmatpush2.msra.mxu0 0.0
      %2353 = vmatprep.subr.mxu0 0.0
      %2354 = vmatpush2.msra.mxu0 0.0
      %2355 = vmatprep.subr.mxu0 0.0
      %2356 = vmatpush2.msra.mxu0 0.0
      %2357 = vmatprep.subr.mxu0 0.0
      %2358 = vmatpush2.msra.mxu0 0.0
      %2359 = vmatprep.subr.mxu0 0.0
      %2360 = vmatpush2.msra.mxu0 0.0
      %2361 = vmatprep.subr.mxu0 0.0
      %2362 = vmatpush2.msra.mxu0 0.0
      %2363 = vmatprep.subr.mxu0 0.0
      %2364 = vmatpush2.msra.mxu0 0.0
      %2365 = vmatprep.mubr.f32.mxu0 0.0
      %2366 = vmatmul.mubr.f32.gmra.mxu0 %v2294
      %v2367 = vpop.f32.mrf.mxu0
      %v2368 = vadd.f32 0.0, %v2367
      %v2369 = vpop.f32.mrf.mxu0
      %2370 = vmatprep.mubr.f32.mxu0 0.0
      %2371 = vmatmul.mubr.f32.gmra.mxu0 %v2297
      %v2372 = vpop.f32.mrf.mxu0
      %v2373 = vadd.f32 0.0, %v2372
      %v2374 = vpop.f32.mrf.mxu0
      %2375 = vdwg.mxu0
      %2376 = vrot.lane.b32.xlu0 %v1772, 104
      %v2377 = vpop.permute.xlu0 %2376
      %2378 = vrot.lane.b32.xlu0 %v1771, 104
      %v2379 = vpop.permute.xlu0 %2378
      %2380 = vrot.lane.b32.xlu0 %v1776, 72
      %v2381 = vpop.permute.xlu0 %2380
      %2382 = vrot.lane.b32.xlu0 %v1775, 72
      %v2383 = vpop.permute.xlu0 %2382
      %v2384 = vsel %vm934, %v2377, 0
      %v2386 = vsel %vm934, %v2379, 0
      %v2388 = vsel %vm934, %v2381, 0
      %v2390 = vsel %vm934, %v2383, 0
      %2392 = vmatprep.subr.mxu0 0.0
      %2393 = vmatpush1.xpose.msra.mxu0 0.0
      %2394 = vmatprep.subr.mxu0 0.0
      %2395 = vmatpush1.xpose.msra.mxu0 0.0
      %2396 = vmatprep.subr.mxu0 0.0
      %2397 = vmatpush1.xpose.msra.mxu0 0.0
      %2398 = vmatprep.subr.mxu0 0.0
      %2399 = vmatpush1.xpose.msra.mxu0 0.0
      %2400 = vmatprep.subr.mxu0 0.0
      %2401 = vmatpush1.xpose.msra.mxu0 0.0
      %2402 = vmatprep.subr.mxu0 0.0
      %2403 = vmatpush1.xpose.msra.mxu0 0.0
      %2404 = vmatprep.subr.mxu0 0.0
      %2405 = vmatpush1.xpose.msra.mxu0 0.0
      %2406 = vmatprep.subr.mxu0 0.0
      %2407 = vmatpush1.xpose.msra.mxu0 0.0
      %2408 = vmatprep.subr.mxu0 0.0
      %2409 = vmatpush1.xpose.msra.mxu0 0.0
      %2410 = vmatprep.subr.mxu0 0.0
      %2411 = vmatpush1.xpose.msra.mxu0 0.0
      %2412 = vmatprep.subr.mxu0 0.0
      %2413 = vmatpush1.xpose.msra.mxu0 0.0
      %2414 = vmatprep.subr.mxu0 0.0
      %2415 = vmatpush1.xpose.msra.mxu0 0.0
      %2416 = vmatprep.subr.mxu0 0.0
      %2417 = vmatpush1.xpose.msra.mxu0 0.0
      %2418 = vmatprep.subr.mxu0 0.0
      %2419 = vmatpush1.xpose.msra.mxu0 0.0
      %2420 = vmatprep.subr.mxu0 0.0
      %2421 = vmatpush1.xpose.msra.mxu0 %v2390
      %2422 = vmatprep.subr.mxu0 0.0
      %2423 = vmatpush1.xpose.msra.mxu0 %v2388
      %2424 = vmatprep.subr.mxu0 0.0
      %2425 = vmatpush2.xpose.msra.mxu0 0.0
      %2426 = vmatprep.subr.mxu0 0.0
      %2427 = vmatpush2.xpose.msra.mxu0 0.0
      %2428 = vmatprep.subr.mxu0 0.0
      %2429 = vmatpush2.xpose.msra.mxu0 0.0
      %2430 = vmatprep.subr.mxu0 0.0
      %2431 = vmatpush2.xpose.msra.mxu0 0.0
      %2432 = vmatprep.subr.mxu0 0.0
      %2433 = vmatpush2.xpose.msra.mxu0 0.0
      %2434 = vmatprep.subr.mxu0 0.0
      %2435 = vmatpush2.xpose.msra.mxu0 0.0
      %2436 = vmatprep.subr.mxu0 0.0
      %2437 = vmatpush2.xpose.msra.mxu0 0.0
      %2438 = vmatprep.subr.mxu0 0.0
      %2439 = vmatpush2.xpose.msra.mxu0 0.0
      %2440 = vmatprep.subr.mxu0 0.0
      %2441 = vmatpush2.xpose.msra.mxu0 0.0
      %2442 = vmatprep.subr.mxu0 0.0
      %2443 = vmatpush2.xpose.msra.mxu0 0.0
      %2444 = vmatprep.subr.mxu0 0.0
      %2445 = vmatpush2.xpose.msra.mxu0 0.0
      %2446 = vmatprep.subr.mxu0 0.0
      %2447 = vmatpush2.xpose.msra.mxu0 0.0
      %2448 = vmatprep.subr.mxu0 0.0
      %2449 = vmatpush2.xpose.msra.mxu0 0.0
      %2450 = vmatprep.subr.mxu0 0.0
      %2451 = vmatpush2.xpose.msra.mxu0 0.0
      %2452 = vmatprep.subr.mxu0 0.0
      %2453 = vmatpush2.xpose.msra.mxu0 0.0
      %2454 = vmatprep.subr.mxu0 0.0
      %2455 = vmatpush2.xpose.msra.mxu0 0.0
      %2456 = vmatprep.mubr.f32.mxu0 0.0
      %2457 = vmatmul.mubr.f32.gmra.mxu0 %v2384
      %v2458 = vpop.f32.mrf.mxu0
      %v2459 = vadd.f32 0.0, %v2458
      %v2460 = vpop.f32.mrf.mxu0
      %2461 = vmatprep.mubr.f32.mxu0 0.0
      %2462 = vmatmul.mubr.f32.gmra.mxu0 %v2386
      %v2463 = vpop.f32.mrf.mxu0
      %v2464 = vadd.f32 0.0, %v2463
      %v2465 = vpop.f32.mrf.mxu0
      %2466 = vdwg.mxu0
      %v2467 = vsel %vm1020, %v2459, -inf
      %2468 = vmax.xlane.f32.xlu0 %v2467
      %v2469 = vpop.xlane.xlu0 %2468
      %v2470 = vsel %vm1024, %v2464, -inf
      %2471 = vmax.xlane.f32.xlu0 %v2470
      %v2472 = vpop.xlane.xlu0 %2471
      %v2473 = vsub.f32 %v2459, %v2469
      %v2474 = vsub.f32 %v2464, %v2472
      %v2475 = vmul.f32 %v2473, 1.442695
      %v2476 = vpow.pop %v2475
      %v2477 = vmul.f32 %v2474, 1.442695
      %v2478 = vpow.pop %v2477
      %v2479 = vsel %vm1020, %v2476, 0.0
      %2480 = vadd.xlane.f32.xlu0 %v2479
      %v2481 = vpop.xlane.xlu0 %2480
      %v2482 = vsel %vm1024, %v2478, 0.0
      %2483 = vadd.xlane.f32.xlu0 %v2482
      %v2484 = vpop.xlane.xlu0 %2483
      %v2485 = vrcp.pop %v2481
      %v2486 = vrcp.pop %v2484
      %v2487 = vmul.f32 %v2476, %v2485
      %v2488 = vmul.f32 %v2478, %v2486
      %2489 = vrot.lane.b32.xlu0 %v1776, 40
      %v2490 = vpop.permute.xlu0 %2489
      %2491 = vrot.lane.b32.xlu0 %v1775, 40
      %v2492 = vpop.permute.xlu0 %2491
      %v2495 = vsel %vm1020, %v2487, 0
      %v2498 = vsel %vm1020, %v2488, 0
      %v2500 = vsel %vm1055, %v2492, 0
      %2502 = vmatprep.subr.mxu0 0.0
      %2503 = vmatpush1.msra.mxu0 0.0
      %2504 = vmatprep.subr.mxu0 0.0
      %2505 = vmatpush1.msra.mxu0 0.0
      %2506 = vmatprep.subr.mxu0 0.0
      %2507 = vmatpush1.msra.mxu0 0.0
      %2508 = vmatprep.subr.mxu0 0.0
      %2509 = vmatpush1.msra.mxu0 0.0
      %2510 = vmatprep.subr.mxu0 0.0
      %2511 = vmatpush1.msra.mxu0 0.0
      %2512 = vmatprep.subr.mxu0 0.0
      %2513 = vmatpush1.msra.mxu0 0.0
      %2514 = vmatprep.subr.mxu0 0.0
      %2515 = vmatpush1.msra.mxu0 0.0
      %2516 = vmatprep.subr.mxu0 0.0
      %2517 = vmatpush1.msra.mxu0 0.0
      %2518 = vmatprep.subr.mxu0 0.0
      %2519 = vmatpush1.msra.mxu0 0.0
      %2520 = vmatprep.subr.mxu0 0.0
      %2521 = vmatpush1.msra.mxu0 0.0
      %2522 = vmatprep.subr.mxu0 0.0
      %2523 = vmatpush1.msra.mxu0 0.0
      %2524 = vmatprep.subr.mxu0 0.0
      %2525 = vmatpush1.msra.mxu0 0.0
      %2526 = vmatprep.subr.mxu0 0.0
      %2527 = vmatpush1.msra.mxu0 0.0
      %2528 = vmatprep.subr.mxu0 0.0
      %2529 = vmatpush1.msra.mxu0 0.0
      %2530 = vmatprep.subr.mxu0 0.0
      %2531 = vmatpush1.msra.mxu0 %v2500
      %2532 = vmatprep.subr.mxu0 0.0
      %2533 = vmatpush1.msra.mxu0 %v2490
      %2534 = vmatprep.subr.mxu0 0.0
      %2535 = vmatpush2.msra.mxu0 0.0
      %2536 = vmatprep.subr.mxu0 0.0
      %2537 = vmatpush2.msra.mxu0 0.0
      %2538 = vmatprep.subr.mxu0 0.0
      %2539 = vmatpush2.msra.mxu0 0.0
      %2540 = vmatprep.subr.mxu0 0.0
      %2541 = vmatpush2.msra.mxu0 0.0
      %2542 = vmatprep.subr.mxu0 0.0
      %2543 = vmatpush2.msra.mxu0 0.0
      %2544 = vmatprep.subr.mxu0 0.0
      %2545 = vmatpush2.msra.mxu0 0.0
      %2546 = vmatprep.subr.mxu0 0.0
      %2547 = vmatpush2.msra.mxu0 0.0
      %2548 = vmatprep.subr.mxu0 0.0
      %2549 = vmatpush2.msra.mxu0 0.0
      %2550 = vmatprep.subr.mxu0 0.0
      %2551 = vmatpush2.msra.mxu0 0.0
      %2552 = vmatprep.subr.mxu0 0.0
      %2553 = vmatpush2.msra.mxu0 0.0
      %2554 = vmatprep.subr.mxu0 0.0
      %2555 = vmatpush2.msra.mxu0 0.0
      %2556 = vmatprep.subr.mxu0 0.0
      %2557 = vmatpush2.msra.mxu0 0.0
      %2558 = vmatprep.subr.mxu0 0.0
      %2559 = vmatpush2.msra.mxu0 0.0
      %2560 = vmatprep.subr.mxu0 0.0
      %2561 = vmatpush2.msra.mxu0 0.0
      %2562 = vmatprep.subr.mxu0 0.0
      %2563 = vmatpush2.msra.mxu0 0.0
      %2564 = vmatprep.subr.mxu0 0.0
      %2565 = vmatpush2.msra.mxu0 0.0
      %2566 = vmatprep.mubr.f32.mxu0 0.0
      %2567 = vmatmul.mubr.f32.gmra.mxu0 %v2495
      %v2568 = vpop.f32.mrf.mxu0
      %v2569 = vadd.f32 0.0, %v2568
      %v2570 = vpop.f32.mrf.mxu0
      %2571 = vmatprep.mubr.f32.mxu0 0.0
      %2572 = vmatmul.mubr.f32.gmra.mxu0 %v2498
      %v2573 = vpop.f32.mrf.mxu0
      %v2574 = vadd.f32 0.0, %v2573
      %v2575 = vpop.f32.mrf.mxu0
      %2576 = vdwg.mxu0
      %2579 = vrot.lane.b32.xlu0 %v2167, 8
      %v2580 = vpop.permute.xlu0 %2579
      %2581 = vrot.lane.b32.xlu0 %v2172, 8
      %v2582 = vpop.permute.xlu0 %2581
      %2587 = vrot.lane.b32.xlu0 %v2368, 16
      %v2588 = vpop.permute.xlu0 %2587
      %2589 = vrot.lane.b32.xlu0 %v2373, 16
      %v2590 = vpop.permute.xlu0 %2589
      %2595 = vrot.lane.b32.xlu0 %v2569, 24
      %v2596 = vpop.permute.xlu0 %2595
      %2597 = vrot.lane.b32.xlu0 %v2574, 24
      %v2598 = vpop.permute.xlu0 %2597
      %v2601 = vsel %vm934, %v1966, %v2580
      %v2602 = vsel %vm934, %v1971, %v2582
      %v2603 = vsel %vm1762, %v2601, %v2588
      %v2604 = vsel %vm1762, %v2602, %v2590
      %v2605 = vsel %vm1765, %v2603, %v2596
      %v2606 = vsel %vm1765, %v2604, %v2598
      %v2609 = vrot.slane %v2605, 7
      %v2610 = vrot.slane %v2606, 7
      %v2611 = vsel %vm1055, %v2609, %v2610
      %v2613 = vsel %vm1055, %v1767, %v2609
      %v2614 = vld [vmem:[%s676] sm:$0xff]
      %v2615 = vld [vmem:[%s676 + $0x8] sm:$0xff]
      %v2616 = vld [vmem:[%s676 + $0x10] sm:$0xff]
      %v2617 = vld [vmem:[%s676 + $0x18] sm:$0xff]
      %v2618 = vld [vmem:[%s679] sm:$0x1]
      %v2620 = vlaneseq
      %v2621 = vshrl.u32 %v2620, 7
      %v2622 = vsub.s32 0, %v2621
      %v2623 = vrot.slane %v2618, %v2622
      %v2626 = vsel %vm835, %v1766, 0
      %v2629 = vsel %vm835, %v2613, 0
      %v2631 = vsel %vm835, %v2611, 0
      %2633 = vmatprep.subr.mxu0 0.0
      %2634 = vmatpush1.msra.mxu0 0.0
      %2635 = vmatprep.subr.mxu0 0.0
      %2636 = vmatpush1.msra.mxu0 0.0
      %2637 = vmatprep.subr.mxu0 0.0
      %2638 = vmatpush1.msra.mxu0 0.0
      %2639 = vmatprep.subr.mxu0 0.0
      %2640 = vmatpush1.msra.mxu0 0.0
      %2641 = vmatprep.subr.mxu0 0.0
      %2642 = vmatpush1.msra.mxu0 0.0
      %2643 = vmatprep.subr.mxu0 0.0
      %2644 = vmatpush1.msra.mxu0 0.0
      %2645 = vmatprep.subr.mxu0 0.0
      %2646 = vmatpush1.msra.mxu0 0.0
      %2647 = vmatprep.subr.mxu0 0.0
      %2648 = vmatpush1.msra.mxu0 0.0
      %2649 = vmatprep.subr.mxu0 0.0
      %2650 = vmatpush1.msra.mxu0 0.0
      %2651 = vmatprep.subr.mxu0 0.0
      %2652 = vmatpush1.msra.mxu0 0.0
      %2653 = vmatprep.subr.mxu0 0.0
      %2654 = vmatpush1.msra.mxu0 0.0
      %2655 = vmatprep.subr.mxu0 0.0
      %2656 = vmatpush1.msra.mxu0 0.0
      %2657 = vmatprep.subr.mxu0 0.0
      %2658 = vmatpush1.msra.mxu0 %v2617
      %2659 = vmatprep.subr.mxu0 0.0
      %2660 = vmatpush1.msra.mxu0 %v2616
      %2661 = vmatprep.subr.mxu0 0.0
      %2662 = vmatpush1.msra.mxu0 %v2615
      %2663 = vmatprep.subr.mxu0 0.0
      %2664 = vmatpush1.msra.mxu0 %v2614
      %2665 = vmatprep.subr.mxu0 0.0
      %2666 = vmatpush2.msra.mxu0 0.0
      %2667 = vmatprep.subr.mxu0 0.0
      %2668 = vmatpush2.msra.mxu0 0.0
      %2669 = vmatprep.subr.mxu0 0.0
      %2670 = vmatpush2.msra.mxu0 0.0
      %2671 = vmatprep.subr.mxu0 0.0
      %2672 = vmatpush2.msra.mxu0 0.0
      %2673 = vmatprep.subr.mxu0 0.0
      %2674 = vmatpush2.msra.mxu0 0.0
      %2675 = vmatprep.subr.mxu0 0.0
      %2676 = vmatpush2.msra.mxu0 0.0
      %2677 = vmatprep.subr.mxu0 0.0
      %2678 = vmatpush2.msra.mxu0 0.0
      %2679 = vmatprep.subr.mxu0 0.0
      %2680 = vmatpush2.msra.mxu0 0.0
      %2681 = vmatprep.subr.mxu0 0.0
      %2682 = vmatpush2.msra.mxu0 0.0
      %2683 = vmatprep.subr.mxu0 0.0
      %2684 = vmatpush2.msra.mxu0 0.0
      %2685 = vmatprep.subr.mxu0 0.0
      %2686 = vmatpush2.msra.mxu0 0.0
      %2687 = vmatprep.subr.mxu0 0.0
      %2688 = vmatpush2.msra.mxu0 0.0
      %2689 = vmatprep.subr.mxu0 0.0
      %2690 = vmatpush2.msra.mxu0 0.0
      %2691 = vmatprep.subr.mxu0 0.0
      %2692 = vmatpush2.msra.mxu0 0.0
      %2693 = vmatprep.subr.mxu0 0.0
      %2694 = vmatpush2.msra.mxu0 0.0
      %2695 = vmatprep.subr.mxu0 0.0
      %2696 = vmatpush2.msra.mxu0 0.0
      %2697 = vmatprep.mubr.f32.mxu0 0.0
      %2698 = vmatmul.mubr.f32.gmra.mxu0 %v2626
      %v2699 = vpop.f32.mrf.mxu0
      %v2700 = vadd.f32 %v2623, %v2699
      %v2701 = vpop.f32.mrf.mxu0
      %2702 = vmatprep.mubr.f32.mxu0 0.0
      %2703 = vmatmul.mubr.f32.gmra.mxu0 %v2629
      %v2704 = vpop.f32.mrf.mxu0
      %v2705 = vadd.f32 %v2623, %v2704
      %v2706 = vpop.f32.mrf.mxu0
      %2707 = vmatprep.mubr.f32.mxu0 0.0
      %2708 = vmatmul.mubr.f32.gmra.mxu0 %v2631
      %v2709 = vpop.f32.mrf.mxu0
      %v2710 = vadd.f32 %v2623, %v2709
      %v2711 = vpop.f32.mrf.mxu0
      %2712 = vdwg.mxu0
      %v2713 = vadd.f32 %v821, %v2700
      %v2714 = vadd.f32 %v822, %v2705
      %v2715 = vadd.f32 %v823, %v2710
      %v2716 = vld [vmem:[%s682] sm:$0x1]
      %v2717 = vld [vmem:[%s685] sm:$0x1]
      %v2718 = vsel %vm835, %v2713, 0.0
      %2719 = vadd.xlane.f32.xlu0 %v2718
      %v2720 = vpop.xlane.xlu0 %2719
      %v2721 = vsel %vm835, %v2714, 0.0
      %2722 = vadd.xlane.f32.xlu0 %v2721
      %v2723 = vpop.xlane.xlu0 %2722
      %vm2724 = vcmask 254976
      %v2725 = vsel %vm2724, %v2715, 0.0
      %2726 = vadd.xlane.f32.xlu0 %v2725
      %v2727 = vpop.xlane.xlu0 %2726
      %v2728 = vrcp.pop 32.0
      %v2729 = vmul.f32 %v2720, %v2728
      %v2730 = vmul.f32 %v2723, %v2728
      %v2731 = vmul.f32 %v2727, %v2728
      %v2732 = vsub.f32 %v2713, %v2729
      %v2733 = vsub.f32 %v2714, %v2730
      %v2734 = vsub.f32 %v2715, %v2731
      %v2735 = vmul.f32 %v2732, %v2732
      %v2736 = vmul.f32 %v2733, %v2733
      %v2737 = vmul.f32 %v2734, %v2734
      %v2738 = vsel %vm835, %v2735, 0.0
      %2739 = vadd.xlane.f32.xlu0 %v2738
      %v2740 = vpop.xlane.xlu0 %2739
      %v2741 = vsel %vm835, %v2736, 0.0
      %2742 = vadd.xlane.f32.xlu0 %v2741
      %v2743 = vpop.xlane.xlu0 %2742
      %v2744 = vsel %vm2724, %v2737, 0.0
      %2745 = vadd.xlane.f32.xlu0 %v2744
      %v2746 = vpop.xlane.xlu0 %2745
      %v2747 = vmul.f32 %v2740, %v2728
      %v2748 = vmul.f32 %v2743, %v2728
      %v2749 = vmul.f32 %v2746, %v2728
      %v2750 = vadd.f32 %v2747, 1e-05
      %v2751 = vadd.f32 %v2748, 1e-05
      %v2752 = vadd.f32 %v2749, 1e-05
      %v2753 = vrsqrt.pop %v2750
      %v2754 = vrsqrt.pop %v2751
      %v2755 = vrsqrt.pop %v2752
      %v2756 = vmul.f32 %v2732, %v2753
      %v2757 = vmul.f32 %v2733, %v2754
      %v2758 = vmul.f32 %v2734, %v2755
      %v2760 = vlaneseq
      %v2761 = vshrl.u32 %v2760, 7
      %v2762 = vsub.s32 0, %v2761
      %v2763 = vrot.slane %v2716, %v2762
      %v2765 = vmul.f32 %v2756, %v2763
      %v2766 = vmul.f32 %v2757, %v2763
      %v2767 = vmul.f32 %v2758, %v2763
      %v2769 = vlaneseq
      %v2770 = vshrl.u32 %v2769, 7
      %v2771 = vsub.s32 0, %v2770
      %v2772 = vrot.slane %v2717, %v2771
      %v2774 = vadd.f32 %v2765, %v2772
      %v2775 = vadd.f32 %v2766, %v2772
      %v2776 = vadd.f32 %v2767, %v2772
      %v2777 = vld [vmem:[%s690] sm:$0xff]
      %v2778 = vld [vmem:[%s690 + $0x8] sm:$0xff]
      %v2779 = vld [vmem:[%s690 + $0x10] sm:$0xff]
      %v2780 = vld [vmem:[%s690 + $0x18] sm:$0xff]
      %v2781 = vld [vmem:[%s693] sm:$0x1]
      %v2783 = vlaneseq
      %v2784 = vshrl.u32 %v2783, 7
      %v2785 = vsub.s32 0, %v2784
      %v2786 = vrot.slane %v2781, %v2785
      %v2789 = vsel %vm835, %v2774, 0
      %v2792 = vsel %vm835, %v2775, 0
      %v2795 = vsel %vm835, %v2776, 0
      %2797 = vmatprep.subr.mxu0 0.0
      %2798 = vmatpush1.msra.mxu0 0.0
      %2799 = vmatprep.subr.mxu0 0.0
      %2800 = vmatpush1.msra.mxu0 0.0
      %2801 = vmatprep.subr.mxu0 0.0
      %2802 = vmatpush1.msra.mxu0 0.0
      %2803 = vmatprep.subr.mxu0 0.0
      %2804 = vmatpush1.msra.mxu0 0.0
      %2805 = vmatprep.subr.mxu0 0.0
      %2806 = vmatpush1.msra.mxu0 0.0
      %2807 = vmatprep.subr.mxu0 0.0
      %2808 = vmatpush1.msra.mxu0 0.0
      %2809 = vmatprep.subr.mxu0 0.0
      %2810 = vmatpush1.msra.mxu0 0.0
      %2811 = vmatprep.subr.mxu0 0.0
      %2812 = vmatpush1.msra.mxu0 0.0
      %2813 = vmatprep.subr.mxu0 0.0
      %2814 = vmatpush1.msra.mxu0 0.0
      %2815 = vmatprep.subr.mxu0 0.0
      %2816 = vmatpush1.msra.mxu0 0.0
      %2817 = vmatprep.subr.mxu0 0.0
      %2818 = vmatpush1.msra.mxu0 0.0
      %2819 = vmatprep.subr.mxu0 0.0
      %2820 = vmatpush1.msra.mxu0 0.0
      %2821 = vmatprep.subr.mxu0 0.0
      %2822 = vmatpush1.msra.mxu0 %v2780
      %2823 = vmatprep.subr.mxu0 0.0
      %2824 = vmatpush1.msra.mxu0 %v2779
      %2825 = vmatprep.subr.mxu0 0.0
      %2826 = vmatpush1.msra.mxu0 %v2778
      %2827 = vmatprep.subr.mxu0 0.0
      %2828 = vmatpush1.msra.mxu0 %v2777
      %2829 = vmatprep.subr.mxu0 0.0
      %2830 = vmatpush2.msra.mxu0 0.0
      %2831 = vmatprep.subr.mxu0 0.0
      %2832 = vmatpush2.msra.mxu0 0.0
      %2833 = vmatprep.subr.mxu0 0.0
      %2834 = vmatpush2.msra.mxu0 0.0
      %2835 = vmatprep.subr.mxu0 0.0
      %2836 = vmatpush2.msra.mxu0 0.0
      %2837 = vmatprep.subr.mxu0 0.0
      %2838 = vmatpush2.msra.mxu0 0.0
      %2839 = vmatprep.subr.mxu0 0.0
      %2840 = vmatpush2.msra.mxu0 0.0
      %2841 = vmatprep.subr.mxu0 0.0
      %2842 = vmatpush2.msra.mxu0 0.0
      %2843 = vmatprep.subr.mxu0 0.0
      %2844 = vmatpush2.msra.mxu0 0.0
      %2845 = vmatprep.subr.mxu0 0.0
      %2846 = vmatpush2.msra.mxu0 0.0
      %2847 = vmatprep.subr.mxu0 0.0
      %2848 = vmatpush2.msra.mxu0 0.0
      %2849 = vmatprep.subr.mxu0 0.0
      %2850 = vmatpush2.msra.mxu0 0.0
      %2851 = vmatprep.subr.mxu0 0.0
      %2852 = vmatpush2.msra.mxu0 0.0
      %2853 = vmatprep.subr.mxu0 0.0
      %2854 = vmatpush2.msra.mxu0 0.0
      %2855 = vmatprep.subr.mxu0 0.0
      %2856 = vmatpush2.msra.mxu0 0.0
      %2857 = vmatprep.subr.mxu0 0.0
      %2858 = vmatpush2.msra.mxu0 0.0
      %2859 = vmatprep.subr.mxu0 0.0
      %2860 = vmatpush2.msra.mxu0 0.0
      %2861 = vmatprep.mubr.f32.mxu0 0.0
      %2862 = vmatmul.mubr.f32.gmra.mxu0 %v2789
      %v2863 = vpop.f32.mrf.mxu0
      %v2864 = vadd.f32 %v2786, %v2863
      %v2865 = vpop.f32.mrf.mxu0
      %2866 = vmatprep.mubr.f32.mxu0 0.0
      %2867 = vmatmul.mubr.f32.gmra.mxu0 %v2792
      %v2868 = vpop.f32.mrf.mxu0
      %v2869 = vadd.f32 %v2786, %v2868
      %v2870 = vpop.f32.mrf.mxu0
      %2871 = vmatprep.mubr.f32.mxu0 0.0
      %2872 = vmatmul.mubr.f32.gmra.mxu0 %v2795
      %v2873 = vpop.f32.mrf.mxu0
      %v2874 = vadd.f32 %v2786, %v2873
      %v2875 = vpop.f32.mrf.mxu0
      %2876 = vdwg.mxu0
      %v2877 = vmax.f32 %v2864, 0.0
      %v2878 = vmax.f32 %v2869, 0.0
      %v2879 = vmax.f32 %v2874, 0.0
      %v2880 = vld [vmem:[%s698] sm:$0xff]
      %v2881 = vld [vmem:[%s698 + $0x8] sm:$0xff]
      %v2882 = vld [vmem:[%s698 + $0x10] sm:$0xff]
      %v2883 = vld [vmem:[%s698 + $0x18] sm:$0xff]
      %v2884 = vld [vmem:[%s698 + $0x20] sm:$0xff]
      %v2885 = vld [vmem:[%s698 + $0x28] sm:$0xff]
      %v2886 = vld [vmem:[%s698 + $0x30] sm:$0xff]
      %v2887 = vld [vmem:[%s698 + $0x38] sm:$0xff]
      %v2888 = vld [vmem:[%s701] sm:$0x1]
      %v2890 = vlaneseq
      %v2891 = vshrl.u32 %v2890, 7
      %v2892 = vsub.s32 0, %v2891
      %v2893 = vrot.slane %v2888, %v2892
      %vm2895 = vcmask 523264
      %v2897 = vsel %vm2895, %v2877, 0
      %v2900 = vsel %vm2895, %v2878, 0
      %v2903 = vsel %vm2895, %v2879, 0
      %2905 = vmatprep.subr.mxu0 0.0
      %2906 = vmatpush1.msra.mxu0 0.0
      %2907 = vmatprep.subr.mxu0 0.0
      %2908 = vmatpush1.msra.mxu0 0.0
      %2909 = vmatprep.subr.mxu0 0.0
      %2910 = vmatpush1.msra.mxu0 0.0
      %2911 = vmatprep.subr.mxu0 0.0
      %2912 = vmatpush1.msra.mxu0 0.0
      %2913 = vmatprep.subr.mxu0 0.0
      %2914 = vmatpush1.msra.mxu0 0.0
      %2915 = vmatprep.subr.mxu0 0.0
      %2916 = vmatpush1.msra.mxu0 0.0
      %2917 = vmatprep.subr.mxu0 0.0
      %2918 = vmatpush1.msra.mxu0 0.0
      %2919 = vmatprep.subr.mxu0 0.0
      %2920 = vmatpush1.msra.mxu0 0.0
      %2921 = vmatprep.subr.mxu0 0.0
      %2922 = vmatpush1.msra.mxu0 %v2887
      %2923 = vmatprep.subr.mxu0 0.0
      %2924 = vmatpush1.msra.mxu0 %v2886
      %2925 = vmatprep.subr.mxu0 0.0
      %2926 = vmatpush1.msra.mxu0 %v2885
      %2927 = vmatprep.subr.mxu0 0.0
      %2928 = vmatpush1.msra.mxu0 %v2884
      %2929 = vmatprep.subr.mxu0 0.0
      %2930 = vmatpush1.msra.mxu0 %v2883
      %2931 = vmatprep.subr.mxu0 0.0
      %2932 = vmatpush1.msra.mxu0 %v2882
      %2933 = vmatprep.subr.mxu0 0.0
      %2934 = vmatpush1.msra.mxu0 %v2881
      %2935 = vmatprep.subr.mxu0 0.0
      %2936 = vmatpush1.msra.mxu0 %v2880
      %2937 = vmatprep.subr.mxu0 0.0
      %2938 = vmatpush2.msra.mxu0 0.0
      %2939 = vmatprep.subr.mxu0 0.0
      %2940 = vmatpush2.msra.mxu0 0.0
      %2941 = vmatprep.subr.mxu0 0.0
      %2942 = vmatpush2.msra.mxu0 0.0
      %2943 = vmatprep.subr.mxu0 0.0
      %2944 = vmatpush2.msra.mxu0 0.0
      %2945 = vmatprep.subr.mxu0 0.0
      %2946 = vmatpush2.msra.mxu0 0.0
      %2947 = vmatprep.subr.mxu0 0.0
      %2948 = vmatpush2.msra.mxu0 0.0
      %2949 = vmatprep.subr.mxu0 0.0
      %2950 = vmatpush2.msra.mxu0 0.0
      %2951 = vmatprep.subr.mxu0 0.0
      %2952 = vmatpush2.msra.mxu0 0.0
      %2953 = vmatprep.subr.mxu0 0.0
      %2954 = vmatpush2.msra.mxu0 0.0
      %2955 = vmatprep.subr.mxu0 0.0
      %2956 = vmatpush2.msra.mxu0 0.0
      %2957 = vmatprep.subr.mxu0 0.0
      %2958 = vmatpush2.msra.mxu0 0.0
      %2959 = vmatprep.subr.mxu0 0.0
      %2960 = vmatpush2.msra.mxu0 0.0
      %2961 = vmatprep.subr.mxu0 0.0
      %2962 = vmatpush2.msra.mxu0 0.0
      %2963 = vmatprep.subr.mxu0 0.0
      %2964 = vmatpush2.msra.mxu0 0.0
      %2965 = vmatprep.subr.mxu0 0.0
      %2966 = vmatpush2.msra.mxu0 0.0
      %2967 = vmatprep.subr.mxu0 0.0
      %2968 = vmatpush2.msra.mxu0 0.0
      %2969 = vmatprep.mubr.f32.mxu0 0.0
      %2970 = vmatmul.mubr.f32.gmra.mxu0 %v2897
      %v2971 = vpop.f32.mrf.mxu0
      %v2972 = vadd.f32 %v2893, %v2971
      %v2973 = vpop.f32.mrf.mxu0
      %2974 = vmatprep.mubr.f32.mxu0 0.0
      %2975 = vmatmul.mubr.f32.gmra.mxu0 %v2900
      %v2976 = vpop.f32.mrf.mxu0
      %v2977 = vadd.f32 %v2893, %v2976
      %v2978 = vpop.f32.mrf.mxu0
      %2979 = vmatprep.mubr.f32.mxu0 0.0
      %2980 = vmatmul.mubr.f32.gmra.mxu0 %v2903
      %v2981 = vpop.f32.mrf.mxu0
      %v2982 = vadd.f32 %v2893, %v2981
      %v2983 = vpop.f32.mrf.mxu0
      %2984 = vdwg.mxu0
      %v2985 = vadd.f32 %v2774, %v2972
      %v2986 = vadd.f32 %v2775, %v2977
      %v2987 = vadd.f32 %v2776, %v2982
      %v2988 = vld [vmem:[%s704] sm:$0x1]
      %v2989 = vld [vmem:[%s707] sm:$0x1]
      %v2990 = vsel %vm835, %v2985, 0.0
      %2991 = vadd.xlane.f32.xlu0 %v2990
      %v2992 = vpop.xlane.xlu0 %2991
      %v2993 = vsel %vm835, %v2986, 0.0
      %2994 = vadd.xlane.f32.xlu0 %v2993
      %v2995 = vpop.xlane.xlu0 %2994
      %v2996 = vsel %vm2724, %v2987, 0.0
      %2997 = vadd.xlane.f32.xlu0 %v2996
      %v2998 = vpop.xlane.xlu0 %2997
      %v2999 = vmul.f32 %v2992, %v2728
      %v3000 = vmul.f32 %v2995, %v2728
      %v3001 = vmul.f32 %v2998, %v2728
      %v3002 = vsub.f32 %v2985, %v2999
      %v3003 = vsub.f32 %v2986, %v3000
      %v3004 = vsub.f32 %v2987, %v3001
      %v3005 = vmul.f32 %v3002, %v3002
      %v3006 = vmul.f32 %v3003, %v3003
      %v3007 = vmul.f32 %v3004, %v3004
      %v3008 = vsel %vm835, %v3005, 0.0
      %3009 = vadd.xlane.f32.xlu0 %v3008
      %v3010 = vpop.xlane.xlu0 %3009
      %v3011 = vsel %vm835, %v3006, 0.0
      %3012 = vadd.xlane.f32.xlu0 %v3011
      %v3013 = vpop.xlane.xlu0 %3012
      %v3014 = vsel %vm2724, %v3007, 0.0
      %3015 = vadd.xlane.f32.xlu0 %v3014
      %v3016 = vpop.xlane.xlu0 %3015
      %v3017 = vmul.f32 %v3010, %v2728
      %v3018 = vmul.f32 %v3013, %v2728
      %v3019 = vmul.f32 %v3016, %v2728
      %v3020 = vadd.f32 %v3017, 1e-05
      %v3021 = vadd.f32 %v3018, 1e-05
      %v3022 = vadd.f32 %v3019, 1e-05
      %v3023 = vrsqrt.pop %v3020
      %v3024 = vrsqrt.pop %v3021
      %v3025 = vrsqrt.pop %v3022
      %v3026 = vmul.f32 %v3002, %v3023
      %v3027 = vmul.f32 %v3003, %v3024
      %v3028 = vmul.f32 %v3004, %v3025
      %v3030 = vlaneseq
      %v3031 = vshrl.u32 %v3030, 7
      %v3032 = vsub.s32 0, %v3031
      %v3033 = vrot.slane %v2988, %v3032
      %v3035 = vmul.f32 %v3026, %v3033
      %v3036 = vmul.f32 %v3027, %v3033
      %v3037 = vmul.f32 %v3028, %v3033
      %v3039 = vlaneseq
      %v3040 = vshrl.u32 %v3039, 7
      %v3041 = vsub.s32 0, %v3040
      %v3042 = vrot.slane %v2989, %v3041
      %v3044 = vadd.f32 %v3035, %v3042
      %v3045 = vadd.f32 %v3036, %v3042
      %v3046 = vadd.f32 %v3037, %v3042
      %3047 = vst.msk [vmem:[#allocation2] sm:$0xff] %vm835, %v3044
      %3048 = vst.msk [vmem:[#allocation2 + $0x8] sm:$0xff] %vm835, %v3045
      %3049 = vst.msk [vmem:[#allocation2 + $0x10] sm:$0x3] %vm2724, %v3046
      %p3050 = scmp.eq.s32.totalorder %s30, 1
      // Predicated region
      $region93: #{tpu_custom_call.1} parent=87 // pred_check
        %p3051 = pneg %p3050
      $region94: #{tpu_custom_call.1} parent=87 // pred_check_branch
        %3053 = sbr.rel (%p3051) target = $region96
      $region95: #{tpu_custom_call.1} parent=87 // pred_region
        %v3054 = vsel %vm1055, %v3044, %v3045
        %v3055 = vld [vmem:[%s15] sm:$0x1]
        %v3057 = vlaneseq
        %v3058 = vshrl.u32 %v3057, 7
        %v3059 = vsub.s32 0, %v3058
        %v3060 = vrot.slane %v3055, %v3059
        %v3062 = vmul.f32 %v3054, %v3060
        %v3063 = vsel %vm2724, %v3062, 0.0
        %3064 = vadd.xlane.f32.xlu0 %v3063
        %v3065 = vpop.xlane.xlu0 %3064
        %v3066 = vld [vmem:[#allocation3] sm:$0x1]
        %v3068 = vlaneseq
        %v3069 = vshrl.u32 %v3068, 7
        %v3070 = vsub.s32 0, %v3069
        %v3071 = vrot.slane %v3066, %v3070
        %v3073 = vadd.f32 %v3065, %v3071
        %v3074 = vsub.f32 0.0, %v3073
        %v3075 = vmul.f32 %v3074, 1.442695
        %v3076 = vpow.pop %v3075
        %v3077 = vadd.f32 %v3076, 1.0
        %v3078 = vrcp.pop %v3077
        %v3079 = vmul.f32 1.0, %v3078
        %vm3080 = vcmask 1024
        %3081 = vst.msk [vmem:[%s17] sm:$0x3] %vm3080, %v3079
      $region96: #{tpu_custom_call.1} parent=87 // pred_fallthru
        _
      // Predicated region
      $region97: #{tpu_custom_call.1} parent=87 // pred_check
        %p3082 = pneg %p460
      $region98: #{tpu_custom_call.1} parent=87 // pred_check_branch
        %3084 = sbr.rel (%p3082) target = $region100
      $region99: #{tpu_custom_call.1} parent=87 // pred_region
        _
      $region100: #{tpu_custom_call.1} parent=87 // pred_fallthru
        _
      // Predicated region
      $region101: #{tpu_custom_call.1} parent=87 // pred_check
        %p3085 = pneg %p460
      $region102: #{tpu_custom_call.1} parent=87 // pred_check_branch
        %3087 = sbr.rel (%p3085) target = $region104
      $region103: #{tpu_custom_call.1} parent=87 // pred_region
        _
      $region104: #{tpu_custom_call.1} parent=87 // pred_fallthru
        _
    $region88: #{tpu_custom_call.1} parent=5 // pred_fallthru
      _
    %p3088 = scmp.le.s32.totalorder 2, %s25
    // Predicated region
    $region105: #{tpu_custom_call.1} parent=5 // pred_check
      %p3089 = pneg %p3088
    $region106: #{tpu_custom_call.1} parent=5 // pred_check_branch
      %3091 = sbr.rel (%p3089) target = $region108
    $region107: #{tpu_custom_call.1} parent=5 // pred_region
      %s3092 = ssub.s32 %s25, 2
    $region108: #{tpu_custom_call.1} parent=5 // pred_fallthru
      _
  $region6: #{tpu_custom_call.1} parent=0 // loop_footer
    %s29 = sadd.s32 1, %s25
  $region7: #{tpu_custom_call.1} parent=0 // loop_footer_branch
    %24 = sbr.rel target = $region3
  $region8: #{tpu_custom_call.1} parent=0 // loop_exit
    _

</llo_original>
